<compile_context>
chip_gen: v6e
topology: v6e:2x2x1
jax: 0.10.0
libtpu: 0.0.40
codegen_flags: <defaults>
</compile_context>

<pallas_src>
import functools

import jax
import jax.numpy as jnp
from jax import lax
from jax.experimental import pallas as pl
from jax.experimental.pallas import tpu as pltpu

_BF16 = jnp.bfloat16
_F32 = jnp.float32


def _mxu_dot(a, b):
    """bf16-fed MXU matmul with f32 accumulation."""
    return jnp.dot(a.astype(_BF16), b.astype(_BF16), preferred_element_type=_F32)


def _layernorm(z, g, b, eps=1e-5):
    mu = jnp.mean(z, axis=-1, keepdims=True)
    var = jnp.mean((z - mu) ** 2, axis=-1, keepdims=True)
    return (z - mu) * lax.rsqrt(var + eps) * g + b


# ----------------------------------------------------------------------------
# Kernel 1: patch embedding (Conv2d kernel=stride=P as matmul) + bias + pos
# ----------------------------------------------------------------------------
def _patch_embed_kernel(p_ref, w_ref, b_ref, pos_ref, o_ref):
    emb = _mxu_dot(p_ref[0], w_ref[...]) + b_ref[...] + pos_ref[...]
    o_ref[0] = emb.astype(o_ref.dtype)


def patch_embed(patches, w, b, pos):
    """(N,S,CPP) @ (CPP,E) + bias + positional encodings -> (N,S,E)."""
    N, S, CPP = patches.shape
    E = w.shape[1]
    return pl.pallas_call(
        _patch_embed_kernel,
        grid=(N,),
        in_specs=[
            pl.BlockSpec((1, S, CPP), lambda i: (i, 0, 0)),
            pl.BlockSpec((CPP, E), lambda i: (0, 0)),
            pl.BlockSpec((1, E), lambda i: (0, 0)),
            pl.BlockSpec((S, E), lambda i: (0, 0)),
        ],
        out_specs=pl.BlockSpec((1, S, E), lambda i: (i, 0, 0)),
        out_shape=jax.ShapeDtypeStruct((N, S, E), _F32),
        compiler_params=pltpu.CompilerParams(dimension_semantics=("parallel",)),
    )(patches, w, b.reshape(1, E), pos)


# ----------------------------------------------------------------------------
# Kernel 2: fused attention sub-layer (QKV -> MHA -> out_proj -> +res -> LN1)
# ----------------------------------------------------------------------------
def _attn_layer_kernel(src_ref, wqkv_ref, bqkv_ref, wout_ref, bout_ref,
                       g_ref, beta_ref, o_ref, *, num_heads, scale):
    src = src_ref[0]                                   # (S, E) f32
    S, E = src.shape
    d = E // num_heads

    qkv = _mxu_dot(src, wqkv_ref[...]) + bqkv_ref[...]  # (S, 3E)

    attn = jnp.zeros((S, E), _F32)
    for h in range(num_heads):                          # static head loop
        q = qkv[:, h * d:(h + 1) * d]
        k = qkv[:, E + h * d:E + (h + 1) * d]
        v = qkv[:, 2 * E + h * d:2 * E + (h + 1) * d]
        s = lax.dot_general(q.astype(_BF16), k.astype(_BF16),
                            (((1,), (1,)), ((), ())),
                            preferred_element_type=_F32) * scale   # (S, S)
        m = jnp.max(s, axis=-1, keepdims=True)
        p = jnp.exp(s - m)
        p = p * pl.reciprocal(jnp.sum(p, axis=-1, keepdims=True), approx=True)
        o_h = _mxu_dot(p, v)                                        # (S, d)
        # out_proj applied per head (== concat(heads) @ Wout), no concat needed
        attn = attn + _mxu_dot(o_h, wout_ref[h * d:(h + 1) * d, :])

    z = src + attn + bout_ref[...]
    o_ref[0] = _layernorm(z, g_ref[...], beta_ref[...]).astype(o_ref.dtype)


def attention_layer(src, wqkv, bqkv, wout, bout, gamma, beta, num_heads):
    N, S, E = src.shape
    scale = 1.0 / float((E // num_heads) ** 0.5)
    return pl.pallas_call(
        functools.partial(_attn_layer_kernel, num_heads=num_heads, scale=scale),
        grid=(N,),
        in_specs=[
            pl.BlockSpec((1, S, E), lambda i: (i, 0, 0)),
            pl.BlockSpec((E, 3 * E), lambda i: (0, 0)),
            pl.BlockSpec((1, 3 * E), lambda i: (0, 0)),
            pl.BlockSpec((E, E), lambda i: (0, 0)),
            pl.BlockSpec((1, E), lambda i: (0, 0)),
            pl.BlockSpec((1, E), lambda i: (0, 0)),
            pl.BlockSpec((1, E), lambda i: (0, 0)),
        ],
        out_specs=pl.BlockSpec((1, S, E), lambda i: (i, 0, 0)),
        out_shape=jax.ShapeDtypeStruct((N, S, E), _F32),
        compiler_params=pltpu.CompilerParams(dimension_semantics=("parallel",)),
    )(src, wqkv, bqkv.reshape(1, 3 * E), wout, bout.reshape(1, E),
      gamma.reshape(1, E), beta.reshape(1, E))


# ----------------------------------------------------------------------------
# Kernel 3: fused FFN sub-layer (lin1 + ReLU + lin2 -> +res -> LN2)
# ----------------------------------------------------------------------------
def _ffn_ln_kernel(x_ref, w1_ref, b1_ref, w2_ref, b2_ref, g_ref, beta_ref, o_ref):
    x = x_ref[...]                                      # (tm, E)
    h = jnp.maximum(_mxu_dot(x, w1_ref[...]) + b1_ref[...], 0.0)
    y = _mxu_dot(h, w2_ref[...]) + b2_ref[...]
    o_ref[...] = _layernorm(x + y, g_ref[...], beta_ref[...]).astype(o_ref.dtype)


def _pick_row_tile(m, target=256):
    """Largest row tile <= target that divides m (multiple of 8), else full m."""
    if m <= target:
        return m
    t = (target // 8) * 8
    while t >= 8:
        if m % t == 0:
            return t
        t -= 8
    return m


def ffn_layernorm(x, w1, b1, w2, b2, gamma, beta):
    M, E = x.shape
    FF = w1.shape[1]
    tm = _pick_row_tile(M)
    return pl.pallas_call(
        _ffn_ln_kernel,
        grid=(M // tm,),
        in_specs=[
            pl.BlockSpec((tm, E), lambda i: (i, 0)),
            pl.BlockSpec((E, FF), lambda i: (0, 0)),
            pl.BlockSpec((1, FF), lambda i: (0, 0)),
            pl.BlockSpec((FF, E), lambda i: (0, 0)),
            pl.BlockSpec((1, E), lambda i: (0, 0)),
            pl.BlockSpec((1, E), lambda i: (0, 0)),
            pl.BlockSpec((1, E), lambda i: (0, 0)),
        ],
        out_specs=pl.BlockSpec((tm, E), lambda i: (i, 0)),
        out_shape=jax.ShapeDtypeStruct((M, E), _F32),
        compiler_params=pltpu.CompilerParams(dimension_semantics=("parallel",)),
    )(x, w1, b1.reshape(1, FF), w2, b2.reshape(1, E),
      gamma.reshape(1, E), beta.reshape(1, E))


# ----------------------------------------------------------------------------
# Kernel 4: fused conv3x3 (pad=1) + pixel-wise dot product (lane-dense output)
# ----------------------------------------------------------------------------
def _conv3_dot_kernel(xf_ref, w_ref, b_ref, q_ref, o_ref, *, H, W):
    # xf_ref: (1, C, (H+2)*(W+2)+2) zero-padded image flattened row-major.
    # A 3x3 tap (kh,kw) is a contiguous window of length H*(W+2) at offset
    # kh*(W+2)+kw; only the first W columns of each output row are valid and
    # the host drops the 2 wrap columns afterwards.
    Wp = W + 2
    L = H * Wp
    acc = None
    for kh in range(3):
        for kw in range(3):
            off = kh * Wp + kw
            win = xf_ref[0, :, off:off + L]             # (C, L)
            contrib = _mxu_dot(w_ref[kh * 3 + kw], win)  # (E, L)
            acc = contrib if acc is None else acc + contrib
    acc = acc + b_ref[...]                               # conv bias, (E, 1)
    # range attention map: queries (nQ, E) @ conv^T (E, L) -> lane-dense (nQ, L)
    o_ref[0] = _mxu_dot(q_ref[0], acc).astype(o_ref.dtype)


def conv3x3_pixelwise_dot(x, conv_w, conv_b, queries):
    """Fused Conv2d(C->E, 3x3, pad=1) + PixelWiseDotProduct -> (N, nQ, H, W)."""
    N, C, H, W = x.shape
    E = conv_w.shape[0]
    nQ = queries.shape[1]
    Wp = W + 2
    L = H * Wp
    T = (H + 2) * Wp + 2
    # TODO(synk): tile H*W spatially with halo DMA for images whose per-batch
    # slab exceeds VMEM (whole-image-per-batch is fine at these sizes).

    xpad = jnp.pad(x, ((0, 0), (0, 0), (1, 1), (1, 1))).reshape(N, C, (H + 2) * Wp)
    xflat = jnp.pad(xpad, ((0, 0), (0, 0), (0, 2)))      # room for the last window
    w9 = conv_w.transpose(2, 3, 0, 1).reshape(9, E, C)   # w9[kh*3+kw] = W[:,:,kh,kw]

    ram = pl.pallas_call(
        functools.partial(_conv3_dot_kernel, H=H, W=W),
        grid=(N,),
        in_specs=[
            pl.BlockSpec((1, C, T), lambda i: (i, 0, 0)),
            pl.BlockSpec((9, E, C), lambda i: (0, 0, 0)),
            pl.BlockSpec((E, 1), lambda i: (0, 0)),
            pl.BlockSpec((1, nQ, E), lambda i: (i, 0, 0)),
        ],
        out_specs=pl.BlockSpec((1, nQ, L), lambda i: (i, 0, 0)),
        out_shape=jax.ShapeDtypeStruct((N, nQ, L), _F32),
        compiler_params=pltpu.CompilerParams(dimension_semantics=("parallel",)),
    )(xflat, w9, conv_b.reshape(E, 1), queries)
    return ram.reshape(N, nQ, H, Wp)[..., :W]


# ----------------------------------------------------------------------------
# Kernel 5: regressor (3 Linear + LeakyReLU) + softmax (norm == 'softmax')
# ----------------------------------------------------------------------------
def _regressor_kernel(x_ref, w1_ref, b1_ref, w2_ref, b2_ref, w3_ref, b3_ref, o_ref):
    def leaky(t):
        return jnp.where(t >= 0.0, t, 0.01 * t)          # PyTorch default slope

    h = leaky(jnp.dot(x_ref[...], w1_ref[...], preferred_element_type=_F32) + b1_ref[...])
    h = leaky(jnp.dot(h, w2_ref[...], preferred_element_type=_F32) + b2_ref[...])
    y = jnp.dot(h, w3_ref[...], preferred_element_type=_F32) + b3_ref[...]
    m = jnp.max(y, axis=-1, keepdims=True)
    e = jnp.exp(y - m)
    o_ref[...] = (e / jnp.sum(e, axis=-1, keepdims=True)).astype(o_ref.dtype)


def regressor_softmax(x, w1, b1, w2, b2, w3, b3):
    N, E = x.shape
    H1, H2, DO = w1.shape[1], w2.shape[1], w3.shape[1]
    return pl.pallas_call(
        _regressor_kernel,
        grid=(1,),
        in_specs=[
            pl.BlockSpec((N, E), lambda i: (0, 0)),
            pl.BlockSpec((E, H1), lambda i: (0, 0)),
            pl.BlockSpec((1, H1), lambda i: (0, 0)),
            pl.BlockSpec((H1, H2), lambda i: (0, 0)),
            pl.BlockSpec((1, H2), lambda i: (0, 0)),
            pl.BlockSpec((H2, DO), lambda i: (0, 0)),
            pl.BlockSpec((1, DO), lambda i: (0, 0)),
        ],
        out_specs=pl.BlockSpec((N, DO), lambda i: (0, 0)),
        out_shape=jax.ShapeDtypeStruct((N, DO), _F32),
    )(x, w1, b1.reshape(1, H1), w2, b2.reshape(1, H2), w3, b3.reshape(1, DO))


# ----------------------------------------------------------------------------
# Parameter init (deterministic, synthetic — PyTorch-shaped weights)
# ----------------------------------------------------------------------------
def init_params(key, *, in_channels, patch_size, embedding_dim, ff_dim,
                dim_out, n_layers):
    E, C, P = embedding_dim, in_channels, patch_size
    ks = iter(jax.random.split(key, 64))
    nrm = lambda shape, s=0.05: (s * jax.random.normal(next(ks), shape)).astype(_F32)

    params = {
        "patch_w": nrm((E, C, P, P)),            # Conv2d(C->E, kernel=stride=P)
        "patch_b": nrm((E,)),
        "pos": jax.random.uniform(next(ks), (500, E), dtype=_F32),   # rand(500,E)
        "conv3_w": nrm((E, C, 3, 3)),            # Conv2d(C->E, 3x3, pad=1)
        "conv3_b": nrm((E,)),
        "reg1_w": nrm((256, E)), "reg1_b": nrm((256,)),
        "reg2_w": nrm((256, 256)), "reg2_b": nrm((256,)),
        "reg3_w": nrm((dim_out, 256)), "reg3_b": nrm((dim_out,)),
        "layers": [],
    }
    for _ in range(n_layers):
        params["layers"].append({
            "in_proj_w": nrm((3 * E, E)), "in_proj_b": nrm((3 * E,)),
            "out_proj_w": nrm((E, E)), "out_proj_b": nrm((E,)),
            "ln1_g": jnp.ones((E,), _F32), "ln1_b": jnp.zeros((E,), _F32),
            "lin1_w": nrm((ff_dim, E)), "lin1_b": nrm((ff_dim,)),
            "lin2_w": nrm((E, ff_dim)), "lin2_b": nrm((E,)),
            "ln2_g": jnp.ones((E,), _F32), "ln2_b": jnp.zeros((E,), _F32),
        })
    return params


# ----------------------------------------------------------------------------
# mViT forward (host glue is only reshapes / weight transposes)
# ----------------------------------------------------------------------------
def mvit_forward(x, params, *, patch_size, num_heads, n_query_channels):
    N, C, H, W = x.shape
    E = params["pos"].shape[1]
    P = patch_size
    Hp, Wp = H // P, W // P
    S = Hp * Wp
    assert S <= params["pos"].shape[0], "positional encodings support at most 500 patches"
    assert n_query_channels + 1 <= S

    # ---- patch embedding + positional encodings (fused) --------------------
    patches = x.reshape(N, C, Hp, P, Wp, P).transpose(0, 2, 4, 1, 3, 5)
    patches = patches.reshape(N, S, C * P * P)
    w_patch = params["patch_w"].reshape(E, -1).T                 # (C*P*P, E)
    src = patch_embed(patches, w_patch, params["patch_b"], params["pos"][:S])

    # ---- 4x post-norm TransformerEncoderLayer, two fused kernels per layer --
    for lp in params["layers"]:
        src = attention_layer(src, lp["in_proj_w"].T, lp["in_proj_b"],
                              lp["out_proj_w"].T, lp["out_proj_b"],
                              lp["ln1_g"], lp["ln1_b"], num_heads)
        src = ffn_layernorm(src.reshape(N * S, E),
                            lp["lin1_w"].T, lp["lin1_b"],
                            lp["lin2_w"].T, lp["lin2_b"],
                            lp["ln2_g"], lp["ln2_b"]).reshape(N, S, E)

    regression_head = src[:, 0, :]                               # (N, E)
    queries = src[:, 1:n_query_channels + 1, :]                  # (N, nQ, E)

    # ---- fused conv3x3 + pixel-wise dot product -----------------------------
    range_attention_maps = conv3x3_pixelwise_dot(x, params["conv3_w"],
                                                 params["conv3_b"], queries)

    # ---- fused regressor + softmax ------------------------------------------
    y = regressor_softmax(regression_head,
                          params["reg1_w"].T, params["reg1_b"],
                          params["reg2_w"].T, params["reg2_b"],
                          params["reg3_w"].T, params["reg3_b"])
    return y, range_attention_maps


# ----------------------------------------------------------------------------
# Pure-JAX reference (same bf16 MXU rounding points) for validation
# ----------------------------------------------------------------------------
def mvit_reference(x, params, *, patch_size, num_heads, n_query_channels):
    N, C, H, W = x.shape
    E = params["pos"].shape[1]
    d = E // num_heads
    P = patch_size
    Hp, Wp = H // P, W // P
    S = Hp * Wp

    def mm(a, b):
        return jnp.dot(a.astype(_BF16), b.astype(_BF16), preferred_element_type=_F32)

    def layer_norm(z, g, b):
        mu = jnp.mean(z, -1, keepdims=True)
        var = jnp.mean((z - mu) ** 2, -1, keepdims=True)
        return (z - mu) * lax.rsqrt(var + 1e-5) * g + b

    patches = x.reshape(N, C, Hp, P, Wp, P).transpose(0, 2, 4, 1, 3, 5).reshape(N, S, -1)
    wp = params["patch_w"].reshape(E, -1).T
    src = (mm(patches.reshape(N * S, -1), wp).reshape(N, S, E)
           + params["patch_b"] + params["pos"][:S][None])

    for lp in params["layers"]:
        x2 = src.reshape(N * S, E)
        qkv = mm(x2, lp["in_proj_w"].T) + lp["in_proj_b"]
        qkv = qkv.reshape(N, S, 3, num_heads, d).transpose(2, 0, 3, 1, 4)
        q, k, v = qkv[0], qkv[1], qkv[2]                         # (N, H, S, d)
        s = jnp.einsum("nhqd,nhkd->nhqk", q.astype(_BF16), k.astype(_BF16),
                       preferred_element_type=_F32) / (d ** 0.5)
        p = jax.nn.softmax(s, axis=-1)
        o = jnp.einsum("nhqk,nhkd->nhqd", p.astype(_BF16), v.astype(_BF16),
                       preferred_element_type=_F32)
        o = o.transpose(0, 2, 1, 3).reshape(N * S, E)
        attn = mm(o, lp["out_proj_w"].T) + lp["out_proj_b"]
        x2 = layer_norm(x2 + attn, lp["ln1_g"], lp["ln1_b"])
        ff = jnp.maximum(mm(x2, lp["lin1_w"].T) + lp["lin1_b"], 0.0)
        ff = mm(ff, lp["lin2_w"].T) + lp["lin2_b"]
        x2 = layer_norm(x2 + ff, lp["ln2_g"], lp["ln2_b"])
        src = x2.reshape(N, S, E)

    head = src[:, 0]
    queries = src[:, 1:n_query_channels + 1]

    xp = jnp.pad(x, ((0, 0), (0, 0), (1, 1), (1, 1)))
    shifted = jnp.stack([xp[:, :, kh:kh + H, kw:kw + W]
                         for kh in range(3) for kw in range(3)], axis=0)
    w9 = params["conv3_w"].transpose(2, 3, 0, 1).reshape(9, E, C)
    conv = jnp.einsum("knchw,kec->nehw", shifted.astype(_BF16), w9.astype(_BF16),
                      preferred_element_type=_F32) + params["conv3_b"][None, :, None, None]
    ram = jnp.einsum("nqe,nehw->nqhw", queries.astype(_BF16), conv.astype(_BF16),
                     preferred_element_type=_F32)

    def leaky(t):
        return jnp.where(t >= 0.0, t, 0.01 * t)

    y = leaky(head @ params["reg1_w"].T + params["reg1_b"])
    y = leaky(y @ params["reg2_w"].T + params["reg2_b"])
    y = y @ params["reg3_w"].T + params["reg3_b"]
    y = jax.nn.softmax(y, axis=1)
    return y, ram


# ----------------------------------------------------------------------------
if __name__ == "__main__":
    N, C, H, W = 2, 4, 16, 16
    PATCH = 4            # patch_size
    E = 32               # embedding_dim (divisible by num_heads)
    HEADS = 4
    N_QUERY = 8          # n_query_channels (needs S = (H/P)*(W/P) >= N_QUERY+1)
    DIM_OUT = 16
    FF = 1024            # dim_feedforward hard-coded in PatchTransformerEncoder
    LAYERS = 4

    key = jax.random.PRNGKey(0)
    kx, kp = jax.random.split(key)
    x = jax.random.normal(kx, (N, C, H, W), dtype=jnp.float32)
    params = init_params(kp, in_channels=C, patch_size=PATCH, embedding_dim=E,
                         ff_dim=FF, dim_out=DIM_OUT, n_layers=LAYERS)

    fwd = jax.jit(functools.partial(mvit_forward, patch_size=PATCH,
                                    num_heads=HEADS, n_query_channels=N_QUERY))
    y, range_attention_maps = fwd(x, params)
    jax.block_until_ready(y)
    jax.block_until_ready(range_attention_maps)

    assert y.shape == (N, DIM_OUT)
    assert range_attention_maps.shape == (N, N_QUERY, H, W)
    assert bool(jnp.allclose(jnp.sum(y, axis=1), 1.0, atol=1e-4))

    # Validate against a pure-JAX reference using the same bf16 MXU arithmetic.
    ref = jax.jit(functools.partial(mvit_reference, patch_size=PATCH,
                                    num_heads=HEADS, n_query_channels=N_QUERY))
    y_ref, ram_ref = ref(x, params)
    jax.block_until_ready(y_ref)
    assert bool(jnp.allclose(y, y_ref, atol=5e-2, rtol=5e-2))
    assert bool(jnp.allclose(range_attention_maps, ram_ref, atol=5e-2, rtol=5e-2))

    print("KERNEL_OK")
</pallas_src>

<mosaic_0001>
module attributes {stable_mosaic.version = 11 : i64} {
  func.func @_patch_embed_kernel(%arg0: i32, %arg1: memref<1x16x64xf32, #tpu.memory_space<vmem>>, %arg2: memref<64x32xf32, #tpu.memory_space<vmem>>, %arg3: memref<1x32xf32, #tpu.memory_space<vmem>>, %arg4: memref<16x32xf32, #tpu.memory_space<vmem>>, %arg5: memref<1x16x32xf32, #tpu.memory_space<vmem>>) attributes {dimension_semantics = [#tpu.dimension_semantics<parallel>], iteration_bounds = array<i64: 2>, scalar_prefetch = 0 : i64, scratch_operands = 0 : i64, tpu.core_type = #tpu.core_type<tc>, window_params = [{transform_indices = @transform_0, window_bounds = array<i64: 1, 16, 64>}, {pipeline_mode = #tpu.pipeline_mode<synchronous>, transform_indices = @transform_1, window_bounds = array<i64: 64, 32>}, {pipeline_mode = #tpu.pipeline_mode<synchronous>, transform_indices = @transform_2, window_bounds = array<i64: 1, 32>}, {pipeline_mode = #tpu.pipeline_mode<synchronous>, transform_indices = @transform_3, window_bounds = array<i64: 16, 32>}, {transform_indices = @transform_4, window_bounds = array<i64: 1, 16, 32>}]} {
    %c0 = arith.constant 0 : index
    %c0_0 = arith.constant 0 : index
    %c0_1 = arith.constant 0 : index
    %0 = vector.load %arg1[%c0, %c0_0, %c0_1] : memref<1x16x64xf32, #tpu.memory_space<vmem>>, vector<1x16x64xf32>
    %1 = vector.shape_cast %0 : vector<1x16x64xf32> to vector<16x64xf32>
    %c0_2 = arith.constant 0 : index
    %c0_3 = arith.constant 0 : index
    %2 = vector.load %arg2[%c0_2, %c0_3] : memref<64x32xf32, #tpu.memory_space<vmem>>, vector<64x32xf32>
    %3 = arith.truncf %1 : vector<16x64xf32> to vector<16x64xbf16>
    %4 = arith.truncf %2 : vector<64x32xf32> to vector<64x32xbf16>
    %cst = arith.constant dense<0.000000e+00> : vector<16x32xf32>
    %5 = tpu.matmul %3, %4, %cst {dimension_numbers = #tpu.dot_dimension_numbers<[1], [0], [0], [1], [0, 0, 1, 1], [], []>} : vector<16x64xbf16>, vector<64x32xbf16>, vector<16x32xf32> -> vector<16x32xf32>
    %c0_4 = arith.constant 0 : index
    %c0_5 = arith.constant 0 : index
    %6 = vector.load %arg3[%c0_4, %c0_5] : memref<1x32xf32, #tpu.memory_space<vmem>>, vector<1x32xf32>
    %7 = vector.broadcast %6 : vector<1x32xf32> to vector<16x32xf32>
    %8 = arith.addf %5, %7 : vector<16x32xf32>
    %c0_6 = arith.constant 0 : index
    %c0_7 = arith.constant 0 : index
    %9 = vector.load %arg4[%c0_6, %c0_7] : memref<16x32xf32, #tpu.memory_space<vmem>>, vector<16x32xf32>
    %10 = arith.addf %8, %9 : vector<16x32xf32>
    %c0_8 = arith.constant 0 : index
    %c0_9 = arith.constant 0 : index
    %c0_10 = arith.constant 0 : index
    %11 = vector.load %arg5[%c0_8, %c0_9, %c0_10] : memref<1x16x32xf32, #tpu.memory_space<vmem>>, vector<1x16x32xf32>
    %12 = vector.shape_cast %11 : vector<1x16x32xf32> to vector<16x32xf32>
    %13 = vector.shape_cast %10 : vector<16x32xf32> to vector<1x16x32xf32>
    tpu.vector_store %arg5[%c0_8, %c0_9, %c0_10], %13 {strides = array<i32>} : memref<1x16x32xf32, #tpu.memory_space<vmem>>, vector<1x16x32xf32>,
    return
  }
  func.func @transform_0(%arg0: i32) -> (i32, i32, i32) {
    %c0_i32 = arith.constant 0 : i32
    %c0_i32_0 = arith.constant 0 : i32
    %c0_i32_1 = arith.constant 0 : i32
    return %arg0, %c0_i32, %c0_i32_0 : i32, i32, i32
  }
  func.func @transform_1(%arg0: i32) -> (i32, i32) {
    %c0_i32 = arith.constant 0 : i32
    %c0_i32_0 = arith.constant 0 : i32
    %c0_i32_1 = arith.constant 0 : i32
    return %c0_i32, %c0_i32_0 : i32, i32
  }
  func.func @transform_2(%arg0: i32) -> (i32, i32) {
    %c0_i32 = arith.constant 0 : i32
    %c0_i32_0 = arith.constant 0 : i32
    %c0_i32_1 = arith.constant 0 : i32
    return %c0_i32, %c0_i32_0 : i32, i32
  }
  func.func @transform_3(%arg0: i32) -> (i32, i32) {
    %c0_i32 = arith.constant 0 : i32
    %c0_i32_0 = arith.constant 0 : i32
    %c0_i32_1 = arith.constant 0 : i32
    return %c0_i32, %c0_i32_0 : i32, i32
  }
  func.func @transform_4(%arg0: i32) -> (i32, i32, i32) {
    %c0_i32 = arith.constant 0 : i32
    %c0_i32_0 = arith.constant 0 : i32
    %c0_i32_1 = arith.constant 0 : i32
    return %arg0, %c0_i32, %c0_i32_0 : i32, i32, i32
  }
}

module attributes {stable_mosaic.version = 11 : i64} {
  func.func @_attn_layer_kernel(%arg0: i32, %arg1: memref<1x16x32xf32, #tpu.memory_space<vmem>>, %arg2: memref<32x96xf32, #tpu.memory_space<vmem>>, %arg3: memref<1x96xf32, #tpu.memory_space<vmem>>, %arg4: memref<32x32xf32, #tpu.memory_space<vmem>>, %arg5: memref<1x32xf32, #tpu.memory_space<vmem>>, %arg6: memref<1x32xf32, #tpu.memory_space<vmem>>, %arg7: memref<1x32xf32, #tpu.memory_space<vmem>>, %arg8: memref<1x16x32xf32, #tpu.memory_space<vmem>>) attributes {dimension_semantics = [#tpu.dimension_semantics<parallel>], iteration_bounds = array<i64: 2>, scalar_prefetch = 0 : i64, scratch_operands = 0 : i64, tpu.core_type = #tpu.core_type<tc>, window_params = [{transform_indices = @transform_0, window_bounds = array<i64: 1, 16, 32>}, {pipeline_mode = #tpu.pipeline_mode<synchronous>, transform_indices = @transform_1, window_bounds = array<i64: 32, 96>}, {pipeline_mode = #tpu.pipeline_mode<synchronous>, transform_indices = @transform_2, window_bounds = array<i64: 1, 96>}, {pipeline_mode = #tpu.pipeline_mode<synchronous>, transform_indices = @transform_3, window_bounds = array<i64: 32, 32>}, {pipeline_mode = #tpu.pipeline_mode<synchronous>, transform_indices = @transform_4, window_bounds = array<i64: 1, 32>}, {pipeline_mode = #tpu.pipeline_mode<synchronous>, transform_indices = @transform_5, window_bounds = array<i64: 1, 32>}, {pipeline_mode = #tpu.pipeline_mode<synchronous>, transform_indices = @transform_6, window_bounds = array<i64: 1, 32>}, {transform_indices = @transform_7, window_bounds = array<i64: 1, 16, 32>}]} {
    %c0 = arith.constant 0 : index
    %c0_0 = arith.constant 0 : index
    %c0_1 = arith.constant 0 : index
    %0 = vector.load %arg1[%c0, %c0_0, %c0_1] : memref<1x16x32xf32, #tpu.memory_space<vmem>>, vector<1x16x32xf32>
    %1 = vector.shape_cast %0 : vector<1x16x32xf32> to vector<16x32xf32>
    %c0_2 = arith.constant 0 : index
    %c0_3 = arith.constant 0 : index
    %2 = vector.load %arg2[%c0_2, %c0_3] : memref<32x96xf32, #tpu.memory_space<vmem>>, vector<32x96xf32>
    %3 = arith.truncf %1 : vector<16x32xf32> to vector<16x32xbf16>
    %4 = arith.truncf %2 : vector<32x96xf32> to vector<32x96xbf16>
    %cst = arith.constant dense<0.000000e+00> : vector<16x96xf32>
    %5 = tpu.matmul %3, %4, %cst {dimension_numbers = #tpu.dot_dimension_numbers<[1], [0], [0], [1], [0, 0, 1, 1], [], []>} : vector<16x32xbf16>, vector<32x96xbf16>, vector<16x96xf32> -> vector<16x96xf32>
    %c0_4 = arith.constant 0 : index
    %c0_5 = arith.constant 0 : index
    %6 = vector.load %arg3[%c0_4, %c0_5] : memref<1x96xf32, #tpu.memory_space<vmem>>, vector<1x96xf32>
    %7 = vector.broadcast %6 : vector<1x96xf32> to vector<16x96xf32>
    %8 = arith.addf %5, %7 : vector<16x96xf32>
    %cst_6 = arith.constant 0.000000e+00 : f32
    %9 = vector.broadcast %cst_6 : f32 to vector<16x32xf32>
    %10 = vector.extract_strided_slice %8 {offsets = [0, 0], sizes = [16, 8], strides = [1, 1]} : vector<16x96xf32> to vector<16x8xf32>
    %11 = vector.extract_strided_slice %8 {offsets = [0, 32], sizes = [16, 8], strides = [1, 1]} : vector<16x96xf32> to vector<16x8xf32>
    %12 = vector.extract_strided_slice %8 {offsets = [0, 64], sizes = [16, 8], strides = [1, 1]} : vector<16x96xf32> to vector<16x8xf32>
    %13 = arith.truncf %10 : vector<16x8xf32> to vector<16x8xbf16>
    %14 = arith.truncf %11 : vector<16x8xf32> to vector<16x8xbf16>
    %cst_7 = arith.constant dense<0.000000e+00> : vector<16x16xf32>
    %15 = tpu.matmul %13, %14, %cst_7 {dimension_numbers = #tpu.dot_dimension_numbers<[1], [1], [0], [0], [0, 0, 1, 0], [], []>} : vector<16x8xbf16>, vector<16x8xbf16>, vector<16x16xf32> -> vector<16x16xf32>
    %cst_8 = arith.constant 0.353553385 : f32
    %16 = vector.broadcast %cst_8 : f32 to vector<16x16xf32>
    %17 = arith.mulf %15, %16 : vector<16x16xf32>
    %cst_9 = arith.constant dense<0xFF800000> : vector<16xf32>
    %18 = vector.multi_reduction <maximumf>, %17, %cst_9 [1] : vector<16x16xf32> to vector<16xf32>
    %19 = vector.shape_cast %18 : vector<16xf32> to vector<16x1xf32>
    %20 = vector.broadcast %19 : vector<16x1xf32> to vector<16x16xf32>
    %21 = arith.subf %17, %20 : vector<16x16xf32>
    %22 = math.exp %21 : vector<16x16xf32>
    %cst_10 = arith.constant dense<0.000000e+00> : vector<16xf32>
    %23 = vector.multi_reduction <add>, %22, %cst_10 [1] : vector<16x16xf32> to vector<16xf32>
    %24 = vector.shape_cast %23 : vector<16xf32> to vector<16x1xf32>
    %25 = tpu.reciprocal %24 {approx = true} : vector<16x1xf32> -> vector<16x1xf32>
    %26 = vector.broadcast %25 : vector<16x1xf32> to vector<16x16xf32>
    %27 = arith.mulf %22, %26 : vector<16x16xf32>
    %28 = arith.truncf %27 : vector<16x16xf32> to vector<16x16xbf16>
    %29 = arith.truncf %12 : vector<16x8xf32> to vector<16x8xbf16>
    %cst_11 = arith.constant dense<0.000000e+00> : vector<16x8xf32>
    %30 = tpu.matmul %28, %29, %cst_11 {dimension_numbers = #tpu.dot_dimension_numbers<[1], [0], [0], [1], [0, 0, 1, 1], [], []>} : vector<16x16xbf16>, vector<16x8xbf16>, vector<16x8xf32> -> vector<16x8xf32>
    %c0_12 = arith.constant 0 : index
    %c0_13 = arith.constant 0 : index
    %31 = vector.load %arg4[%c0_12, %c0_13] : memref<32x32xf32, #tpu.memory_space<vmem>>, vector<8x32xf32>
    %32 = arith.truncf %30 : vector<16x8xf32> to vector<16x8xbf16>
    %33 = arith.truncf %31 : vector<8x32xf32> to vector<8x32xbf16>
    %cst_14 = arith.constant dense<0.000000e+00> : vector<16x32xf32>
    %34 = tpu.matmul %32, %33, %cst_14 {dimension_numbers = #tpu.dot_dimension_numbers<[1], [0], [0], [1], [0, 0, 1, 1], [], []>} : vector<16x8xbf16>, vector<8x32xbf16>, vector<16x32xf32> -> vector<16x32xf32>
    %35 = arith.addf %9, %34 : vector<16x32xf32>
    %36 = vector.extract_strided_slice %8 {offsets = [0, 8], sizes = [16, 8], strides = [1, 1]} : vector<16x96xf32> to vector<16x8xf32>
    %37 = vector.extract_strided_slice %8 {offsets = [0, 40], sizes = [16, 8], strides = [1, 1]} : vector<16x96xf32> to vector<16x8xf32>
    %38 = vector.extract_strided_slice %8 {offsets = [0, 72], sizes = [16, 8], strides = [1, 1]} : vector<16x96xf32> to vector<16x8xf32>
    %39 = arith.truncf %36 : vector<16x8xf32> to vector<16x8xbf16>
    %40 = arith.truncf %37 : vector<16x8xf32> to vector<16x8xbf16>
    %cst_15 = arith.constant dense<0.000000e+00> : vector<16x16xf32>
    %41 = tpu.matmul %39, %40, %cst_15 {dimension_numbers = #tpu.dot_dimension_numbers<[1], [1], [0], [0], [0, 0, 1, 0], [], []>} : vector<16x8xbf16>, vector<16x8xbf16>, vector<16x16xf32> -> vector<16x16xf32>
    %cst_16 = arith.constant 0.353553385 : f32
    %42 = vector.broadcast %cst_16 : f32 to vector<16x16xf32>
    %43 = arith.mulf %41, %42 : vector<16x16xf32>
    %cst_17 = arith.constant dense<0xFF800000> : vector<16xf32>
    %44 = vector.multi_reduction <maximumf>, %43, %cst_17 [1] : vector<16x16xf32> to vector<16xf32>
    %45 = vector.shape_cast %44 : vector<16xf32> to vector<16x1xf32>
    %46 = vector.broadcast %45 : vector<16x1xf32> to vector<16x16xf32>
    %47 = arith.subf %43, %46 : vector<16x16xf32>
    %48 = math.exp %47 : vector<16x16xf32>
    %cst_18 = arith.constant dense<0.000000e+00> : vector<16xf32>
    %49 = vector.multi_reduction <add>, %48, %cst_18 [1] : vector<16x16xf32> to vector<16xf32>
    %50 = vector.shape_cast %49 : vector<16xf32> to vector<16x1xf32>
    %51 = tpu.reciprocal %50 {approx = true} : vector<16x1xf32> -> vector<16x1xf32>
    %52 = vector.broadcast %51 : vector<16x1xf32> to vector<16x16xf32>
    %53 = arith.mulf %48, %52 : vector<16x16xf32>
    %54 = arith.truncf %53 : vector<16x16xf32> to vector<16x16xbf16>
    %55 = arith.truncf %38 : vector<16x8xf32> to vector<16x8xbf16>
    %cst_19 = arith.constant dense<0.000000e+00> : vector<16x8xf32>
    %56 = tpu.matmul %54, %55, %cst_19 {dimension_numbers = #tpu.dot_dimension_numbers<[1], [0], [0], [1], [0, 0, 1, 1], [], []>} : vector<16x16xbf16>, vector<16x8xbf16>, vector<16x8xf32> -> vector<16x8xf32>
    %c8 = arith.constant 8 : index
    %c0_20 = arith.constant 0 : index
    %57 = vector.load %arg4[%c8, %c0_20] : memref<32x32xf32, #tpu.memory_space<vmem>>, vector<8x32xf32>
    %58 = arith.truncf %56 : vector<16x8xf32> to vector<16x8xbf16>
    %59 = arith.truncf %57 : vector<8x32xf32> to vector<8x32xbf16>
    %cst_21 = arith.constant dense<0.000000e+00> : vector<16x32xf32>
    %60 = tpu.matmul %58, %59, %cst_21 {dimension_numbers = #tpu.dot_dimension_numbers<[1], [0], [0], [1], [0, 0, 1, 1], [], []>} : vector<16x8xbf16>, vector<8x32xbf16>, vector<16x32xf32> -> vector<16x32xf32>
    %61 = arith.addf %35, %60 : vector<16x32xf32>
    %62 = vector.extract_strided_slice %8 {offsets = [0, 16], sizes = [16, 8], strides = [1, 1]} : vector<16x96xf32> to vector<16x8xf32>
    %63 = vector.extract_strided_slice %8 {offsets = [0, 48], sizes = [16, 8], strides = [1, 1]} : vector<16x96xf32> to vector<16x8xf32>
    %64 = vector.extract_strided_slice %8 {offsets = [0, 80], sizes = [16, 8], strides = [1, 1]} : vector<16x96xf32> to vector<16x8xf32>
    %65 = arith.truncf %62 : vector<16x8xf32> to vector<16x8xbf16>
    %66 = arith.truncf %63 : vector<16x8xf32> to vector<16x8xbf16>
    %cst_22 = arith.constant dense<0.000000e+00> : vector<16x16xf32>
    %67 = tpu.matmul %65, %66, %cst_22 {dimension_numbers = #tpu.dot_dimension_numbers<[1], [1], [0], [0], [0, 0, 1, 0], [], []>} : vector<16x8xbf16>, vector<16x8xbf16>, vector<16x16xf32> -> vector<16x16xf32>
    %cst_23 = arith.constant 0.353553385 : f32
    %68 = vector.broadcast %cst_23 : f32 to vector<16x16xf32>
    %69 = arith.mulf %67, %68 : vector<16x16xf32>
    %cst_24 = arith.constant dense<0xFF800000> : vector<16xf32>
    %70 = vector.multi_reduction <maximumf>, %69, %cst_24 [1] : vector<16x16xf32> to vector<16xf32>
    %71 = vector.shape_cast %70 : vector<16xf32> to vector<16x1xf32>
    %72 = vector.broadcast %71 : vector<16x1xf32> to vector<16x16xf32>
    %73 = arith.subf %69, %72 : vector<16x16xf32>
    %74 = math.exp %73 : vector<16x16xf32>
    %cst_25 = arith.constant dense<0.000000e+00> : vector<16xf32>
    %75 = vector.multi_reduction <add>, %74, %cst_25 [1] : vector<16x16xf32> to vector<16xf32>
    %76 = vector.shape_cast %75 : vector<16xf32> to vector<16x1xf32>
    %77 = tpu.reciprocal %76 {approx = true} : vector<16x1xf32> -> vector<16x1xf32>
    %78 = vector.broadcast %77 : vector<16x1xf32> to vector<16x16xf32>
    %79 = arith.mulf %74, %78 : vector<16x16xf32>
    %80 = arith.truncf %79 : vector<16x16xf32> to vector<16x16xbf16>
    %81 = arith.truncf %64 : vector<16x8xf32> to vector<16x8xbf16>
    %cst_26 = arith.constant dense<0.000000e+00> : vector<16x8xf32>
    %82 = tpu.matmul %80, %81, %cst_26 {dimension_numbers = #tpu.dot_dimension_numbers<[1], [0], [0], [1], [0, 0, 1, 1], [], []>} : vector<16x16xbf16>, vector<16x8xbf16>, vector<16x8xf32> -> vector<16x8xf32>
    %c16 = arith.constant 16 : index
    %c0_27 = arith.constant 0 : index
    %83 = vector.load %arg4[%c16, %c0_27] : memref<32x32xf32, #tpu.memory_space<vmem>>, vector<8x32xf32>
    %84 = arith.truncf %82 : vector<16x8xf32> to vector<16x8xbf16>
    %85 = arith.truncf %83 : vector<8x32xf32> to vector<8x32xbf16>
    %cst_28 = arith.constant dense<0.000000e+00> : vector<16x32xf32>
    %86 = tpu.matmul %84, %85, %cst_28 {dimension_numbers = #tpu.dot_dimension_numbers<[1], [0], [0], [1], [0, 0, 1, 1], [], []>} : vector<16x8xbf16>, vector<8x32xbf16>, vector<16x32xf32> -> vector<16x32xf32>
    %87 = arith.addf %61, %86 : vector<16x32xf32>
    %88 = vector.extract_strided_slice %8 {offsets = [0, 24], sizes = [16, 8], strides = [1, 1]} : vector<16x96xf32> to vector<16x8xf32>
    %89 = vector.extract_strided_slice %8 {offsets = [0, 56], sizes = [16, 8], strides = [1, 1]} : vector<16x96xf32> to vector<16x8xf32>
    %90 = vector.extract_strided_slice %8 {offsets = [0, 88], sizes = [16, 8], strides = [1, 1]} : vector<16x96xf32> to vector<16x8xf32>
    %91 = arith.truncf %88 : vector<16x8xf32> to vector<16x8xbf16>
    %92 = arith.truncf %89 : vector<16x8xf32> to vector<16x8xbf16>
    %cst_29 = arith.constant dense<0.000000e+00> : vector<16x16xf32>
    %93 = tpu.matmul %91, %92, %cst_29 {dimension_numbers = #tpu.dot_dimension_numbers<[1], [1], [0], [0], [0, 0, 1, 0], [], []>} : vector<16x8xbf16>, vector<16x8xbf16>, vector<16x16xf32> -> vector<16x16xf32>
    %cst_30 = arith.constant 0.353553385 : f32
    %94 = vector.broadcast %cst_30 : f32 to vector<16x16xf32>
    %95 = arith.mulf %93, %94 : vector<16x16xf32>
    %cst_31 = arith.constant dense<0xFF800000> : vector<16xf32>
    %96 = vector.multi_reduction <maximumf>, %95, %cst_31 [1] : vector<16x16xf32> to vector<16xf32>
    %97 = vector.shape_cast %96 : vector<16xf32> to vector<16x1xf32>
    %98 = vector.broadcast %97 : vector<16x1xf32> to vector<16x16xf32>
    %99 = arith.subf %95, %98 : vector<16x16xf32>
    %100 = math.exp %99 : vector<16x16xf32>
    %cst_32 = arith.constant dense<0.000000e+00> : vector<16xf32>
    %101 = vector.multi_reduction <add>, %100, %cst_32 [1] : vector<16x16xf32> to vector<16xf32>
    %102 = vector.shape_cast %101 : vector<16xf32> to vector<16x1xf32>
    %103 = tpu.reciprocal %102 {approx = true} : vector<16x1xf32> -> vector<16x1xf32>
    %104 = vector.broadcast %103 : vector<16x1xf32> to vector<16x16xf32>
    %105 = arith.mulf %100, %104 : vector<16x16xf32>
    %106 = arith.truncf %105 : vector<16x16xf32> to vector<16x16xbf16>
    %107 = arith.truncf %90 : vector<16x8xf32> to vector<16x8xbf16>
    %cst_33 = arith.constant dense<0.000000e+00> : vector<16x8xf32>
    %108 = tpu.matmul %106, %107, %cst_33 {dimension_numbers = #tpu.dot_dimension_numbers<[1], [0], [0], [1], [0, 0, 1, 1], [], []>} : vector<16x16xbf16>, vector<16x8xbf16>, vector<16x8xf32> -> vector<16x8xf32>
    %c24 = arith.constant 24 : index
    %c0_34 = arith.constant 0 : index
    %109 = vector.load %arg4[%c24, %c0_34] : memref<32x32xf32, #tpu.memory_space<vmem>>, vector<8x32xf32>
    %110 = arith.truncf %108 : vector<16x8xf32> to vector<16x8xbf16>
    %111 = arith.truncf %109 : vector<8x32xf32> to vector<8x32xbf16>
    %cst_35 = arith.constant dense<0.000000e+00> : vector<16x32xf32>
    %112 = tpu.matmul %110, %111, %cst_35 {dimension_numbers = #tpu.dot_dimension_numbers<[1], [0], [0], [1], [0, 0, 1, 1], [], []>} : vector<16x8xbf16>, vector<8x32xbf16>, vector<16x32xf32> -> vector<16x32xf32>
    %113 = arith.addf %87, %112 : vector<16x32xf32>
    %114 = arith.addf %1, %113 : vector<16x32xf32>
    %c0_36 = arith.constant 0 : index
    %c0_37 = arith.constant 0 : index
    %115 = vector.load %arg5[%c0_36, %c0_37] : memref<1x32xf32, #tpu.memory_space<vmem>>, vector<1x32xf32>
    %116 = vector.broadcast %115 : vector<1x32xf32> to vector<16x32xf32>
    %117 = arith.addf %114, %116 : vector<16x32xf32>
    %c0_38 = arith.constant 0 : index
    %c0_39 = arith.constant 0 : index
    %118 = vector.load %arg6[%c0_38, %c0_39] : memref<1x32xf32, #tpu.memory_space<vmem>>, vector<1x32xf32>
    %c0_40 = arith.constant 0 : index
    %c0_41 = arith.constant 0 : index
    %119 = vector.load %arg7[%c0_40, %c0_41] : memref<1x32xf32, #tpu.memory_space<vmem>>, vector<1x32xf32>
    %cst_42 = arith.constant dense<0.000000e+00> : vector<16xf32>
    %120 = vector.multi_reduction <add>, %117, %cst_42 [1] : vector<16x32xf32> to vector<16xf32>
    %121 = vector.shape_cast %120 : vector<16xf32> to vector<16x1xf32>
    %cst_43 = arith.constant 3.200000e+01 : f32
    %122 = vector.broadcast %cst_43 : f32 to vector<16x1xf32>
    %123 = arith.divf %121, %122 : vector<16x1xf32>
    %124 = vector.broadcast %123 : vector<16x1xf32> to vector<16x32xf32>
    %125 = arith.subf %117, %124 : vector<16x32xf32>
    %126 = arith.mulf %125, %125 : vector<16x32xf32>
    %cst_44 = arith.constant dense<0.000000e+00> : vector<16xf32>
    %127 = vector.multi_reduction <add>, %126, %cst_44 [1] : vector<16x32xf32> to vector<16xf32>
    %128 = vector.shape_cast %127 : vector<16xf32> to vector<16x1xf32>
    %cst_45 = arith.constant 3.200000e+01 : f32
    %129 = vector.broadcast %cst_45 : f32 to vector<16x1xf32>
    %130 = arith.divf %128, %129 : vector<16x1xf32>
    %131 = vector.broadcast %123 : vector<16x1xf32> to vector<16x32xf32>
    %132 = arith.subf %117, %131 : vector<16x32xf32>
    %cst_46 = arith.constant 9.99999974E-6 : f32
    %133 = vector.broadcast %cst_46 : f32 to vector<16x1xf32>
    %134 = arith.addf %130, %133 : vector<16x1xf32>
    %135 = math.rsqrt %134 : vector<16x1xf32>
    %136 = vector.broadcast %135 : vector<16x1xf32> to vector<16x32xf32>
    %137 = arith.mulf %132, %136 : vector<16x32xf32>
    %138 = vector.broadcast %118 : vector<1x32xf32> to vector<16x32xf32>
    %139 = arith.mulf %137, %138 : vector<16x32xf32>
    %140 = vector.broadcast %119 : vector<1x32xf32> to vector<16x32xf32>
    %141 = arith.addf %139, %140 : vector<16x32xf32>
    %c0_47 = arith.constant 0 : index
    %c0_48 = arith.constant 0 : index
    %c0_49 = arith.constant 0 : index
    %142 = vector.load %arg8[%c0_47, %c0_48, %c0_49] : memref<1x16x32xf32, #tpu.memory_space<vmem>>, vector<1x16x32xf32>
    %143 = vector.shape_cast %142 : vector<1x16x32xf32> to vector<16x32xf32>
    %144 = vector.shape_cast %141 : vector<16x32xf32> to vector<1x16x32xf32>
    tpu.vector_store %arg8[%c0_47, %c0_48, %c0_49], %144 {strides = array<i32>} : memref<1x16x32xf32, #tpu.memory_space<vmem>>, vector<1x16x32xf32>,
    return
  }
  func.func @transform_0(%arg0: i32) -> (i32, i32, i32) {
    %c0_i32 = arith.constant 0 : i32
    %c0_i32_0 = arith.constant 0 : i32
    %c0_i32_1 = arith.constant 0 : i32
    return %arg0, %c0_i32, %c0_i32_0 : i32, i32, i32
  }
  func.func @transform_1(%arg0: i32) -> (i32, i32) {
    %c0_i32 = arith.constant 0 : i32
    %c0_i32_0 = arith.constant 0 : i32
    %c0_i32_1 = arith.constant 0 : i32
    return %c0_i32, %c0_i32_0 : i32, i32
  }
  func.func @transform_2(%arg0: i32) -> (i32, i32) {
    %c0_i32 = arith.constant 0 : i32
    %c0_i32_0 = arith.constant 0 : i32
    %c0_i32_1 = arith.constant 0 : i32
    return %c0_i32, %c0_i32_0 : i32, i32
  }
  func.func @transform_3(%arg0: i32) -> (i32, i32) {
    %c0_i32 = arith.constant 0 : i32
    %c0_i32_0 = arith.constant 0 : i32
    %c0_i32_1 = arith.constant 0 : i32
    return %c0_i32, %c0_i32_0 : i32, i32
  }
  func.func @transform_4(%arg0: i32) -> (i32, i32) {
    %c0_i32 = arith.constant 0 : i32
    %c0_i32_0 = arith.constant 0 : i32
    %c0_i32_1 = arith.constant 0 : i32
    return %c0_i32, %c0_i32_0 : i32, i32
  }
  func.func @transform_5(%arg0: i32) -> (i32, i32) {
    %c0_i32 = arith.constant 0 : i32
    %c0_i32_0 = arith.constant 0 : i32
    %c0_i32_1 = arith.constant 0 : i32
    return %c0_i32, %c0_i32_0 : i32, i32
  }
  func.func @transform_6(%arg0: i32) -> (i32, i32) {
    %c0_i32 = arith.constant 0 : i32
    %c0_i32_0 = arith.constant 0 : i32
    %c0_i32_1 = arith.constant 0 : i32
    return %c0_i32, %c0_i32_0 : i32, i32
  }
  func.func @transform_7(%arg0: i32) -> (i32, i32, i32) {
    %c0_i32 = arith.constant 0 : i32
    %c0_i32_0 = arith.constant 0 : i32
    %c0_i32_1 = arith.constant 0 : i32
    return %arg0, %c0_i32, %c0_i32_0 : i32, i32, i32
  }
}

module attributes {stable_mosaic.version = 11 : i64} {
  func.func @_ffn_ln_kernel(%arg0: i32, %arg1: memref<32x32xf32, #tpu.memory_space<vmem>>, %arg2: memref<32x1024xf32, #tpu.memory_space<vmem>>, %arg3: memref<1x1024xf32, #tpu.memory_space<vmem>>, %arg4: memref<1024x32xf32, #tpu.memory_space<vmem>>, %arg5: memref<1x32xf32, #tpu.memory_space<vmem>>, %arg6: memref<1x32xf32, #tpu.memory_space<vmem>>, %arg7: memref<1x32xf32, #tpu.memory_space<vmem>>, %arg8: memref<32x32xf32, #tpu.memory_space<vmem>>) attributes {dimension_semantics = [#tpu.dimension_semantics<parallel>], iteration_bounds = array<i64: 1>, scalar_prefetch = 0 : i64, scratch_operands = 0 : i64, tpu.core_type = #tpu.core_type<tc>, window_params = [{transform_indices = @transform_0, window_bounds = array<i64: 32, 32>}, {pipeline_mode = #tpu.pipeline_mode<synchronous>, transform_indices = @transform_1, window_bounds = array<i64: 32, 1024>}, {pipeline_mode = #tpu.pipeline_mode<synchronous>, transform_indices = @transform_2, window_bounds = array<i64: 1, 1024>}, {pipeline_mode = #tpu.pipeline_mode<synchronous>, transform_indices = @transform_3, window_bounds = array<i64: 1024, 32>}, {pipeline_mode = #tpu.pipeline_mode<synchronous>, transform_indices = @transform_4, window_bounds = array<i64: 1, 32>}, {pipeline_mode = #tpu.pipeline_mode<synchronous>, transform_indices = @transform_5, window_bounds = array<i64: 1, 32>}, {pipeline_mode = #tpu.pipeline_mode<synchronous>, transform_indices = @transform_6, window_bounds = array<i64: 1, 32>}, {transform_indices = @transform_7, window_bounds = array<i64: 32, 32>}]} {
    %c0 = arith.constant 0 : index
    %c0_0 = arith.constant 0 : index
    %0 = vector.load %arg1[%c0, %c0_0] : memref<32x32xf32, #tpu.memory_space<vmem>>, vector<32x32xf32>
    %c0_1 = arith.constant 0 : index
    %c0_2 = arith.constant 0 : index
    %1 = vector.load %arg2[%c0_1, %c0_2] : memref<32x1024xf32, #tpu.memory_space<vmem>>, vector<32x1024xf32>
    %2 = arith.truncf %0 : vector<32x32xf32> to vector<32x32xbf16>
    %3 = arith.truncf %1 : vector<32x1024xf32> to vector<32x1024xbf16>
    %cst = arith.constant dense<0.000000e+00> : vector<32x1024xf32>
    %4 = tpu.matmul %2, %3, %cst {dimension_numbers = #tpu.dot_dimension_numbers<[1], [0], [0], [1], [0, 0, 1, 1], [], []>} : vector<32x32xbf16>, vector<32x1024xbf16>, vector<32x1024xf32> -> vector<32x1024xf32>
    %c0_3 = arith.constant 0 : index
    %c0_4 = arith.constant 0 : index
    %5 = vector.load %arg3[%c0_3, %c0_4] : memref<1x1024xf32, #tpu.memory_space<vmem>>, vector<1x1024xf32>
    %6 = vector.broadcast %5 : vector<1x1024xf32> to vector<32x1024xf32>
    %7 = arith.addf %4, %6 : vector<32x1024xf32>
    %cst_5 = arith.constant 0.000000e+00 : f32
    %8 = vector.broadcast %cst_5 : f32 to vector<32x1024xf32>
    %9 = arith.maximumf %7, %8 : vector<32x1024xf32>
    %c0_6 = arith.constant 0 : index
    %c0_7 = arith.constant 0 : index
    %10 = vector.load %arg4[%c0_6, %c0_7] : memref<1024x32xf32, #tpu.memory_space<vmem>>, vector<1024x32xf32>
    %11 = arith.truncf %9 : vector<32x1024xf32> to vector<32x1024xbf16>
    %12 = arith.truncf %10 : vector<1024x32xf32> to vector<1024x32xbf16>
    %cst_8 = arith.constant dense<0.000000e+00> : vector<32x32xf32>
    %13 = tpu.matmul %11, %12, %cst_8 {dimension_numbers = #tpu.dot_dimension_numbers<[1], [0], [0], [1], [0, 0, 1, 1], [], []>} : vector<32x1024xbf16>, vector<1024x32xbf16>, vector<32x32xf32> -> vector<32x32xf32>
    %c0_9 = arith.constant 0 : index
    %c0_10 = arith.constant 0 : index
    %14 = vector.load %arg5[%c0_9, %c0_10] : memref<1x32xf32, #tpu.memory_space<vmem>>, vector<1x32xf32>
    %15 = vector.broadcast %14 : vector<1x32xf32> to vector<32x32xf32>
    %16 = arith.addf %13, %15 : vector<32x32xf32>
    %17 = arith.addf %0, %16 : vector<32x32xf32>
    %c0_11 = arith.constant 0 : index
    %c0_12 = arith.constant 0 : index
    %18 = vector.load %arg6[%c0_11, %c0_12] : memref<1x32xf32, #tpu.memory_space<vmem>>, vector<1x32xf32>
    %c0_13 = arith.constant 0 : index
    %c0_14 = arith.constant 0 : index
    %19 = vector.load %arg7[%c0_13, %c0_14] : memref<1x32xf32, #tpu.memory_space<vmem>>, vector<1x32xf32>
    %cst_15 = arith.constant dense<0.000000e+00> : vector<32xf32>
    %20 = vector.multi_reduction <add>, %17, %cst_15 [1] : vector<32x32xf32> to vector<32xf32>
    %21 = vector.shape_cast %20 : vector<32xf32> to vector<32x1xf32>
    %cst_16 = arith.constant 3.200000e+01 : f32
    %22 = vector.broadcast %cst_16 : f32 to vector<32x1xf32>
    %23 = arith.divf %21, %22 : vector<32x1xf32>
    %24 = vector.broadcast %23 : vector<32x1xf32> to vector<32x32xf32>
    %25 = arith.subf %17, %24 : vector<32x32xf32>
    %26 = arith.mulf %25, %25 : vector<32x32xf32>
    %cst_17 = arith.constant dense<0.000000e+00> : vector<32xf32>
    %27 = vector.multi_reduction <add>, %26, %cst_17 [1] : vector<32x32xf32> to vector<32xf32>
    %28 = vector.shape_cast %27 : vector<32xf32> to vector<32x1xf32>
    %cst_18 = arith.constant 3.200000e+01 : f32
    %29 = vector.broadcast %cst_18 : f32 to vector<32x1xf32>
    %30 = arith.divf %28, %29 : vector<32x1xf32>
    %31 = vector.broadcast %23 : vector<32x1xf32> to vector<32x32xf32>
    %32 = arith.subf %17, %31 : vector<32x32xf32>
    %cst_19 = arith.constant 9.99999974E-6 : f32
    %33 = vector.broadcast %cst_19 : f32 to vector<32x1xf32>
    %34 = arith.addf %30, %33 : vector<32x1xf32>
    %35 = math.rsqrt %34 : vector<32x1xf32>
    %36 = vector.broadcast %35 : vector<32x1xf32> to vector<32x32xf32>
    %37 = arith.mulf %32, %36 : vector<32x32xf32>
    %38 = vector.broadcast %18 : vector<1x32xf32> to vector<32x32xf32>
    %39 = arith.mulf %37, %38 : vector<32x32xf32>
    %40 = vector.broadcast %19 : vector<1x32xf32> to vector<32x32xf32>
    %41 = arith.addf %39, %40 : vector<32x32xf32>
    %c0_20 = arith.constant 0 : index
    %c0_21 = arith.constant 0 : index
    %42 = vector.load %arg8[%c0_20, %c0_21] : memref<32x32xf32, #tpu.memory_space<vmem>>, vector<32x32xf32>
    tpu.vector_store %arg8[%c0_20, %c0_21], %41 {strides = array<i32>} : memref<32x32xf32, #tpu.memory_space<vmem>>, vector<32x32xf32>,
    return
  }
  func.func @transform_0(%arg0: i32) -> (i32, i32) {
    %c0_i32 = arith.constant 0 : i32
    %c0_i32_0 = arith.constant 0 : i32
    return %arg0, %c0_i32 : i32, i32
  }
  func.func @transform_1(%arg0: i32) -> (i32, i32) {
    %c0_i32 = arith.constant 0 : i32
    %c0_i32_0 = arith.constant 0 : i32
    %c0_i32_1 = arith.constant 0 : i32
    return %c0_i32, %c0_i32_0 : i32, i32
  }
  func.func @transform_2(%arg0: i32) -> (i32, i32) {
    %c0_i32 = arith.constant 0 : i32
    %c0_i32_0 = arith.constant 0 : i32
    %c0_i32_1 = arith.constant 0 : i32
    return %c0_i32, %c0_i32_0 : i32, i32
  }
  func.func @transform_3(%arg0: i32) -> (i32, i32) {
    %c0_i32 = arith.constant 0 : i32
    %c0_i32_0 = arith.constant 0 : i32
    %c0_i32_1 = arith.constant 0 : i32
    return %c0_i32, %c0_i32_0 : i32, i32
  }
  func.func @transform_4(%arg0: i32) -> (i32, i32) {
    %c0_i32 = arith.constant 0 : i32
    %c0_i32_0 = arith.constant 0 : i32
    %c0_i32_1 = arith.constant 0 : i32
    return %c0_i32, %c0_i32_0 : i32, i32
  }
  func.func @transform_5(%arg0: i32) -> (i32, i32) {
    %c0_i32 = arith.constant 0 : i32
    %c0_i32_0 = arith.constant 0 : i32
    %c0_i32_1 = arith.constant 0 : i32
    return %c0_i32, %c0_i32_0 : i32, i32
  }
  func.func @transform_6(%arg0: i32) -> (i32, i32) {
    %c0_i32 = arith.constant 0 : i32
    %c0_i32_0 = arith.constant 0 : i32
    %c0_i32_1 = arith.constant 0 : i32
    return %c0_i32, %c0_i32_0 : i32, i32
  }
  func.func @transform_7(%arg0: i32) -> (i32, i32) {
    %c0_i32 = arith.constant 0 : i32
    %c0_i32_0 = arith.constant 0 : i32
    return %arg0, %c0_i32 : i32, i32
  }
}

module attributes {stable_mosaic.version = 11 : i64} {
  func.func @_conv3_dot_kernel(%arg0: i32, %arg1: memref<1x4x326xf32, #tpu.memory_space<vmem>>, %arg2: memref<9x32x4xf32, #tpu.memory_space<vmem>>, %arg3: memref<32x1xf32, #tpu.memory_space<vmem>>, %arg4: memref<1x8x32xf32, #tpu.memory_space<vmem>>, %arg5: memref<1x8x288xf32, #tpu.memory_space<vmem>>) attributes {dimension_semantics = [#tpu.dimension_semantics<parallel>], iteration_bounds = array<i64: 2>, scalar_prefetch = 0 : i64, scratch_operands = 0 : i64, tpu.core_type = #tpu.core_type<tc>, window_params = [{transform_indices = @transform_0, window_bounds = array<i64: 1, 4, 326>}, {pipeline_mode = #tpu.pipeline_mode<synchronous>, transform_indices = @transform_1, window_bounds = array<i64: 9, 32, 4>}, {pipeline_mode = #tpu.pipeline_mode<synchronous>, transform_indices = @transform_2, window_bounds = array<i64: 32, 1>}, {transform_indices = @transform_3, window_bounds = array<i64: 1, 8, 32>}, {transform_indices = @transform_4, window_bounds = array<i64: 1, 8, 288>}]} {
    %c0 = arith.constant 0 : index
    %c0_0 = arith.constant 0 : index
    %c0_1 = arith.constant 0 : index
    %0 = vector.load %arg1[%c0, %c0_0, %c0_1] : memref<1x4x326xf32, #tpu.memory_space<vmem>>, vector<1x4x288xf32>
    %1 = vector.shape_cast %0 : vector<1x4x288xf32> to vector<4x288xf32>
    %c0_2 = arith.constant 0 : index
    %c0_3 = arith.constant 0 : index
    %c0_4 = arith.constant 0 : index
    %2 = vector.load %arg2[%c0_2, %c0_3, %c0_4] : memref<9x32x4xf32, #tpu.memory_space<vmem>>, vector<1x32x4xf32>
    %3 = vector.shape_cast %2 : vector<1x32x4xf32> to vector<32x4xf32>
    %4 = arith.truncf %3 : vector<32x4xf32> to vector<32x4xbf16>
    %5 = arith.truncf %1 : vector<4x288xf32> to vector<4x288xbf16>
    %cst = arith.constant dense<0.000000e+00> : vector<32x288xf32>
    %6 = tpu.matmul %4, %5, %cst {dimension_numbers = #tpu.dot_dimension_numbers<[1], [0], [0], [1], [0, 0, 1, 1], [], []>} : vector<32x4xbf16>, vector<4x288xbf16>, vector<32x288xf32> -> vector<32x288xf32>
    %c0_5 = arith.constant 0 : index
    %c0_6 = arith.constant 0 : index
    %c1 = arith.constant 1 : index
    %7 = vector.load %arg1[%c0_5, %c0_6, %c1] : memref<1x4x326xf32, #tpu.memory_space<vmem>>, vector<1x4x288xf32>
    %8 = vector.shape_cast %7 : vector<1x4x288xf32> to vector<4x288xf32>
    %c1_7 = arith.constant 1 : index
    %c0_8 = arith.constant 0 : index
    %c0_9 = arith.constant 0 : index
    %9 = vector.load %arg2[%c1_7, %c0_8, %c0_9] : memref<9x32x4xf32, #tpu.memory_space<vmem>>, vector<1x32x4xf32>
    %10 = vector.shape_cast %9 : vector<1x32x4xf32> to vector<32x4xf32>
    %11 = arith.truncf %10 : vector<32x4xf32> to vector<32x4xbf16>
    %12 = arith.truncf %8 : vector<4x288xf32> to vector<4x288xbf16>
    %cst_10 = arith.constant dense<0.000000e+00> : vector<32x288xf32>
    %13 = tpu.matmul %11, %12, %cst_10 {dimension_numbers = #tpu.dot_dimension_numbers<[1], [0], [0], [1], [0, 0, 1, 1], [], []>} : vector<32x4xbf16>, vector<4x288xbf16>, vector<32x288xf32> -> vector<32x288xf32>
    %14 = arith.addf %6, %13 : vector<32x288xf32>
    %c0_11 = arith.constant 0 : index
    %c0_12 = arith.constant 0 : index
    %c2 = arith.constant 2 : index
    %15 = vector.load %arg1[%c0_11, %c0_12, %c2] : memref<1x4x326xf32, #tpu.memory_space<vmem>>, vector<1x4x288xf32>
    %16 = vector.shape_cast %15 : vector<1x4x288xf32> to vector<4x288xf32>
    %c2_13 = arith.constant 2 : index
    %c0_14 = arith.constant 0 : index
    %c0_15 = arith.constant 0 : index
    %17 = vector.load %arg2[%c2_13, %c0_14, %c0_15] : memref<9x32x4xf32, #tpu.memory_space<vmem>>, vector<1x32x4xf32>
    %18 = vector.shape_cast %17 : vector<1x32x4xf32> to vector<32x4xf32>
    %19 = arith.truncf %18 : vector<32x4xf32> to vector<32x4xbf16>
    %20 = arith.truncf %16 : vector<4x288xf32> to vector<4x288xbf16>
    %cst_16 = arith.constant dense<0.000000e+00> : vector<32x288xf32>
    %21 = tpu.matmul %19, %20, %cst_16 {dimension_numbers = #tpu.dot_dimension_numbers<[1], [0], [0], [1], [0, 0, 1, 1], [], []>} : vector<32x4xbf16>, vector<4x288xbf16>, vector<32x288xf32> -> vector<32x288xf32>
    %22 = arith.addf %14, %21 : vector<32x288xf32>
    %c0_17 = arith.constant 0 : index
    %c0_18 = arith.constant 0 : index
    %c18 = arith.constant 18 : index
    %23 = vector.load %arg1[%c0_17, %c0_18, %c18] : memref<1x4x326xf32, #tpu.memory_space<vmem>>, vector<1x4x288xf32>
    %24 = vector.shape_cast %23 : vector<1x4x288xf32> to vector<4x288xf32>
    %c3 = arith.constant 3 : index
    %c0_19 = arith.constant 0 : index
    %c0_20 = arith.constant 0 : index
    %25 = vector.load %arg2[%c3, %c0_19, %c0_20] : memref<9x32x4xf32, #tpu.memory_space<vmem>>, vector<1x32x4xf32>
    %26 = vector.shape_cast %25 : vector<1x32x4xf32> to vector<32x4xf32>
    %27 = arith.truncf %26 : vector<32x4xf32> to vector<32x4xbf16>
    %28 = arith.truncf %24 : vector<4x288xf32> to vector<4x288xbf16>
    %cst_21 = arith.constant dense<0.000000e+00> : vector<32x288xf32>
    %29 = tpu.matmul %27, %28, %cst_21 {dimension_numbers = #tpu.dot_dimension_numbers<[1], [0], [0], [1], [0, 0, 1, 1], [], []>} : vector<32x4xbf16>, vector<4x288xbf16>, vector<32x288xf32> -> vector<32x288xf32>
    %30 = arith.addf %22, %29 : vector<32x288xf32>
    %c0_22 = arith.constant 0 : index
    %c0_23 = arith.constant 0 : index
    %c19 = arith.constant 19 : index
    %31 = vector.load %arg1[%c0_22, %c0_23, %c19] : memref<1x4x326xf32, #tpu.memory_space<vmem>>, vector<1x4x288xf32>
    %32 = vector.shape_cast %31 : vector<1x4x288xf32> to vector<4x288xf32>
    %c4 = arith.constant 4 : index
    %c0_24 = arith.constant 0 : index
    %c0_25 = arith.constant 0 : index
    %33 = vector.load %arg2[%c4, %c0_24, %c0_25] : memref<9x32x4xf32, #tpu.memory_space<vmem>>, vector<1x32x4xf32>
    %34 = vector.shape_cast %33 : vector<1x32x4xf32> to vector<32x4xf32>
    %35 = arith.truncf %34 : vector<32x4xf32> to vector<32x4xbf16>
    %36 = arith.truncf %32 : vector<4x288xf32> to vector<4x288xbf16>
    %cst_26 = arith.constant dense<0.000000e+00> : vector<32x288xf32>
    %37 = tpu.matmul %35, %36, %cst_26 {dimension_numbers = #tpu.dot_dimension_numbers<[1], [0], [0], [1], [0, 0, 1, 1], [], []>} : vector<32x4xbf16>, vector<4x288xbf16>, vector<32x288xf32> -> vector<32x288xf32>
    %38 = arith.addf %30, %37 : vector<32x288xf32>
    %c0_27 = arith.constant 0 : index
    %c0_28 = arith.constant 0 : index
    %c20 = arith.constant 20 : index
    %39 = vector.load %arg1[%c0_27, %c0_28, %c20] : memref<1x4x326xf32, #tpu.memory_space<vmem>>, vector<1x4x288xf32>
    %40 = vector.shape_cast %39 : vector<1x4x288xf32> to vector<4x288xf32>
    %c5 = arith.constant 5 : index
    %c0_29 = arith.constant 0 : index
    %c0_30 = arith.constant 0 : index
    %41 = vector.load %arg2[%c5, %c0_29, %c0_30] : memref<9x32x4xf32, #tpu.memory_space<vmem>>, vector<1x32x4xf32>
    %42 = vector.shape_cast %41 : vector<1x32x4xf32> to vector<32x4xf32>
    %43 = arith.truncf %42 : vector<32x4xf32> to vector<32x4xbf16>
    %44 = arith.truncf %40 : vector<4x288xf32> to vector<4x288xbf16>
    %cst_31 = arith.constant dense<0.000000e+00> : vector<32x288xf32>
    %45 = tpu.matmul %43, %44, %cst_31 {dimension_numbers = #tpu.dot_dimension_numbers<[1], [0], [0], [1], [0, 0, 1, 1], [], []>} : vector<32x4xbf16>, vector<4x288xbf16>, vector<32x288xf32> -> vector<32x288xf32>
    %46 = arith.addf %38, %45 : vector<32x288xf32>
    %c0_32 = arith.constant 0 : index
    %c0_33 = arith.constant 0 : index
    %c36 = arith.constant 36 : index
    %47 = vector.load %arg1[%c0_32, %c0_33, %c36] : memref<1x4x326xf32, #tpu.memory_space<vmem>>, vector<1x4x288xf32>
    %48 = vector.shape_cast %47 : vector<1x4x288xf32> to vector<4x288xf32>
    %c6 = arith.constant 6 : index
    %c0_34 = arith.constant 0 : index
    %c0_35 = arith.constant 0 : index
    %49 = vector.load %arg2[%c6, %c0_34, %c0_35] : memref<9x32x4xf32, #tpu.memory_space<vmem>>, vector<1x32x4xf32>
    %50 = vector.shape_cast %49 : vector<1x32x4xf32> to vector<32x4xf32>
    %51 = arith.truncf %50 : vector<32x4xf32> to vector<32x4xbf16>
    %52 = arith.truncf %48 : vector<4x288xf32> to vector<4x288xbf16>
    %cst_36 = arith.constant dense<0.000000e+00> : vector<32x288xf32>
    %53 = tpu.matmul %51, %52, %cst_36 {dimension_numbers = #tpu.dot_dimension_numbers<[1], [0], [0], [1], [0, 0, 1, 1], [], []>} : vector<32x4xbf16>, vector<4x288xbf16>, vector<32x288xf32> -> vector<32x288xf32>
    %54 = arith.addf %46, %53 : vector<32x288xf32>
    %c0_37 = arith.constant 0 : index
    %c0_38 = arith.constant 0 : index
    %c37 = arith.constant 37 : index
    %55 = vector.load %arg1[%c0_37, %c0_38, %c37] : memref<1x4x326xf32, #tpu.memory_space<vmem>>, vector<1x4x288xf32>
    %56 = vector.shape_cast %55 : vector<1x4x288xf32> to vector<4x288xf32>
    %c7 = arith.constant 7 : index
    %c0_39 = arith.constant 0 : index
    %c0_40 = arith.constant 0 : index
    %57 = vector.load %arg2[%c7, %c0_39, %c0_40] : memref<9x32x4xf32, #tpu.memory_space<vmem>>, vector<1x32x4xf32>
    %58 = vector.shape_cast %57 : vector<1x32x4xf32> to vector<32x4xf32>
    %59 = arith.truncf %58 : vector<32x4xf32> to vector<32x4xbf16>
    %60 = arith.truncf %56 : vector<4x288xf32> to vector<4x288xbf16>
    %cst_41 = arith.constant dense<0.000000e+00> : vector<32x288xf32>
    %61 = tpu.matmul %59, %60, %cst_41 {dimension_numbers = #tpu.dot_dimension_numbers<[1], [0], [0], [1], [0, 0, 1, 1], [], []>} : vector<32x4xbf16>, vector<4x288xbf16>, vector<32x288xf32> -> vector<32x288xf32>
    %62 = arith.addf %54, %61 : vector<32x288xf32>
    %c0_42 = arith.constant 0 : index
    %c0_43 = arith.constant 0 : index
    %c38 = arith.constant 38 : index
    %63 = vector.load %arg1[%c0_42, %c0_43, %c38] : memref<1x4x326xf32, #tpu.memory_space<vmem>>, vector<1x4x288xf32>
    %64 = vector.shape_cast %63 : vector<1x4x288xf32> to vector<4x288xf32>
    %c8 = arith.constant 8 : index
    %c0_44 = arith.constant 0 : index
    %c0_45 = arith.constant 0 : index
    %65 = vector.load %arg2[%c8, %c0_44, %c0_45] : memref<9x32x4xf32, #tpu.memory_space<vmem>>, vector<1x32x4xf32>
    %66 = vector.shape_cast %65 : vector<1x32x4xf32> to vector<32x4xf32>
    %67 = arith.truncf %66 : vector<32x4xf32> to vector<32x4xbf16>
    %68 = arith.truncf %64 : vector<4x288xf32> to vector<4x288xbf16>
    %cst_46 = arith.constant dense<0.000000e+00> : vector<32x288xf32>
    %69 = tpu.matmul %67, %68, %cst_46 {dimension_numbers = #tpu.dot_dimension_numbers<[1], [0], [0], [1], [0, 0, 1, 1], [], []>} : vector<32x4xbf16>, vector<4x288xbf16>, vector<32x288xf32> -> vector<32x288xf32>
    %70 = arith.addf %62, %69 : vector<32x288xf32>
    %c0_47 = arith.constant 0 : index
    %c0_48 = arith.constant 0 : index
    %71 = vector.load %arg3[%c0_47, %c0_48] : memref<32x1xf32, #tpu.memory_space<vmem>>, vector<32x1xf32>
    %72 = vector.broadcast %71 : vector<32x1xf32> to vector<32x288xf32>
    %73 = arith.addf %70, %72 : vector<32x288xf32>
    %c0_49 = arith.constant 0 : index
    %c0_50 = arith.constant 0 : index
    %c0_51 = arith.constant 0 : index
    %74 = vector.load %arg4[%c0_49, %c0_50, %c0_51] : memref<1x8x32xf32, #tpu.memory_space<vmem>>, vector<1x8x32xf32>
    %75 = vector.shape_cast %74 : vector<1x8x32xf32> to vector<8x32xf32>
    %76 = arith.truncf %75 : vector<8x32xf32> to vector<8x32xbf16>
    %77 = arith.truncf %73 : vector<32x288xf32> to vector<32x288xbf16>
    %cst_52 = arith.constant dense<0.000000e+00> : vector<8x288xf32>
    %78 = tpu.matmul %76, %77, %cst_52 {dimension_numbers = #tpu.dot_dimension_numbers<[1], [0], [0], [1], [0, 0, 1, 1], [], []>} : vector<8x32xbf16>, vector<32x288xbf16>, vector<8x288xf32> -> vector<8x288xf32>
    %c0_53 = arith.constant 0 : index
    %c0_54 = arith.constant 0 : index
    %c0_55 = arith.constant 0 : index
    %79 = vector.load %arg5[%c0_53, %c0_54, %c0_55] : memref<1x8x288xf32, #tpu.memory_space<vmem>>, vector<1x8x288xf32>
    %80 = vector.shape_cast %79 : vector<1x8x288xf32> to vector<8x288xf32>
    %81 = vector.shape_cast %78 : vector<8x288xf32> to vector<1x8x288xf32>
    tpu.vector_store %arg5[%c0_53, %c0_54, %c0_55], %81 {strides = array<i32>} : memref<1x8x288xf32, #tpu.memory_space<vmem>>, vector<1x8x288xf32>,
    return
  }
  func.func @transform_0(%arg0: i32) -> (i32, i32, i32) {
    %c0_i32 = arith.constant 0 : i32
    %c0_i32_0 = arith.constant 0 : i32
    %c0_i32_1 = arith.constant 0 : i32
    return %arg0, %c0_i32, %c0_i32_0 : i32, i32, i32
  }
  func.func @transform_1(%arg0: i32) -> (i32, i32, i32) {
    %c0_i32 = arith.constant 0 : i32
    %c0_i32_0 = arith.constant 0 : i32
    %c0_i32_1 = arith.constant 0 : i32
    %c0_i32_2 = arith.constant 0 : i32
    return %c0_i32, %c0_i32_0, %c0_i32_1 : i32, i32, i32
  }
  func.func @transform_2(%arg0: i32) -> (i32, i32) {
    %c0_i32 = arith.constant 0 : i32
    %c0_i32_0 = arith.constant 0 : i32
    %c0_i32_1 = arith.constant 0 : i32
    return %c0_i32, %c0_i32_0 : i32, i32
  }
  func.func @transform_3(%arg0: i32) -> (i32, i32, i32) {
    %c0_i32 = arith.constant 0 : i32
    %c0_i32_0 = arith.constant 0 : i32
    %c0_i32_1 = arith.constant 0 : i32
    return %arg0, %c0_i32, %c0_i32_0 : i32, i32, i32
  }
  func.func @transform_4(%arg0: i32) -> (i32, i32, i32) {
    %c0_i32 = arith.constant 0 : i32
    %c0_i32_0 = arith.constant 0 : i32
    %c0_i32_1 = arith.constant 0 : i32
    return %arg0, %c0_i32, %c0_i32_0 : i32, i32, i32
  }
}

module attributes {stable_mosaic.version = 11 : i64} {
  func.func @_regressor_kernel(%arg0: i32, %arg1: memref<2x32xf32, #tpu.memory_space<vmem>>, %arg2: memref<32x256xf32, #tpu.memory_space<vmem>>, %arg3: memref<1x256xf32, #tpu.memory_space<vmem>>, %arg4: memref<256x256xf32, #tpu.memory_space<vmem>>, %arg5: memref<1x256xf32, #tpu.memory_space<vmem>>, %arg6: memref<256x16xf32, #tpu.memory_space<vmem>>, %arg7: memref<1x16xf32, #tpu.memory_space<vmem>>, %arg8: memref<2x16xf32, #tpu.memory_space<vmem>>) attributes {dimension_semantics = [#tpu.dimension_semantics<arbitrary>], iteration_bounds = array<i64: 1>, scalar_prefetch = 0 : i64, scratch_operands = 0 : i64, tpu.core_type = #tpu.core_type<tc>, window_params = [{pipeline_mode = #tpu.pipeline_mode<synchronous>, transform_indices = @transform_0, window_bounds = array<i64: 2, 32>}, {pipeline_mode = #tpu.pipeline_mode<synchronous>, transform_indices = @transform_1, window_bounds = array<i64: 32, 256>}, {pipeline_mode = #tpu.pipeline_mode<synchronous>, transform_indices = @transform_2, window_bounds = array<i64: 1, 256>}, {pipeline_mode = #tpu.pipeline_mode<synchronous>, transform_indices = @transform_3, window_bounds = array<i64: 256, 256>}, {pipeline_mode = #tpu.pipeline_mode<synchronous>, transform_indices = @transform_4, window_bounds = array<i64: 1, 256>}, {pipeline_mode = #tpu.pipeline_mode<synchronous>, transform_indices = @transform_5, window_bounds = array<i64: 256, 16>}, {pipeline_mode = #tpu.pipeline_mode<synchronous>, transform_indices = @transform_6, window_bounds = array<i64: 1, 16>}, {pipeline_mode = #tpu.pipeline_mode<synchronous>, transform_indices = @transform_7, window_bounds = array<i64: 2, 16>}]} {
    %c0 = arith.constant 0 : index
    %c0_0 = arith.constant 0 : index
    %0 = vector.load %arg1[%c0, %c0_0] : memref<2x32xf32, #tpu.memory_space<vmem>>, vector<2x32xf32>
    %c0_1 = arith.constant 0 : index
    %c0_2 = arith.constant 0 : index
    %1 = vector.load %arg2[%c0_1, %c0_2] : memref<32x256xf32, #tpu.memory_space<vmem>>, vector<32x256xf32>
    %cst = arith.constant dense<0.000000e+00> : vector<2x256xf32>
    %2 = tpu.matmul %0, %1, %cst {dimension_numbers = #tpu.dot_dimension_numbers<[1], [0], [0], [1], [0, 0, 1, 1], [], []>} : vector<2x32xf32>, vector<32x256xf32>, vector<2x256xf32> -> vector<2x256xf32>
    %c0_3 = arith.constant 0 : index
    %c0_4 = arith.constant 0 : index
    %3 = vector.load %arg3[%c0_3, %c0_4] : memref<1x256xf32, #tpu.memory_space<vmem>>, vector<1x256xf32>
    %4 = vector.broadcast %3 : vector<1x256xf32> to vector<2x256xf32>
    %5 = arith.addf %2, %4 : vector<2x256xf32>
    %cst_5 = arith.constant 0.000000e+00 : f32
    %6 = vector.broadcast %cst_5 : f32 to vector<2x256xf32>
    %7 = arith.cmpf oge, %5, %6 : vector<2x256xf32>
    %cst_6 = arith.constant 0.00999999977 : f32
    %8 = vector.broadcast %cst_6 : f32 to vector<2x256xf32>
    %9 = arith.mulf %8, %5 : vector<2x256xf32>
    %10 = arith.select %7, %5, %9 : vector<2x256xi1>, vector<2x256xf32>
    %c0_7 = arith.constant 0 : index
    %c0_8 = arith.constant 0 : index
    %11 = vector.load %arg4[%c0_7, %c0_8] : memref<256x256xf32, #tpu.memory_space<vmem>>, vector<256x256xf32>
    %cst_9 = arith.constant dense<0.000000e+00> : vector<2x256xf32>
    %12 = tpu.matmul %10, %11, %cst_9 {dimension_numbers = #tpu.dot_dimension_numbers<[1], [0], [0], [1], [0, 0, 1, 1], [], []>} : vector<2x256xf32>, vector<256x256xf32>, vector<2x256xf32> -> vector<2x256xf32>
    %c0_10 = arith.constant 0 : index
    %c0_11 = arith.constant 0 : index
    %13 = vector.load %arg5[%c0_10, %c0_11] : memref<1x256xf32, #tpu.memory_space<vmem>>, vector<1x256xf32>
    %14 = vector.broadcast %13 : vector<1x256xf32> to vector<2x256xf32>
    %15 = arith.addf %12, %14 : vector<2x256xf32>
    %cst_12 = arith.constant 0.000000e+00 : f32
    %16 = vector.broadcast %cst_12 : f32 to vector<2x256xf32>
    %17 = arith.cmpf oge, %15, %16 : vector<2x256xf32>
    %cst_13 = arith.constant 0.00999999977 : f32
    %18 = vector.broadcast %cst_13 : f32 to vector<2x256xf32>
    %19 = arith.mulf %18, %15 : vector<2x256xf32>
    %20 = arith.select %17, %15, %19 : vector<2x256xi1>, vector<2x256xf32>
    %c0_14 = arith.constant 0 : index
    %c0_15 = arith.constant 0 : index
    %21 = vector.load %arg6[%c0_14, %c0_15] : memref<256x16xf32, #tpu.memory_space<vmem>>, vector<256x16xf32>
    %cst_16 = arith.constant dense<0.000000e+00> : vector<2x16xf32>
    %22 = tpu.matmul %20, %21, %cst_16 {dimension_numbers = #tpu.dot_dimension_numbers<[1], [0], [0], [1], [0, 0, 1, 1], [], []>} : vector<2x256xf32>, vector<256x16xf32>, vector<2x16xf32> -> vector<2x16xf32>
    %c0_17 = arith.constant 0 : index
    %c0_18 = arith.constant 0 : index
    %23 = vector.load %arg7[%c0_17, %c0_18] : memref<1x16xf32, #tpu.memory_space<vmem>>, vector<1x16xf32>
    %24 = vector.broadcast %23 : vector<1x16xf32> to vector<2x16xf32>
    %25 = arith.addf %22, %24 : vector<2x16xf32>
    %cst_19 = arith.constant dense<0xFF800000> : vector<2xf32>
    %26 = vector.multi_reduction <maximumf>, %25, %cst_19 [1] : vector<2x16xf32> to vector<2xf32>
    %27 = vector.shape_cast %26 : vector<2xf32> to vector<2x1xf32>
    %28 = vector.broadcast %27 : vector<2x1xf32> to vector<2x16xf32>
    %29 = arith.subf %25, %28 : vector<2x16xf32>
    %30 = math.exp %29 : vector<2x16xf32>
    %cst_20 = arith.constant dense<0.000000e+00> : vector<2xf32>
    %31 = vector.multi_reduction <add>, %30, %cst_20 [1] : vector<2x16xf32> to vector<2xf32>
    %32 = vector.shape_cast %31 : vector<2xf32> to vector<2x1xf32>
    %33 = vector.broadcast %32 : vector<2x1xf32> to vector<2x16xf32>
    %34 = arith.divf %30, %33 : vector<2x16xf32>
    %c0_21 = arith.constant 0 : index
    %c0_22 = arith.constant 0 : index
    %35 = vector.load %arg8[%c0_21, %c0_22] : memref<2x16xf32, #tpu.memory_space<vmem>>, vector<2x16xf32>
    tpu.vector_store %arg8[%c0_21, %c0_22], %34 {strides = array<i32>} : memref<2x16xf32, #tpu.memory_space<vmem>>, vector<2x16xf32>,
    return
  }
  func.func @transform_0(%arg0: i32) -> (i32, i32) {
    %c0_i32 = arith.constant 0 : i32
    %c0_i32_0 = arith.constant 0 : i32
    %c0_i32_1 = arith.constant 0 : i32
    return %c0_i32, %c0_i32_0 : i32, i32
  }
  func.func @transform_1(%arg0: i32) -> (i32, i32) {
    %c0_i32 = arith.constant 0 : i32
    %c0_i32_0 = arith.constant 0 : i32
    %c0_i32_1 = arith.constant 0 : i32
    return %c0_i32, %c0_i32_0 : i32, i32
  }
  func.func @transform_2(%arg0: i32) -> (i32, i32) {
    %c0_i32 = arith.constant 0 : i32
    %c0_i32_0 = arith.constant 0 : i32
    %c0_i32_1 = arith.constant 0 : i32
    return %c0_i32, %c0_i32_0 : i32, i32
  }
  func.func @transform_3(%arg0: i32) -> (i32, i32) {
    %c0_i32 = arith.constant 0 : i32
    %c0_i32_0 = arith.constant 0 : i32
    %c0_i32_1 = arith.constant 0 : i32
    return %c0_i32, %c0_i32_0 : i32, i32
  }
  func.func @transform_4(%arg0: i32) -> (i32, i32) {
    %c0_i32 = arith.constant 0 : i32
    %c0_i32_0 = arith.constant 0 : i32
    %c0_i32_1 = arith.constant 0 : i32
    return %c0_i32, %c0_i32_0 : i32, i32
  }
  func.func @transform_5(%arg0: i32) -> (i32, i32) {
    %c0_i32 = arith.constant 0 : i32
    %c0_i32_0 = arith.constant 0 : i32
    %c0_i32_1 = arith.constant 0 : i32
    return %c0_i32, %c0_i32_0 : i32, i32
  }
  func.func @transform_6(%arg0: i32) -> (i32, i32) {
    %c0_i32 = arith.constant 0 : i32
    %c0_i32_0 = arith.constant 0 : i32
    %c0_i32_1 = arith.constant 0 : i32
    return %c0_i32, %c0_i32_0 : i32, i32
  }
  func.func @transform_7(%arg0: i32) -> (i32, i32) {
    %c0_i32 = arith.constant 0 : i32
    %c0_i32_0 = arith.constant 0 : i32
    %c0_i32_1 = arith.constant 0 : i32
    return %c0_i32, %c0_i32_0 : i32, i32
  }
}

</mosaic_0001>

<llo_original>
// kernel: mvit_forward.11
$region0: #{mvit_forward.11}
  #allocation0 [shape = 'u32[]', space=smem, size = 0x4, offset = 0x4, fixed_abs, tag = 'smem constant byte address 0x4 - core index']
  #allocation1 [shape = 'u32[144,128]{1,0:T(1,128)}', space=vmem, size = 0x12000, scoped, tag = 'internal scratch']
  %s0 = inlined_call_operand.vmem [shape: f32[2,16,64], index: 0, kind: input, shape index: {}]
  %s1 = inlined_call_operand.vmem [shape: f32[64,32], index: 1, kind: input, shape index: {}]
  %s2 = inlined_call_operand.vmem [shape: f32[1,32], index: 2, kind: input, shape index: {}]
  %s3 = inlined_call_operand.vmem [shape: f32[16,32], index: 3, kind: input, shape index: {}]
  %s4 = inlined_call_operand.vmem [shape: f32[2,16,32], index: 4, kind: output, shape index: {}]
  %s5 = sld [smem:[#allocation0]]
  $region49: #{mvit_forward.11} parent=0
    _
  %s7 = ssub.s32 1, %s5
  %s8 = scalar_select 0, %s7, %s5
  loop: start=0, step=1, limit=4
  $region2: #{mvit_forward.11} parent=0 // loop_pre_header
    _
  $region3: #{mvit_forward.11} parent=0 // loop_header
    %s10 = sphi 0, %s14
    %p11 = scmp.ge.s32.totalorder %s10, 4
    %s20 = sphi 0, %s22
    %s23 = sphi 0, %s20
    %s24 = sphi 0, %s23
    %s40 = sphi 0, %s24
    %s44 = sphi 0, %s44
    %s46 = sphi 0, %s44
    %s47 = sphi 0, %s46
    %s61 = sphi 0, %s47
    %s65 = sphi 0, %s65
    %s67 = sphi 0, %s65
    %s68 = sphi 0, %s67
    %s82 = sphi 0, %s68
    %s86 = sphi 0, %s86
    %s88 = sphi 0, %s86
    %s89 = sphi 0, %s88
    %s103 = sphi 0, %s89
    %s109 = sphi 0, %s111
    %s112 = sphi 0, %s109
    %s113 = sphi 0, %s112
    %s129 = sphi 0, %s113
  $region4: #{mvit_forward.11} parent=0 // loop_header_branch
    %13 = sbr.rel (%p11) target = $region8
  $region5: #{mvit_forward.11} parent=0 // loop_body
    %s15 = ssub.s32 %s10, 1
    %s16 = ssub.s32 %s10, 2
    %s17 = sadd.s32 %s10, 1
    %s18 = ssub.s32 %s10, %s17
    %p19 = scmp.eq.s32.totalorder %s18, 0
    %s21 = sadd.s32 %s20, 1
    %s22 = scalar_select %p19, %s20, %s21
    %p25 = pneg %p19
    %p26 = scmp.eq.s32.totalorder %s10, 1
    %p27 = por %p25, %p26
    %p28 = scmp.ne.s32.totalorder %s20, %s23
    %p29 = scmp.eq.s32.totalorder %s10, 0
    %p30 = por %p28, %p29
    %p31 = scmp.ne.s32.totalorder %s20, %s23
    %p32 = scmp.eq.s32.totalorder %s15, 1
    %p33 = por %p31, %p32
    %p34 = scmp.ne.s32.totalorder %s23, %s24
    %p35 = scmp.eq.s32.totalorder %s15, 0
    %p36 = por %p34, %p35
    %p37 = scmp.ne.s32.totalorder %s23, %s24
    %p38 = scmp.eq.s32.totalorder %s16, 1
    %p39 = por %p37, %p38
    %p41 = scmp.ne.s32.totalorder %s24, %s40
    %p42 = scmp.eq.s32.totalorder %s16, 0
    %p43 = por %p41, %p42
    %s45 = sadd.s32 %s44, 1
    %p48 = scmp.eq.s32.totalorder %s10, 1
    %p49 = scmp.ne.s32.totalorder %s44, %s46
    %p50 = scmp.eq.s32.totalorder %s10, 0
    %p51 = por %p49, %p50
    %p52 = scmp.ne.s32.totalorder %s44, %s46
    %p53 = scmp.eq.s32.totalorder %s15, 1
    %p54 = por %p52, %p53
    %p55 = scmp.ne.s32.totalorder %s46, %s47
    %p56 = scmp.eq.s32.totalorder %s15, 0
    %p57 = por %p55, %p56
    %p58 = scmp.ne.s32.totalorder %s46, %s47
    %p59 = scmp.eq.s32.totalorder %s16, 1
    %p60 = por %p58, %p59
    %p62 = scmp.ne.s32.totalorder %s47, %s61
    %p63 = scmp.eq.s32.totalorder %s16, 0
    %p64 = por %p62, %p63
    %s66 = sadd.s32 %s65, 1
    %p69 = scmp.eq.s32.totalorder %s10, 1
    %p70 = scmp.ne.s32.totalorder %s65, %s67
    %p71 = scmp.eq.s32.totalorder %s10, 0
    %p72 = por %p70, %p71
    %p73 = scmp.ne.s32.totalorder %s65, %s67
    %p74 = scmp.eq.s32.totalorder %s15, 1
    %p75 = por %p73, %p74
    %p76 = scmp.ne.s32.totalorder %s67, %s68
    %p77 = scmp.eq.s32.totalorder %s15, 0
    %p78 = por %p76, %p77
    %p79 = scmp.ne.s32.totalorder %s67, %s68
    %p80 = scmp.eq.s32.totalorder %s16, 1
    %p81 = por %p79, %p80
    %p83 = scmp.ne.s32.totalorder %s68, %s82
    %p84 = scmp.eq.s32.totalorder %s16, 0
    %p85 = por %p83, %p84
    %s87 = sadd.s32 %s86, 1
    %p90 = scmp.eq.s32.totalorder %s10, 1
    %p91 = scmp.ne.s32.totalorder %s86, %s88
    %p92 = scmp.eq.s32.totalorder %s10, 0
    %p93 = por %p91, %p92
    %p94 = scmp.ne.s32.totalorder %s86, %s88
    %p95 = scmp.eq.s32.totalorder %s15, 1
    %p96 = por %p94, %p95
    %p97 = scmp.ne.s32.totalorder %s88, %s89
    %p98 = scmp.eq.s32.totalorder %s15, 0
    %p99 = por %p97, %p98
    %p100 = scmp.ne.s32.totalorder %s88, %s89
    %p101 = scmp.eq.s32.totalorder %s16, 1
    %p102 = por %p100, %p101
    %p104 = scmp.ne.s32.totalorder %s89, %s103
    %p105 = scmp.eq.s32.totalorder %s16, 0
    %p106 = por %p104, %p105
    %s107 = ssub.s32 %s10, %s17
    %p108 = scmp.eq.s32.totalorder %s107, 0
    %s110 = sadd.s32 %s109, 1
    %s111 = scalar_select %p108, %s109, %s110
    %p114 = pneg %p108
    %p115 = scmp.eq.s32.totalorder %s10, 1
    %p116 = por %p114, %p115
    %p117 = scmp.ne.s32.totalorder %s109, %s112
    %p118 = scmp.eq.s32.totalorder %s10, 0
    %p119 = por %p117, %p118
    %p120 = scmp.ne.s32.totalorder %s109, %s112
    %p121 = scmp.eq.s32.totalorder %s15, 1
    %p122 = por %p120, %p121
    %p123 = scmp.ne.s32.totalorder %s112, %s113
    %p124 = scmp.eq.s32.totalorder %s15, 0
    %p125 = por %p123, %p124
    %p126 = scmp.ne.s32.totalorder %s112, %s113
    %p127 = scmp.eq.s32.totalorder %s16, 1
    %p128 = por %p126, %p127
    %p130 = scmp.ne.s32.totalorder %s113, %s129
    %p131 = scmp.eq.s32.totalorder %s16, 0
    %p132 = por %p130, %p131
    %p133 = scmp.le.s32.totalorder 1, %s10
    %p134 = scmp.lt.s32.totalorder %s10, 3
    %p135 = pnand %p133, %p134
    %p136 = pneg %p135
    // Predicated region
    $region9: #{mvit_forward.11} parent=5 // pred_check
      _
    $region10: #{mvit_forward.11} parent=5 // pred_check_branch
      %138 = sbr.rel (%p135) target = $region12
    $region11: #{mvit_forward.11} parent=5 // pred_region
      %s139 = ssub.s32 %s10, 1
      // Predicated region
      $region13: #{mvit_forward.11} parent=11 // pred_check
        %p140 = pneg %p57
      $region14: #{mvit_forward.11} parent=11 // pred_check_branch
        %142 = sbr.rel (%p140) target = $region16
      $region15: #{mvit_forward.11} parent=11 // pred_region
        _
      $region16: #{mvit_forward.11} parent=11 // pred_fallthru
        _
      // Predicated region
      $region17: #{mvit_forward.11} parent=11 // pred_check
        %p143 = pneg %p78
      $region18: #{mvit_forward.11} parent=11 // pred_check_branch
        %145 = sbr.rel (%p143) target = $region20
      $region19: #{mvit_forward.11} parent=11 // pred_region
        _
      $region20: #{mvit_forward.11} parent=11 // pred_fallthru
        _
      // Predicated region
      $region21: #{mvit_forward.11} parent=11 // pred_check
        %p146 = pneg %p99
      $region22: #{mvit_forward.11} parent=11 // pred_check_branch
        %148 = sbr.rel (%p146) target = $region24
      $region23: #{mvit_forward.11} parent=11 // pred_region
        _
      $region24: #{mvit_forward.11} parent=11 // pred_fallthru
        _
    $region12: #{mvit_forward.11} parent=5 // pred_fallthru
      _
    %p149 = scmp.lt.s32.totalorder %s10, 2
    // Predicated region
    $region25: #{mvit_forward.11} parent=5 // pred_check
      %p150 = pneg %p149
    $region26: #{mvit_forward.11} parent=5 // pred_check_branch
      %152 = sbr.rel (%p150) target = $region28
    $region27: #{mvit_forward.11} parent=5 // pred_region
      // Predicated region
      $region29: #{mvit_forward.11} parent=27 // pred_check
        %p153 = pneg %p30
      $region30: #{mvit_forward.11} parent=27 // pred_check_branch
        %155 = sbr.rel (%p153) target = $region32
      $region31: #{mvit_forward.11} parent=27 // pred_region
        %p156 = scmp.lt.s32.totalorder %s10, 1
        %s157 = scalar_select %p156, %s10, 1
        %s158 = smul.addr %s157, 2
        %s159 = smul.addr %s158, 8
        %s160 = scalar_lea.vmem %s0, %s159
      $region32: #{mvit_forward.11} parent=27 // pred_fallthru
        _
    $region28: #{mvit_forward.11} parent=5 // pred_fallthru
      _
    %p161 = scmp.le.s32.totalorder 1, %s10
    %p162 = scmp.lt.s32.totalorder %s10, 3
    %p163 = pnand %p161, %p162
    %p164 = pneg %p163
    // Predicated region
    $region33: #{mvit_forward.11} parent=5 // pred_check
      _
    $region34: #{mvit_forward.11} parent=5 // pred_check_branch
      %166 = sbr.rel (%p163) target = $region36
    $region35: #{mvit_forward.11} parent=5 // pred_region
      %s167 = ssub.s32 %s10, 1
      %p168 = scmp.lt.s32.totalorder %s15, 1
      %s169 = scalar_select %p168, %s15, 1
      %s170 = smul.addr %s169, 2
      %s171 = smul.addr %s170, 8
      %s172 = scalar_lea.vmem %s0, %s171
      %p173 = pneg %p36
      %p174 = pneg %p33
      %p175 = pneg %p57
      %p176 = pneg %p54
      %p177 = pneg %p78
      %p178 = pneg %p75
      %p179 = pneg %p99
      %p180 = pneg %p96
      %p181 = pneg %p125
      %p182 = pneg %p122
      %p183 = scmp.lt.s32.totalorder %s15, 1
      %s184 = scalar_select %p183, %s15, 1
      %s185 = smul.addr %s184, 2
      %s186 = smul.addr %s185, 8
      %s187 = scalar_lea.vmem %s4, %s186
      %p188 = scmp.lt.s32.totalorder %s15, 1
      %s189 = scalar_select %p188, %s15, 1
      %s190 = smul.addr %s189, 2
      %s191 = smul.addr %s190, 8
      %s192 = scalar_lea.vmem %s0, %s191
      %p193 = scmp.lt.s32.totalorder %s15, 1
      %s194 = scalar_select %p193, %s15, 1
      %s195 = smul.addr %s194, 2
      %s196 = smul.addr %s195, 8
      %s197 = scalar_lea.vmem %s4, %s196
      %v199 = vld [vmem:[%s192] sm:$0xff]
      %v200 = vld [vmem:[%s192 + $0x8] sm:$0xff]
      %v201 = vld [vmem:[%s1] sm:$0xff]
      %v202 = vld [vmem:[%s1 + $0x8] sm:$0xff]
      %v203 = vld [vmem:[%s1 + $0x10] sm:$0xff]
      %v204 = vld [vmem:[%s1 + $0x18] sm:$0xff]
      %v205 = vld [vmem:[%s1 + $0x20] sm:$0xff]
      %v206 = vld [vmem:[%s1 + $0x28] sm:$0xff]
      %v207 = vld [vmem:[%s1 + $0x30] sm:$0xff]
      %v208 = vld [vmem:[%s1 + $0x38] sm:$0xff]
      %v209 = vpack.c.bf16 %v200, %v199
      %v210 = vpack.c.bf16 %v202, %v201
      %v211 = vpack.c.bf16 %v204, %v203
      %v212 = vpack.c.bf16 %v206, %v205
      %v213 = vpack.c.bf16 %v208, %v207
      %v214 = vld [vmem:[%s2] sm:$0x1]
      %v216 = vlaneseq
      %v217 = vshrl.u32 %v216, 7
      %v218 = vsub.s32 0, %v217
      %v219 = vrot.slane %v214, %v218
      %vm221 = vcmask 523264
      %v223 = vsel %vm221, %v209, 0
      %225 = vmatprep.subr.bf16.mxu0 0
      %226 = vmatpush1.bf16.msra.mxu0 0
      %227 = vmatprep.subr.bf16.mxu0 0
      %228 = vmatpush1.bf16.msra.mxu0 0
      %229 = vmatprep.subr.bf16.mxu0 0
      %230 = vmatpush1.bf16.msra.mxu0 0
      %231 = vmatprep.subr.bf16.mxu0 0
      %232 = vmatpush1.bf16.msra.mxu0 0
      %233 = vmatprep.subr.bf16.mxu0 0
      %234 = vmatpush1.bf16.msra.mxu0 %v213
      %235 = vmatprep.subr.bf16.mxu0 0
      %236 = vmatpush1.bf16.msra.mxu0 %v212
      %237 = vmatprep.subr.bf16.mxu0 0
      %238 = vmatpush1.bf16.msra.mxu0 %v211
      %239 = vmatprep.subr.bf16.mxu0 0
      %240 = vmatpush1.bf16.msra.mxu0 %v210
      %241 = vmatprep.subr.bf16.mxu0 0
      %242 = vmatpush2.bf16.msra.mxu0 0
      %243 = vmatprep.subr.bf16.mxu0 0
      %244 = vmatpush2.bf16.msra.mxu0 0
      %245 = vmatprep.subr.bf16.mxu0 0
      %246 = vmatpush2.bf16.msra.mxu0 0
      %247 = vmatprep.subr.bf16.mxu0 0
      %248 = vmatpush2.bf16.msra.mxu0 0
      %249 = vmatprep.subr.bf16.mxu0 0
      %250 = vmatpush2.bf16.msra.mxu0 0
      %251 = vmatprep.subr.bf16.mxu0 0
      %252 = vmatpush2.bf16.msra.mxu0 0
      %253 = vmatprep.subr.bf16.mxu0 0
      %254 = vmatpush2.bf16.msra.mxu0 0
      %255 = vmatprep.subr.bf16.mxu0 0
      %256 = vmatpush2.bf16.msra.mxu0 0
      %257 = vmatprep.mubr.bf16.mxu0 0
      %258 = vmatmul.mubr.bf16.gmra.mxu0 %v223
      %v259 = vpop.f32.mrf.mxu0
      %v260 = vadd.f32 %v219, %v259
      %v261 = vpop.f32.mrf.mxu0
      %v262 = vpop.f32.mrf.mxu0
      %v263 = vadd.f32 %v219, %v262
      %v264 = vpop.f32.mrf.mxu0
      %265 = vdwg.mxu0
      %v266 = vld [vmem:[%s3] sm:$0xff]
      %v267 = vld [vmem:[%s3 + $0x8] sm:$0xff]
      %v268 = vadd.f32 %v260, %v266
      %v269 = vadd.f32 %v263, %v267
      %vm270 = vcmask 261120
      %271 = vst.msk [vmem:[%s197] sm:$0xff] %vm270, %v268
      %272 = vst.msk [vmem:[%s197 + $0x8] sm:$0xff] %vm270, %v269
      %p273 = scmp.lt.s32.totalorder %s15, 1
      %s274 = scalar_select %p273, %s15, 1
      %s275 = smul.addr %s274, 2
      %s276 = smul.addr %s275, 8
      %s277 = scalar_lea.vmem %s4, %s276
      // Predicated region
      $region37: #{mvit_forward.11} parent=35 // pred_check
        %p278 = pneg %p122
      $region38: #{mvit_forward.11} parent=35 // pred_check_branch
        %280 = sbr.rel (%p278) target = $region40
      $region39: #{mvit_forward.11} parent=35 // pred_region
        _
      $region40: #{mvit_forward.11} parent=35 // pred_fallthru
        _
    $region36: #{mvit_forward.11} parent=5 // pred_fallthru
      _
    %p281 = scmp.le.s32.totalorder 2, %s10
    // Predicated region
    $region41: #{mvit_forward.11} parent=5 // pred_check
      %p282 = pneg %p281
    $region42: #{mvit_forward.11} parent=5 // pred_check_branch
      %284 = sbr.rel (%p282) target = $region44
    $region43: #{mvit_forward.11} parent=5 // pred_region
      %s285 = ssub.s32 %s10, 2
      // Predicated region
      $region45: #{mvit_forward.11} parent=43 // pred_check
        %p286 = pneg %p128
      $region46: #{mvit_forward.11} parent=43 // pred_check_branch
        %288 = sbr.rel (%p286) target = $region48
      $region47: #{mvit_forward.11} parent=43 // pred_region
        %p289 = scmp.lt.s32.totalorder %s16, 1
        %s290 = scalar_select %p289, %s16, 1
        %s291 = smul.addr %s290, 2
        %s292 = smul.addr %s291, 8
        %s293 = scalar_lea.vmem %s4, %s292
      $region48: #{mvit_forward.11} parent=43 // pred_fallthru
        _
    $region44: #{mvit_forward.11} parent=5 // pred_fallthru
      _
  $region6: #{mvit_forward.11} parent=0 // loop_footer
    %s14 = sadd.s32 1, %s10
  $region7: #{mvit_forward.11} parent=0 // loop_footer_branch
    %9 = sbr.rel target = $region3
  $region8: #{mvit_forward.11} parent=0 // loop_exit
    _

// kernel: mvit_forward.13
$region0: #{mvit_forward.13}
  #allocation0 [shape = 'u32[]', space=smem, size = 0x4, offset = 0x4, fixed_abs, tag = 'smem constant byte address 0x4 - core index']
  #allocation1 [shape = 'u32[144,128]{1,0:T(1,128)}', space=vmem, size = 0x12000, scoped, tag = 'internal scratch']
  %s0 = inlined_call_operand.vmem [shape: f32[32,32], index: 0, kind: input, shape index: {}]
  %s1 = inlined_call_operand.vmem [shape: f32[32,1024], index: 1, kind: input, shape index: {}]
  %s2 = inlined_call_operand.vmem [shape: f32[1,1024], index: 2, kind: input, shape index: {}]
  %s3 = inlined_call_operand.vmem [shape: f32[1024,32], index: 3, kind: input, shape index: {}]
  %s4 = inlined_call_operand.vmem [shape: f32[1,32], index: 4, kind: input, shape index: {}]
  %s5 = inlined_call_operand.vmem [shape: f32[1,32], index: 5, kind: input, shape index: {}]
  %s6 = inlined_call_operand.vmem [shape: f32[1,32], index: 6, kind: input, shape index: {}]
  %s7 = inlined_call_operand.vmem [shape: f32[32,32], index: 7, kind: output, shape index: {}]
  %s8 = sld [smem:[#allocation0]]
  $region38: #{mvit_forward.13} parent=0
    _
  %s10 = ssub.s32 1, %s8
  %s11 = scalar_select 0, %s10, %s8
  // Predicated region
  $region2: #{mvit_forward.13} parent=0 // pred_check
    _
  $region3: #{mvit_forward.13} parent=0 // pred_check_branch
    %13 = sbr.rel (0) target = $region5
  $region4: #{mvit_forward.13} parent=0 // pred_region
    _
  $region5: #{mvit_forward.13} parent=0 // pred_fallthru
    _
  // Predicated region
  $region6: #{mvit_forward.13} parent=0 // pred_check
    _
  $region7: #{mvit_forward.13} parent=0 // pred_check_branch
    %15 = sbr.rel (0) target = $region9
  $region8: #{mvit_forward.13} parent=0 // pred_region
    _
  $region9: #{mvit_forward.13} parent=0 // pred_fallthru
    _
  // Predicated region
  $region10: #{mvit_forward.13} parent=0 // pred_check
    _
  $region11: #{mvit_forward.13} parent=0 // pred_check_branch
    %17 = sbr.rel (0) target = $region13
  $region12: #{mvit_forward.13} parent=0 // pred_region
    _
  $region13: #{mvit_forward.13} parent=0 // pred_fallthru
    _
  // Predicated region
  $region14: #{mvit_forward.13} parent=0 // pred_check
    _
  $region15: #{mvit_forward.13} parent=0 // pred_check_branch
    %19 = sbr.rel (0) target = $region17
  $region16: #{mvit_forward.13} parent=0 // pred_region
    _
  $region17: #{mvit_forward.13} parent=0 // pred_fallthru
    _
  // Predicated region
  $region18: #{mvit_forward.13} parent=0 // pred_check
    _
  $region19: #{mvit_forward.13} parent=0 // pred_check_branch
    %21 = sbr.rel (0) target = $region21
  $region20: #{mvit_forward.13} parent=0 // pred_region
    _
  $region21: #{mvit_forward.13} parent=0 // pred_fallthru
    _
  // Predicated region
  $region22: #{mvit_forward.13} parent=0 // pred_check
    _
  $region23: #{mvit_forward.13} parent=0 // pred_check_branch
    %23 = sbr.rel (0) target = $region25
  $region24: #{mvit_forward.13} parent=0 // pred_region
    _
  $region25: #{mvit_forward.13} parent=0 // pred_fallthru
    _
  // Predicated region
  $region26: #{mvit_forward.13} parent=0 // pred_check
    _
  $region27: #{mvit_forward.13} parent=0 // pred_check_branch
    %25 = sbr.rel (0) target = $region29
  $region28: #{mvit_forward.13} parent=0 // pred_region
    _
  $region29: #{mvit_forward.13} parent=0 // pred_fallthru
    _
  %v27 = vld [vmem:[%s0] sm:$0xff]
  %v28 = vld [vmem:[%s0 + $0x8] sm:$0xff]
  %v29 = vld [vmem:[%s0 + $0x10] sm:$0xff]
  %v30 = vld [vmem:[%s0 + $0x18] sm:$0xff]
  %v31 = vld [vmem:[%s1] sm:$0xff]
  %v32 = vld [vmem:[%s1 + $0x8] sm:$0xff]
  %v33 = vld [vmem:[%s1 + $0x10] sm:$0xff]
  %v34 = vld [vmem:[%s1 + $0x18] sm:$0xff]
  %v35 = vld [vmem:[%s1 + $0x20] sm:$0xff]
  %v36 = vld [vmem:[%s1 + $0x28] sm:$0xff]
  %v37 = vld [vmem:[%s1 + $0x30] sm:$0xff]
  %v38 = vld [vmem:[%s1 + $0x38] sm:$0xff]
  %v39 = vld [vmem:[%s1 + $0x40] sm:$0xff]
  %v40 = vld [vmem:[%s1 + $0x48] sm:$0xff]
  %v41 = vld [vmem:[%s1 + $0x50] sm:$0xff]
  %v42 = vld [vmem:[%s1 + $0x58] sm:$0xff]
  %v43 = vld [vmem:[%s1 + $0x60] sm:$0xff]
  %v44 = vld [vmem:[%s1 + $0x68] sm:$0xff]
  %v45 = vld [vmem:[%s1 + $0x70] sm:$0xff]
  %v46 = vld [vmem:[%s1 + $0x78] sm:$0xff]
  %v47 = vld [vmem:[%s1 + $0x80] sm:$0xff]
  %v48 = vld [vmem:[%s1 + $0x88] sm:$0xff]
  %v49 = vld [vmem:[%s1 + $0x90] sm:$0xff]
  %v50 = vld [vmem:[%s1 + $0x98] sm:$0xff]
  %v51 = vld [vmem:[%s1 + $0xa0] sm:$0xff]
  %v52 = vld [vmem:[%s1 + $0xa8] sm:$0xff]
  %v53 = vld [vmem:[%s1 + $0xb0] sm:$0xff]
  %v54 = vld [vmem:[%s1 + $0xb8] sm:$0xff]
  %v55 = vld [vmem:[%s1 + $0xc0] sm:$0xff]
  %v56 = vld [vmem:[%s1 + $0xc8] sm:$0xff]
  %v57 = vld [vmem:[%s1 + $0xd0] sm:$0xff]
  %v58 = vld [vmem:[%s1 + $0xd8] sm:$0xff]
  %v59 = vld [vmem:[%s1 + $0xe0] sm:$0xff]
  %v60 = vld [vmem:[%s1 + $0xe8] sm:$0xff]
  %v61 = vld [vmem:[%s1 + $0xf0] sm:$0xff]
  %v62 = vld [vmem:[%s1 + $0xf8] sm:$0xff]
  %v63 = vpack.c.bf16 %v28, %v27
  %v64 = vpack.c.bf16 %v30, %v29
  %v65 = vpack.c.bf16 %v39, %v31
  %v66 = vpack.c.bf16 %v40, %v32
  %v67 = vpack.c.bf16 %v41, %v33
  %v68 = vpack.c.bf16 %v42, %v34
  %v69 = vpack.c.bf16 %v43, %v35
  %v70 = vpack.c.bf16 %v44, %v36
  %v71 = vpack.c.bf16 %v45, %v37
  %v72 = vpack.c.bf16 %v46, %v38
  %v73 = vpack.c.bf16 %v55, %v47
  %v74 = vpack.c.bf16 %v56, %v48
  %v75 = vpack.c.bf16 %v57, %v49
  %v76 = vpack.c.bf16 %v58, %v50
  %v77 = vpack.c.bf16 %v59, %v51
  %v78 = vpack.c.bf16 %v60, %v52
  %v79 = vpack.c.bf16 %v61, %v53
  %v80 = vpack.c.bf16 %v62, %v54
  %v81 = vld [vmem:[%s2] sm:$0xff]
  %v83 = vlaneseq
  %v84 = vshrl.u32 %v83, 7
  %v85 = vsub.s32 0, %v84
  %v86 = vrot.slane %v81, %v85
  %v87 = vlaneseq
  %v88 = vshrl.u32 %v87, 7
  %v89 = vsub.s32 1, %v88
  %v90 = vrot.slane %v81, %v89
  %v91 = vlaneseq
  %v92 = vshrl.u32 %v91, 7
  %v93 = vsub.s32 2, %v92
  %v94 = vrot.slane %v81, %v93
  %v95 = vlaneseq
  %v96 = vshrl.u32 %v95, 7
  %v97 = vsub.s32 3, %v96
  %v98 = vrot.slane %v81, %v97
  %v99 = vlaneseq
  %v100 = vshrl.u32 %v99, 7
  %v101 = vsub.s32 4, %v100
  %v102 = vrot.slane %v81, %v101
  %v103 = vlaneseq
  %v104 = vshrl.u32 %v103, 7
  %v105 = vsub.s32 5, %v104
  %v106 = vrot.slane %v81, %v105
  %v107 = vlaneseq
  %v108 = vshrl.u32 %v107, 7
  %v109 = vsub.s32 6, %v108
  %v110 = vrot.slane %v81, %v109
  %v111 = vlaneseq
  %v112 = vshrl.u32 %v111, 7
  %v113 = vsub.s32 7, %v112
  %v114 = vrot.slane %v81, %v113
  %vm123 = vcmask 261120
  %v125 = vsel %vm123, %v63, 0
  %v128 = vsel %vm123, %v64, 0
  %130 = vmatprep.subr.bf16.mxu0 0
  %131 = vmatpush1.bf16.msra.mxu0 0
  %132 = vmatprep.subr.bf16.mxu0 0
  %133 = vmatpush1.bf16.msra.mxu0 0
  %134 = vmatprep.subr.bf16.mxu0 0
  %135 = vmatpush1.bf16.msra.mxu0 0
  %136 = vmatprep.subr.bf16.mxu0 0
  %137 = vmatpush1.bf16.msra.mxu0 0
  %138 = vmatprep.subr.bf16.mxu0 0
  %139 = vmatpush1.bf16.msra.mxu0 0
  %140 = vmatprep.subr.bf16.mxu0 0
  %141 = vmatpush1.bf16.msra.mxu0 0
  %142 = vmatprep.subr.bf16.mxu0 %v74
  %143 = vmatpush1.bf16.msra.mxu0 %v73
  %144 = vmatprep.subr.bf16.mxu0 %v66
  %145 = vmatpush1.bf16.msra.mxu0 %v65
  %146 = vmatprep.subr.bf16.mxu0 0
  %147 = vmatpush2.bf16.msra.mxu0 0
  %148 = vmatprep.subr.bf16.mxu0 0
  %149 = vmatpush2.bf16.msra.mxu0 0
  %150 = vmatprep.subr.bf16.mxu0 0
  %151 = vmatpush2.bf16.msra.mxu0 0
  %152 = vmatprep.subr.bf16.mxu0 0
  %153 = vmatpush2.bf16.msra.mxu0 0
  %154 = vmatprep.subr.bf16.mxu0 0
  %155 = vmatpush2.bf16.msra.mxu0 0
  %156 = vmatprep.subr.bf16.mxu0 0
  %157 = vmatpush2.bf16.msra.mxu0 0
  %158 = vmatprep.subr.bf16.mxu0 0
  %159 = vmatpush2.bf16.msra.mxu0 0
  %160 = vmatprep.subr.bf16.mxu0 0
  %161 = vmatpush2.bf16.msra.mxu0 0
  %162 = vmatprep.mubr.bf16.mxu0 0
  %163 = vmatmul.mubr.bf16.gmra.mxu0 %v125
  %v164 = vpop.f32.mrf.mxu0
  %v165 = vadd.f32 %v86, %v164
  %v166 = vpop.f32.mrf.mxu0
  %v167 = vadd.f32 %v90, %v166
  %v168 = vpop.f32.mrf.mxu0
  %v169 = vadd.f32 %v86, %v168
  %v170 = vpop.f32.mrf.mxu0
  %v171 = vadd.f32 %v90, %v170
  %172 = vmatprep.mubr.bf16.mxu0 0
  %173 = vmatmul.mubr.bf16.gmra.mxu0 %v128
  %v174 = vpop.f32.mrf.mxu0
  %v175 = vadd.f32 %v86, %v174
  %v176 = vpop.f32.mrf.mxu0
  %v177 = vadd.f32 %v90, %v176
  %v178 = vpop.f32.mrf.mxu0
  %v179 = vadd.f32 %v86, %v178
  %v180 = vpop.f32.mrf.mxu0
  %v181 = vadd.f32 %v90, %v180
  %182 = vdwg.mxu0
  %183 = vmatprep.subr.bf16.mxu0 0
  %184 = vmatpush1.bf16.msra.mxu0 0
  %185 = vmatprep.subr.bf16.mxu0 0
  %186 = vmatpush1.bf16.msra.mxu0 0
  %187 = vmatprep.subr.bf16.mxu0 0
  %188 = vmatpush1.bf16.msra.mxu0 0
  %189 = vmatprep.subr.bf16.mxu0 0
  %190 = vmatpush1.bf16.msra.mxu0 0
  %191 = vmatprep.subr.bf16.mxu0 0
  %192 = vmatpush1.bf16.msra.mxu0 0
  %193 = vmatprep.subr.bf16.mxu0 0
  %194 = vmatpush1.bf16.msra.mxu0 0
  %195 = vmatprep.subr.bf16.mxu0 %v76
  %196 = vmatpush1.bf16.msra.mxu0 %v75
  %197 = vmatprep.subr.bf16.mxu0 %v68
  %198 = vmatpush1.bf16.msra.mxu0 %v67
  %199 = vmatprep.subr.bf16.mxu0 0
  %200 = vmatpush2.bf16.msra.mxu0 0
  %201 = vmatprep.subr.bf16.mxu0 0
  %202 = vmatpush2.bf16.msra.mxu0 0
  %203 = vmatprep.subr.bf16.mxu0 0
  %204 = vmatpush2.bf16.msra.mxu0 0
  %205 = vmatprep.subr.bf16.mxu0 0
  %206 = vmatpush2.bf16.msra.mxu0 0
  %207 = vmatprep.subr.bf16.mxu0 0
  %208 = vmatpush2.bf16.msra.mxu0 0
  %209 = vmatprep.subr.bf16.mxu0 0
  %210 = vmatpush2.bf16.msra.mxu0 0
  %211 = vmatprep.subr.bf16.mxu0 0
  %212 = vmatpush2.bf16.msra.mxu0 0
  %213 = vmatprep.subr.bf16.mxu0 0
  %214 = vmatpush2.bf16.msra.mxu0 0
  %215 = vmatprep.mubr.bf16.mxu0 0
  %216 = vmatmul.mubr.bf16.gmra.mxu0 %v125
  %v217 = vpop.f32.mrf.mxu0
  %v218 = vadd.f32 %v94, %v217
  %v219 = vpop.f32.mrf.mxu0
  %v220 = vadd.f32 %v98, %v219
  %v221 = vpop.f32.mrf.mxu0
  %v222 = vadd.f32 %v94, %v221
  %v223 = vpop.f32.mrf.mxu0
  %v224 = vadd.f32 %v98, %v223
  %225 = vmatprep.mubr.bf16.mxu0 0
  %226 = vmatmul.mubr.bf16.gmra.mxu0 %v128
  %v227 = vpop.f32.mrf.mxu0
  %v228 = vadd.f32 %v94, %v227
  %v229 = vpop.f32.mrf.mxu0
  %v230 = vadd.f32 %v98, %v229
  %v231 = vpop.f32.mrf.mxu0
  %v232 = vadd.f32 %v94, %v231
  %v233 = vpop.f32.mrf.mxu0
  %v234 = vadd.f32 %v98, %v233
  %235 = vdwg.mxu0
  %236 = vmatprep.subr.bf16.mxu0 0
  %237 = vmatpush1.bf16.msra.mxu0 0
  %238 = vmatprep.subr.bf16.mxu0 0
  %239 = vmatpush1.bf16.msra.mxu0 0
  %240 = vmatprep.subr.bf16.mxu0 0
  %241 = vmatpush1.bf16.msra.mxu0 0
  %242 = vmatprep.subr.bf16.mxu0 0
  %243 = vmatpush1.bf16.msra.mxu0 0
  %244 = vmatprep.subr.bf16.mxu0 0
  %245 = vmatpush1.bf16.msra.mxu0 0
  %246 = vmatprep.subr.bf16.mxu0 0
  %247 = vmatpush1.bf16.msra.mxu0 0
  %248 = vmatprep.subr.bf16.mxu0 %v78
  %249 = vmatpush1.bf16.msra.mxu0 %v77
  %250 = vmatprep.subr.bf16.mxu0 %v70
  %251 = vmatpush1.bf16.msra.mxu0 %v69
  %252 = vmatprep.subr.bf16.mxu0 0
  %253 = vmatpush2.bf16.msra.mxu0 0
  %254 = vmatprep.subr.bf16.mxu0 0
  %255 = vmatpush2.bf16.msra.mxu0 0
  %256 = vmatprep.subr.bf16.mxu0 0
  %257 = vmatpush2.bf16.msra.mxu0 0
  %258 = vmatprep.subr.bf16.mxu0 0
  %259 = vmatpush2.bf16.msra.mxu0 0
  %260 = vmatprep.subr.bf16.mxu0 0
  %261 = vmatpush2.bf16.msra.mxu0 0
  %262 = vmatprep.subr.bf16.mxu0 0
  %263 = vmatpush2.bf16.msra.mxu0 0
  %264 = vmatprep.subr.bf16.mxu0 0
  %265 = vmatpush2.bf16.msra.mxu0 0
  %266 = vmatprep.subr.bf16.mxu0 0
  %267 = vmatpush2.bf16.msra.mxu0 0
  %268 = vmatprep.mubr.bf16.mxu0 0
  %269 = vmatmul.mubr.bf16.gmra.mxu0 %v125
  %v270 = vpop.f32.mrf.mxu0
  %v271 = vadd.f32 %v102, %v270
  %v272 = vpop.f32.mrf.mxu0
  %v273 = vadd.f32 %v106, %v272
  %v274 = vpop.f32.mrf.mxu0
  %v275 = vadd.f32 %v102, %v274
  %v276 = vpop.f32.mrf.mxu0
  %v277 = vadd.f32 %v106, %v276
  %278 = vmatprep.mubr.bf16.mxu0 0
  %279 = vmatmul.mubr.bf16.gmra.mxu0 %v128
  %v280 = vpop.f32.mrf.mxu0
  %v281 = vadd.f32 %v102, %v280
  %v282 = vpop.f32.mrf.mxu0
  %v283 = vadd.f32 %v106, %v282
  %v284 = vpop.f32.mrf.mxu0
  %v285 = vadd.f32 %v102, %v284
  %v286 = vpop.f32.mrf.mxu0
  %v287 = vadd.f32 %v106, %v286
  %288 = vdwg.mxu0
  %289 = vmatprep.subr.bf16.mxu0 0
  %290 = vmatpush1.bf16.msra.mxu0 0
  %291 = vmatprep.subr.bf16.mxu0 0
  %292 = vmatpush1.bf16.msra.mxu0 0
  %293 = vmatprep.subr.bf16.mxu0 0
  %294 = vmatpush1.bf16.msra.mxu0 0
  %295 = vmatprep.subr.bf16.mxu0 0
  %296 = vmatpush1.bf16.msra.mxu0 0
  %297 = vmatprep.subr.bf16.mxu0 0
  %298 = vmatpush1.bf16.msra.mxu0 0
  %299 = vmatprep.subr.bf16.mxu0 0
  %300 = vmatpush1.bf16.msra.mxu0 0
  %301 = vmatprep.subr.bf16.mxu0 %v80
  %302 = vmatpush1.bf16.msra.mxu0 %v79
  %303 = vmatprep.subr.bf16.mxu0 %v72
  %304 = vmatpush1.bf16.msra.mxu0 %v71
  %305 = vmatprep.subr.bf16.mxu0 0
  %306 = vmatpush2.bf16.msra.mxu0 0
  %307 = vmatprep.subr.bf16.mxu0 0
  %308 = vmatpush2.bf16.msra.mxu0 0
  %309 = vmatprep.subr.bf16.mxu0 0
  %310 = vmatpush2.bf16.msra.mxu0 0
  %311 = vmatprep.subr.bf16.mxu0 0
  %312 = vmatpush2.bf16.msra.mxu0 0
  %313 = vmatprep.subr.bf16.mxu0 0
  %314 = vmatpush2.bf16.msra.mxu0 0
  %315 = vmatprep.subr.bf16.mxu0 0
  %316 = vmatpush2.bf16.msra.mxu0 0
  %317 = vmatprep.subr.bf16.mxu0 0
  %318 = vmatpush2.bf16.msra.mxu0 0
  %319 = vmatprep.subr.bf16.mxu0 0
  %320 = vmatpush2.bf16.msra.mxu0 0
  %321 = vmatprep.mubr.bf16.mxu0 0
  %322 = vmatmul.mubr.bf16.gmra.mxu0 %v125
  %v323 = vpop.f32.mrf.mxu0
  %v324 = vadd.f32 %v110, %v323
  %v325 = vpop.f32.mrf.mxu0
  %v326 = vadd.f32 %v114, %v325
  %v327 = vpop.f32.mrf.mxu0
  %v328 = vadd.f32 %v110, %v327
  %v329 = vpop.f32.mrf.mxu0
  %v330 = vadd.f32 %v114, %v329
  %331 = vmatprep.mubr.bf16.mxu0 0
  %332 = vmatmul.mubr.bf16.gmra.mxu0 %v128
  %v333 = vpop.f32.mrf.mxu0
  %v334 = vadd.f32 %v110, %v333
  %v335 = vpop.f32.mrf.mxu0
  %v336 = vadd.f32 %v114, %v335
  %v337 = vpop.f32.mrf.mxu0
  %v338 = vadd.f32 %v110, %v337
  %v339 = vpop.f32.mrf.mxu0
  %v340 = vadd.f32 %v114, %v339
  %341 = vdwg.mxu0
  %v342 = vmax.f32 %v165, 0.0
  %v343 = vmax.f32 %v167, 0.0
  %v344 = vmax.f32 %v218, 0.0
  %v345 = vmax.f32 %v220, 0.0
  %v346 = vmax.f32 %v271, 0.0
  %v347 = vmax.f32 %v273, 0.0
  %v348 = vmax.f32 %v324, 0.0
  %v349 = vmax.f32 %v326, 0.0
  %v350 = vmax.f32 %v169, 0.0
  %v351 = vmax.f32 %v171, 0.0
  %v352 = vmax.f32 %v222, 0.0
  %v353 = vmax.f32 %v224, 0.0
  %v354 = vmax.f32 %v275, 0.0
  %v355 = vmax.f32 %v277, 0.0
  %v356 = vmax.f32 %v328, 0.0
  %v357 = vmax.f32 %v330, 0.0
  %v358 = vmax.f32 %v175, 0.0
  %v359 = vmax.f32 %v177, 0.0
  %v360 = vmax.f32 %v228, 0.0
  %v361 = vmax.f32 %v230, 0.0
  %v362 = vmax.f32 %v281, 0.0
  %v363 = vmax.f32 %v283, 0.0
  %v364 = vmax.f32 %v334, 0.0
  %v365 = vmax.f32 %v336, 0.0
  %v366 = vmax.f32 %v179, 0.0
  %v367 = vmax.f32 %v181, 0.0
  %v368 = vmax.f32 %v232, 0.0
  %v369 = vmax.f32 %v234, 0.0
  %v370 = vmax.f32 %v285, 0.0
  %v371 = vmax.f32 %v287, 0.0
  %v372 = vmax.f32 %v338, 0.0
  %v373 = vmax.f32 %v340, 0.0
  %v374 = vld [vmem:[%s3] sm:$0xff]
  %v375 = vld [vmem:[%s3 + $0x8] sm:$0xff]
  %v376 = vld [vmem:[%s3 + $0x10] sm:$0xff]
  %v377 = vld [vmem:[%s3 + $0x18] sm:$0xff]
  %v378 = vld [vmem:[%s3 + $0x20] sm:$0xff]
  %v379 = vld [vmem:[%s3 + $0x28] sm:$0xff]
  %v380 = vld [vmem:[%s3 + $0x30] sm:$0xff]
  %v381 = vld [vmem:[%s3 + $0x38] sm:$0xff]
  %v382 = vld [vmem:[%s3 + $0x40] sm:$0xff]
  %v383 = vld [vmem:[%s3 + $0x48] sm:$0xff]
  %v384 = vld [vmem:[%s3 + $0x50] sm:$0xff]
  %v385 = vld [vmem:[%s3 + $0x58] sm:$0xff]
  %v386 = vld [vmem:[%s3 + $0x60] sm:$0xff]
  %v387 = vld [vmem:[%s3 + $0x68] sm:$0xff]
  %v388 = vld [vmem:[%s3 + $0x70] sm:$0xff]
  %v389 = vld [vmem:[%s3 + $0x78] sm:$0xff]
  %v390 = vld [vmem:[%s3 + $0x80] sm:$0xff]
  %v391 = vld [vmem:[%s3 + $0x88] sm:$0xff]
  %v392 = vld [vmem:[%s3 + $0x90] sm:$0xff]
  %v393 = vld [vmem:[%s3 + $0x98] sm:$0xff]
  %v394 = vld [vmem:[%s3 + $0xa0] sm:$0xff]
  %v395 = vld [vmem:[%s3 + $0xa8] sm:$0xff]
  %v396 = vld [vmem:[%s3 + $0xb0] sm:$0xff]
  %v397 = vld [vmem:[%s3 + $0xb8] sm:$0xff]
  %v398 = vld [vmem:[%s3 + $0xc0] sm:$0xff]
  %v399 = vld [vmem:[%s3 + $0xc8] sm:$0xff]
  %v400 = vld [vmem:[%s3 + $0xd0] sm:$0xff]
  %v401 = vld [vmem:[%s3 + $0xd8] sm:$0xff]
  %v402 = vld [vmem:[%s3 + $0xe0] sm:$0xff]
  %v403 = vld [vmem:[%s3 + $0xe8] sm:$0xff]
  %v404 = vld [vmem:[%s3 + $0xf0] sm:$0xff]
  %v405 = vld [vmem:[%s3 + $0xf8] sm:$0xff]
  %v406 = vld [vmem:[%s3 + $0x100] sm:$0xff]
  %v407 = vld [vmem:[%s3 + $0x108] sm:$0xff]
  %v408 = vld [vmem:[%s3 + $0x110] sm:$0xff]
  %v409 = vld [vmem:[%s3 + $0x118] sm:$0xff]
  %v410 = vld [vmem:[%s3 + $0x120] sm:$0xff]
  %v411 = vld [vmem:[%s3 + $0x128] sm:$0xff]
  %v412 = vld [vmem:[%s3 + $0x130] sm:$0xff]
  %v413 = vld [vmem:[%s3 + $0x138] sm:$0xff]
  %v414 = vld [vmem:[%s3 + $0x140] sm:$0xff]
  %v415 = vld [vmem:[%s3 + $0x148] sm:$0xff]
  %v416 = vld [vmem:[%s3 + $0x150] sm:$0xff]
  %v417 = vld [vmem:[%s3 + $0x158] sm:$0xff]
  %v418 = vld [vmem:[%s3 + $0x160] sm:$0xff]
  %v419 = vld [vmem:[%s3 + $0x168] sm:$0xff]
  %v420 = vld [vmem:[%s3 + $0x170] sm:$0xff]
  %v421 = vld [vmem:[%s3 + $0x178] sm:$0xff]
  %v422 = vld [vmem:[%s3 + $0x180] sm:$0xff]
  %v423 = vld [vmem:[%s3 + $0x188] sm:$0xff]
  %v424 = vld [vmem:[%s3 + $0x190] sm:$0xff]
  %v425 = vld [vmem:[%s3 + $0x198] sm:$0xff]
  %v426 = vld [vmem:[%s3 + $0x1a0] sm:$0xff]
  %v427 = vld [vmem:[%s3 + $0x1a8] sm:$0xff]
  %v428 = vld [vmem:[%s3 + $0x1b0] sm:$0xff]
  %v429 = vld [vmem:[%s3 + $0x1b8] sm:$0xff]
  %v430 = vld [vmem:[%s3 + $0x1c0] sm:$0xff]
  %v431 = vld [vmem:[%s3 + $0x1c8] sm:$0xff]
  %v432 = vld [vmem:[%s3 + $0x1d0] sm:$0xff]
  %v433 = vld [vmem:[%s3 + $0x1d8] sm:$0xff]
  %v434 = vld [vmem:[%s3 + $0x1e0] sm:$0xff]
  %v435 = vld [vmem:[%s3 + $0x1e8] sm:$0xff]
  %v436 = vld [vmem:[%s3 + $0x1f0] sm:$0xff]
  %v437 = vld [vmem:[%s3 + $0x1f8] sm:$0xff]
  %v438 = vld [vmem:[%s3 + $0x200] sm:$0xff]
  %v439 = vld [vmem:[%s3 + $0x208] sm:$0xff]
  %v440 = vld [vmem:[%s3 + $0x210] sm:$0xff]
  %v441 = vld [vmem:[%s3 + $0x218] sm:$0xff]
  %v442 = vld [vmem:[%s3 + $0x220] sm:$0xff]
  %v443 = vld [vmem:[%s3 + $0x228] sm:$0xff]
  %v444 = vld [vmem:[%s3 + $0x230] sm:$0xff]
  %v445 = vld [vmem:[%s3 + $0x238] sm:$0xff]
  %v446 = vld [vmem:[%s3 + $0x240] sm:$0xff]
  %v447 = vld [vmem:[%s3 + $0x248] sm:$0xff]
  %v448 = vld [vmem:[%s3 + $0x250] sm:$0xff]
  %v449 = vld [vmem:[%s3 + $0x258] sm:$0xff]
  %v450 = vld [vmem:[%s3 + $0x260] sm:$0xff]
  %v451 = vld [vmem:[%s3 + $0x268] sm:$0xff]
  %v452 = vld [vmem:[%s3 + $0x270] sm:$0xff]
  %v453 = vld [vmem:[%s3 + $0x278] sm:$0xff]
  %v454 = vld [vmem:[%s3 + $0x280] sm:$0xff]
  %v455 = vld [vmem:[%s3 + $0x288] sm:$0xff]
  %v456 = vld [vmem:[%s3 + $0x290] sm:$0xff]
  %v457 = vld [vmem:[%s3 + $0x298] sm:$0xff]
  %v458 = vld [vmem:[%s3 + $0x2a0] sm:$0xff]
  %v459 = vld [vmem:[%s3 + $0x2a8] sm:$0xff]
  %v460 = vld [vmem:[%s3 + $0x2b0] sm:$0xff]
  %v461 = vld [vmem:[%s3 + $0x2b8] sm:$0xff]
  %v462 = vld [vmem:[%s3 + $0x2c0] sm:$0xff]
  %v463 = vld [vmem:[%s3 + $0x2c8] sm:$0xff]
  %v464 = vld [vmem:[%s3 + $0x2d0] sm:$0xff]
  %v465 = vld [vmem:[%s3 + $0x2d8] sm:$0xff]
  %v466 = vld [vmem:[%s3 + $0x2e0] sm:$0xff]
  %v467 = vld [vmem:[%s3 + $0x2e8] sm:$0xff]
  %v468 = vld [vmem:[%s3 + $0x2f0] sm:$0xff]
  %v469 = vld [vmem:[%s3 + $0x2f8] sm:$0xff]
  %v470 = vld [vmem:[%s3 + $0x300] sm:$0xff]
  %v471 = vld [vmem:[%s3 + $0x308] sm:$0xff]
  %v472 = vld [vmem:[%s3 + $0x310] sm:$0xff]
  %v473 = vld [vmem:[%s3 + $0x318] sm:$0xff]
  %v474 = vld [vmem:[%s3 + $0x320] sm:$0xff]
  %v475 = vld [vmem:[%s3 + $0x328] sm:$0xff]
  %v476 = vld [vmem:[%s3 + $0x330] sm:$0xff]
  %v477 = vld [vmem:[%s3 + $0x338] sm:$0xff]
  %v478 = vld [vmem:[%s3 + $0x340] sm:$0xff]
  %v479 = vld [vmem:[%s3 + $0x348] sm:$0xff]
  %v480 = vld [vmem:[%s3 + $0x350] sm:$0xff]
  %v481 = vld [vmem:[%s3 + $0x358] sm:$0xff]
  %v482 = vld [vmem:[%s3 + $0x360] sm:$0xff]
  %v483 = vld [vmem:[%s3 + $0x368] sm:$0xff]
  %v484 = vld [vmem:[%s3 + $0x370] sm:$0xff]
  %v485 = vld [vmem:[%s3 + $0x378] sm:$0xff]
  %v486 = vld [vmem:[%s3 + $0x380] sm:$0xff]
  %v487 = vld [vmem:[%s3 + $0x388] sm:$0xff]
  %v488 = vld [vmem:[%s3 + $0x390] sm:$0xff]
  %v489 = vld [vmem:[%s3 + $0x398] sm:$0xff]
  %v490 = vld [vmem:[%s3 + $0x3a0] sm:$0xff]
  %v491 = vld [vmem:[%s3 + $0x3a8] sm:$0xff]
  %v492 = vld [vmem:[%s3 + $0x3b0] sm:$0xff]
  %v493 = vld [vmem:[%s3 + $0x3b8] sm:$0xff]
  %v494 = vld [vmem:[%s3 + $0x3c0] sm:$0xff]
  %v495 = vld [vmem:[%s3 + $0x3c8] sm:$0xff]
  %v496 = vld [vmem:[%s3 + $0x3d0] sm:$0xff]
  %v497 = vld [vmem:[%s3 + $0x3d8] sm:$0xff]
  %v498 = vld [vmem:[%s3 + $0x3e0] sm:$0xff]
  %v499 = vld [vmem:[%s3 + $0x3e8] sm:$0xff]
  %v500 = vld [vmem:[%s3 + $0x3f0] sm:$0xff]
  %v501 = vld [vmem:[%s3 + $0x3f8] sm:$0xff]
  %v502 = vpack.c.bf16 %v350, %v342
  %v503 = vpack.c.bf16 %v351, %v343
  %v504 = vpack.c.bf16 %v352, %v344
  %v505 = vpack.c.bf16 %v353, %v345
  %v506 = vpack.c.bf16 %v354, %v346
  %v507 = vpack.c.bf16 %v355, %v347
  %v508 = vpack.c.bf16 %v356, %v348
  %v509 = vpack.c.bf16 %v357, %v349
  %v510 = vpack.c.bf16 %v366, %v358
  %v511 = vpack.c.bf16 %v367, %v359
  %v512 = vpack.c.bf16 %v368, %v360
  %v513 = vpack.c.bf16 %v369, %v361
  %v514 = vpack.c.bf16 %v370, %v362
  %v515 = vpack.c.bf16 %v371, %v363
  %v516 = vpack.c.bf16 %v372, %v364
  %v517 = vpack.c.bf16 %v373, %v365
  %v518 = vpack.c.bf16 %v375, %v374
  %v519 = vpack.c.bf16 %v377, %v376
  %v520 = vpack.c.bf16 %v379, %v378
  %v521 = vpack.c.bf16 %v381, %v380
  %v522 = vpack.c.bf16 %v383, %v382
  %v523 = vpack.c.bf16 %v385, %v384
  %v524 = vpack.c.bf16 %v387, %v386
  %v525 = vpack.c.bf16 %v389, %v388
  %v526 = vpack.c.bf16 %v391, %v390
  %v527 = vpack.c.bf16 %v393, %v392
  %v528 = vpack.c.bf16 %v395, %v394
  %v529 = vpack.c.bf16 %v397, %v396
  %v530 = vpack.c.bf16 %v399, %v398
  %v531 = vpack.c.bf16 %v401, %v400
  %v532 = vpack.c.bf16 %v403, %v402
  %v533 = vpack.c.bf16 %v405, %v404
  %v534 = vpack.c.bf16 %v407, %v406
  %v535 = vpack.c.bf16 %v409, %v408
  %v536 = vpack.c.bf16 %v411, %v410
  %v537 = vpack.c.bf16 %v413, %v412
  %v538 = vpack.c.bf16 %v415, %v414
  %v539 = vpack.c.bf16 %v417, %v416
  %v540 = vpack.c.bf16 %v419, %v418
  %v541 = vpack.c.bf16 %v421, %v420
  %v542 = vpack.c.bf16 %v423, %v422
  %v543 = vpack.c.bf16 %v425, %v424
  %v544 = vpack.c.bf16 %v427, %v426
  %v545 = vpack.c.bf16 %v429, %v428
  %v546 = vpack.c.bf16 %v431, %v430
  %v547 = vpack.c.bf16 %v433, %v432
  %v548 = vpack.c.bf16 %v435, %v434
  %v549 = vpack.c.bf16 %v437, %v436
  %v550 = vpack.c.bf16 %v439, %v438
  %v551 = vpack.c.bf16 %v441, %v440
  %v552 = vpack.c.bf16 %v443, %v442
  %v553 = vpack.c.bf16 %v445, %v444
  %v554 = vpack.c.bf16 %v447, %v446
  %v555 = vpack.c.bf16 %v449, %v448
  %v556 = vpack.c.bf16 %v451, %v450
  %v557 = vpack.c.bf16 %v453, %v452
  %v558 = vpack.c.bf16 %v455, %v454
  %v559 = vpack.c.bf16 %v457, %v456
  %v560 = vpack.c.bf16 %v459, %v458
  %v561 = vpack.c.bf16 %v461, %v460
  %v562 = vpack.c.bf16 %v463, %v462
  %v563 = vpack.c.bf16 %v465, %v464
  %v564 = vpack.c.bf16 %v467, %v466
  %v565 = vpack.c.bf16 %v469, %v468
  %v566 = vpack.c.bf16 %v471, %v470
  %v567 = vpack.c.bf16 %v473, %v472
  %v568 = vpack.c.bf16 %v475, %v474
  %v569 = vpack.c.bf16 %v477, %v476
  %v570 = vpack.c.bf16 %v479, %v478
  %v571 = vpack.c.bf16 %v481, %v480
  %v572 = vpack.c.bf16 %v483, %v482
  %v573 = vpack.c.bf16 %v485, %v484
  %v574 = vpack.c.bf16 %v487, %v486
  %v575 = vpack.c.bf16 %v489, %v488
  %v576 = vpack.c.bf16 %v491, %v490
  %v577 = vpack.c.bf16 %v493, %v492
  %v578 = vpack.c.bf16 %v495, %v494
  %v579 = vpack.c.bf16 %v497, %v496
  %v580 = vpack.c.bf16 %v499, %v498
  %v581 = vpack.c.bf16 %v501, %v500
  %v582 = vld [vmem:[%s4] sm:$0x1]
  %v584 = vlaneseq
  %v585 = vshrl.u32 %v584, 7
  %v586 = vsub.s32 0, %v585
  %v587 = vrot.slane %v582, %v586
  %589 = vmatprep.subr.bf16.mxu0 0
  %590 = vmatpush1.bf16.msra.mxu0 %v525
  %591 = vmatprep.subr.bf16.mxu0 0
  %592 = vmatpush1.bf16.msra.mxu0 %v524
  %593 = vmatprep.subr.bf16.mxu0 0
  %594 = vmatpush1.bf16.msra.mxu0 %v523
  %595 = vmatprep.subr.bf16.mxu0 0
  %596 = vmatpush1.bf16.msra.mxu0 %v522
  %597 = vmatprep.subr.bf16.mxu0 0
  %598 = vmatpush1.bf16.msra.mxu0 %v521
  %599 = vmatprep.subr.bf16.mxu0 0
  %600 = vmatpush1.bf16.msra.mxu0 %v520
  %601 = vmatprep.subr.bf16.mxu0 0
  %602 = vmatpush1.bf16.msra.mxu0 %v519
  %603 = vmatprep.subr.bf16.mxu0 0
  %604 = vmatpush1.bf16.msra.mxu0 %v518
  %605 = vmatprep.subr.bf16.mxu0 0
  %606 = vmatpush2.bf16.msra.mxu0 %v533
  %607 = vmatprep.subr.bf16.mxu0 0
  %608 = vmatpush2.bf16.msra.mxu0 %v532
  %609 = vmatprep.subr.bf16.mxu0 0
  %610 = vmatpush2.bf16.msra.mxu0 %v531
  %611 = vmatprep.subr.bf16.mxu0 0
  %612 = vmatpush2.bf16.msra.mxu0 %v530
  %613 = vmatprep.subr.bf16.mxu0 0
  %614 = vmatpush2.bf16.msra.mxu0 %v529
  %615 = vmatprep.subr.bf16.mxu0 0
  %616 = vmatpush2.bf16.msra.mxu0 %v528
  %617 = vmatprep.subr.bf16.mxu0 0
  %618 = vmatpush2.bf16.msra.mxu0 %v527
  %619 = vmatprep.subr.bf16.mxu0 0
  %620 = vmatpush2.bf16.msra.mxu0 %v526
  %621 = vmatprep.mubr.bf16.mxu0 %v503
  %622 = vmatmul.mubr.bf16.gmra.mxu0 %v502
  %v623 = vpop.f32.mrf.mxu0
  %v624 = vadd.f32 %v587, %v623
  %v625 = vpop.f32.mrf.mxu0
  %v626 = vpop.f32.mrf.mxu0
  %v627 = vadd.f32 %v587, %v626
  %v628 = vpop.f32.mrf.mxu0
  %629 = vmatprep.mubr.bf16.mxu0 %v511
  %630 = vmatmul.mubr.bf16.gmra.mxu0 %v510
  %v631 = vpop.f32.mrf.mxu0
  %v632 = vadd.f32 %v587, %v631
  %v633 = vpop.f32.mrf.mxu0
  %v634 = vpop.f32.mrf.mxu0
  %v635 = vadd.f32 %v587, %v634
  %v636 = vpop.f32.mrf.mxu0
  %637 = vdwg.mxu0
  %638 = vmatprep.subr.bf16.mxu0 0
  %639 = vmatpush1.bf16.msra.mxu0 %v541
  %640 = vmatprep.subr.bf16.mxu0 0
  %641 = vmatpush1.bf16.msra.mxu0 %v540
  %642 = vmatprep.subr.bf16.mxu0 0
  %643 = vmatpush1.bf16.msra.mxu0 %v539
  %644 = vmatprep.subr.bf16.mxu0 0
  %645 = vmatpush1.bf16.msra.mxu0 %v538
  %646 = vmatprep.subr.bf16.mxu0 0
  %647 = vmatpush1.bf16.msra.mxu0 %v537
  %648 = vmatprep.subr.bf16.mxu0 0
  %649 = vmatpush1.bf16.msra.mxu0 %v536
  %650 = vmatprep.subr.bf16.mxu0 0
  %651 = vmatpush1.bf16.msra.mxu0 %v535
  %652 = vmatprep.subr.bf16.mxu0 0
  %653 = vmatpush1.bf16.msra.mxu0 %v534
  %654 = vmatprep.subr.bf16.mxu0 0
  %655 = vmatpush2.bf16.msra.mxu0 %v549
  %656 = vmatprep.subr.bf16.mxu0 0
  %657 = vmatpush2.bf16.msra.mxu0 %v548
  %658 = vmatprep.subr.bf16.mxu0 0
  %659 = vmatpush2.bf16.msra.mxu0 %v547
  %660 = vmatprep.subr.bf16.mxu0 0
  %661 = vmatpush2.bf16.msra.mxu0 %v546
  %662 = vmatprep.subr.bf16.mxu0 0
  %663 = vmatpush2.bf16.msra.mxu0 %v545
  %664 = vmatprep.subr.bf16.mxu0 0
  %665 = vmatpush2.bf16.msra.mxu0 %v544
  %666 = vmatprep.subr.bf16.mxu0 0
  %667 = vmatpush2.bf16.msra.mxu0 %v543
  %668 = vmatprep.subr.bf16.mxu0 0
  %669 = vmatpush2.bf16.msra.mxu0 %v542
  %670 = vmatprep.mubr.bf16.mxu0 %v505
  %671 = vmatmul.mubr.bf16.gmra.mxu0 %v504
  %v672 = vpop.f32.mrf.mxu0
  %v673 = vadd.f32 %v624, %v672
  %v674 = vpop.f32.mrf.mxu0
  %v675 = vpop.f32.mrf.mxu0
  %v676 = vadd.f32 %v627, %v675
  %v677 = vpop.f32.mrf.mxu0
  %678 = vmatprep.mubr.bf16.mxu0 %v513
  %679 = vmatmul.mubr.bf16.gmra.mxu0 %v512
  %v680 = vpop.f32.mrf.mxu0
  %v681 = vadd.f32 %v632, %v680
  %v682 = vpop.f32.mrf.mxu0
  %v683 = vpop.f32.mrf.mxu0
  %v684 = vadd.f32 %v635, %v683
  %v685 = vpop.f32.mrf.mxu0
  %686 = vdwg.mxu0
  %687 = vmatprep.subr.bf16.mxu0 0
  %688 = vmatpush1.bf16.msra.mxu0 %v557
  %689 = vmatprep.subr.bf16.mxu0 0
  %690 = vmatpush1.bf16.msra.mxu0 %v556
  %691 = vmatprep.subr.bf16.mxu0 0
  %692 = vmatpush1.bf16.msra.mxu0 %v555
  %693 = vmatprep.subr.bf16.mxu0 0
  %694 = vmatpush1.bf16.msra.mxu0 %v554
  %695 = vmatprep.subr.bf16.mxu0 0
  %696 = vmatpush1.bf16.msra.mxu0 %v553
  %697 = vmatprep.subr.bf16.mxu0 0
  %698 = vmatpush1.bf16.msra.mxu0 %v552
  %699 = vmatprep.subr.bf16.mxu0 0
  %700 = vmatpush1.bf16.msra.mxu0 %v551
  %701 = vmatprep.subr.bf16.mxu0 0
  %702 = vmatpush1.bf16.msra.mxu0 %v550
  %703 = vmatprep.subr.bf16.mxu0 0
  %704 = vmatpush2.bf16.msra.mxu0 %v565
  %705 = vmatprep.subr.bf16.mxu0 0
  %706 = vmatpush2.bf16.msra.mxu0 %v564
  %707 = vmatprep.subr.bf16.mxu0 0
  %708 = vmatpush2.bf16.msra.mxu0 %v563
  %709 = vmatprep.subr.bf16.mxu0 0
  %710 = vmatpush2.bf16.msra.mxu0 %v562
  %711 = vmatprep.subr.bf16.mxu0 0
  %712 = vmatpush2.bf16.msra.mxu0 %v561
  %713 = vmatprep.subr.bf16.mxu0 0
  %714 = vmatpush2.bf16.msra.mxu0 %v560
  %715 = vmatprep.subr.bf16.mxu0 0
  %716 = vmatpush2.bf16.msra.mxu0 %v559
  %717 = vmatprep.subr.bf16.mxu0 0
  %718 = vmatpush2.bf16.msra.mxu0 %v558
  %719 = vmatprep.mubr.bf16.mxu0 %v507
  %720 = vmatmul.mubr.bf16.gmra.mxu0 %v506
  %v721 = vpop.f32.mrf.mxu0
  %v722 = vadd.f32 %v673, %v721
  %v723 = vpop.f32.mrf.mxu0
  %v724 = vpop.f32.mrf.mxu0
  %v725 = vadd.f32 %v676, %v724
  %v726 = vpop.f32.mrf.mxu0
  %727 = vmatprep.mubr.bf16.mxu0 %v515
  %728 = vmatmul.mubr.bf16.gmra.mxu0 %v514
  %v729 = vpop.f32.mrf.mxu0
  %v730 = vadd.f32 %v681, %v729
  %v731 = vpop.f32.mrf.mxu0
  %v732 = vpop.f32.mrf.mxu0
  %v733 = vadd.f32 %v684, %v732
  %v734 = vpop.f32.mrf.mxu0
  %735 = vdwg.mxu0
  %736 = vmatprep.subr.bf16.mxu0 0
  %737 = vmatpush1.bf16.msra.mxu0 %v573
  %738 = vmatprep.subr.bf16.mxu0 0
  %739 = vmatpush1.bf16.msra.mxu0 %v572
  %740 = vmatprep.subr.bf16.mxu0 0
  %741 = vmatpush1.bf16.msra.mxu0 %v571
  %742 = vmatprep.subr.bf16.mxu0 0
  %743 = vmatpush1.bf16.msra.mxu0 %v570
  %744 = vmatprep.subr.bf16.mxu0 0
  %745 = vmatpush1.bf16.msra.mxu0 %v569
  %746 = vmatprep.subr.bf16.mxu0 0
  %747 = vmatpush1.bf16.msra.mxu0 %v568
  %748 = vmatprep.subr.bf16.mxu0 0
  %749 = vmatpush1.bf16.msra.mxu0 %v567
  %750 = vmatprep.subr.bf16.mxu0 0
  %751 = vmatpush1.bf16.msra.mxu0 %v566
  %752 = vmatprep.subr.bf16.mxu0 0
  %753 = vmatpush2.bf16.msra.mxu0 %v581
  %754 = vmatprep.subr.bf16.mxu0 0
  %755 = vmatpush2.bf16.msra.mxu0 %v580
  %756 = vmatprep.subr.bf16.mxu0 0
  %757 = vmatpush2.bf16.msra.mxu0 %v579
  %758 = vmatprep.subr.bf16.mxu0 0
  %759 = vmatpush2.bf16.msra.mxu0 %v578
  %760 = vmatprep.subr.bf16.mxu0 0
  %761 = vmatpush2.bf16.msra.mxu0 %v577
  %762 = vmatprep.subr.bf16.mxu0 0
  %763 = vmatpush2.bf16.msra.mxu0 %v576
  %764 = vmatprep.subr.bf16.mxu0 0
  %765 = vmatpush2.bf16.msra.mxu0 %v575
  %766 = vmatprep.subr.bf16.mxu0 0
  %767 = vmatpush2.bf16.msra.mxu0 %v574
  %768 = vmatprep.mubr.bf16.mxu0 %v509
  %769 = vmatmul.mubr.bf16.gmra.mxu0 %v508
  %v770 = vpop.f32.mrf.mxu0
  %v771 = vadd.f32 %v722, %v770
  %v772 = vpop.f32.mrf.mxu0
  %v773 = vpop.f32.mrf.mxu0
  %v774 = vadd.f32 %v725, %v773
  %v775 = vpop.f32.mrf.mxu0
  %776 = vmatprep.mubr.bf16.mxu0 %v517
  %777 = vmatmul.mubr.bf16.gmra.mxu0 %v516
  %v778 = vpop.f32.mrf.mxu0
  %v779 = vadd.f32 %v730, %v778
  %v780 = vpop.f32.mrf.mxu0
  %v781 = vpop.f32.mrf.mxu0
  %v782 = vadd.f32 %v733, %v781
  %v783 = vpop.f32.mrf.mxu0
  %784 = vdwg.mxu0
  %v785 = vadd.f32 %v27, %v771
  %v786 = vadd.f32 %v28, %v774
  %v787 = vadd.f32 %v29, %v779
  %v788 = vadd.f32 %v30, %v782
  %v789 = vld [vmem:[%s5] sm:$0x1]
  %v790 = vld [vmem:[%s6] sm:$0x1]
  %v791 = vsel %vm123, %v785, 0.0
  %792 = vadd.xlane.f32.xlu0 %v791
  %v793 = vpop.xlane.xlu0 %792
  %v794 = vsel %vm123, %v786, 0.0
  %795 = vadd.xlane.f32.xlu0 %v794
  %v796 = vpop.xlane.xlu0 %795
  %v797 = vsel %vm123, %v787, 0.0
  %798 = vadd.xlane.f32.xlu0 %v797
  %v799 = vpop.xlane.xlu0 %798
  %v800 = vsel %vm123, %v788, 0.0
  %801 = vadd.xlane.f32.xlu0 %v800
  %v802 = vpop.xlane.xlu0 %801
  %v803 = vrcp.pop 32.0
  %v804 = vmul.f32 %v793, %v803
  %v805 = vmul.f32 %v796, %v803
  %v806 = vmul.f32 %v799, %v803
  %v807 = vmul.f32 %v802, %v803
  %v808 = vsub.f32 %v785, %v804
  %v809 = vsub.f32 %v786, %v805
  %v810 = vsub.f32 %v787, %v806
  %v811 = vsub.f32 %v788, %v807
  %v812 = vmul.f32 %v808, %v808
  %v813 = vmul.f32 %v809, %v809
  %v814 = vmul.f32 %v810, %v810
  %v815 = vmul.f32 %v811, %v811
  %v816 = vsel %vm123, %v812, 0.0
  %817 = vadd.xlane.f32.xlu0 %v816
  %v818 = vpop.xlane.xlu0 %817
  %v819 = vsel %vm123, %v813, 0.0
  %820 = vadd.xlane.f32.xlu0 %v819
  %v821 = vpop.xlane.xlu0 %820
  %v822 = vsel %vm123, %v814, 0.0
  %823 = vadd.xlane.f32.xlu0 %v822
  %v824 = vpop.xlane.xlu0 %823
  %v825 = vsel %vm123, %v815, 0.0
  %826 = vadd.xlane.f32.xlu0 %v825
  %v827 = vpop.xlane.xlu0 %826
  %v828 = vmul.f32 %v818, %v803
  %v829 = vmul.f32 %v821, %v803
  %v830 = vmul.f32 %v824, %v803
  %v831 = vmul.f32 %v827, %v803
  %v832 = vadd.f32 %v828, 1e-05
  %v833 = vadd.f32 %v829, 1e-05
  %v834 = vadd.f32 %v830, 1e-05
  %v835 = vadd.f32 %v831, 1e-05
  %v836 = vrsqrt.pop %v832
  %v837 = vrsqrt.pop %v833
  %v838 = vrsqrt.pop %v834
  %v839 = vrsqrt.pop %v835
  %v840 = vmul.f32 %v808, %v836
  %v841 = vmul.f32 %v809, %v837
  %v842 = vmul.f32 %v810, %v838
  %v843 = vmul.f32 %v811, %v839
  %v845 = vlaneseq
  %v846 = vshrl.u32 %v845, 7
  %v847 = vsub.s32 0, %v846
  %v848 = vrot.slane %v789, %v847
  %v850 = vmul.f32 %v840, %v848
  %v851 = vmul.f32 %v841, %v848
  %v852 = vmul.f32 %v842, %v848
  %v853 = vmul.f32 %v843, %v848
  %v855 = vlaneseq
  %v856 = vshrl.u32 %v855, 7
  %v857 = vsub.s32 0, %v856
  %v858 = vrot.slane %v790, %v857
  %v860 = vadd.f32 %v850, %v858
  %v861 = vadd.f32 %v851, %v858
  %v862 = vadd.f32 %v852, %v858
  %v863 = vadd.f32 %v853, %v858
  %864 = vst.msk [vmem:[%s7] sm:$0xff] %vm123, %v860
  %865 = vst.msk [vmem:[%s7 + $0x8] sm:$0xff] %vm123, %v861
  %866 = vst.msk [vmem:[%s7 + $0x10] sm:$0xff] %vm123, %v862
  %867 = vst.msk [vmem:[%s7 + $0x18] sm:$0xff] %vm123, %v863
  // Predicated region
  $region30: #{mvit_forward.13} parent=0 // pred_check
    _
  $region31: #{mvit_forward.13} parent=0 // pred_check_branch
    %869 = sbr.rel (0) target = $region33
  $region32: #{mvit_forward.13} parent=0 // pred_region
    _
  $region33: #{mvit_forward.13} parent=0 // pred_fallthru
    _
  // Predicated region
  $region34: #{mvit_forward.13} parent=0 // pred_check
    _
  $region35: #{mvit_forward.13} parent=0 // pred_check_branch
    %871 = sbr.rel (0) target = $region37
  $region36: #{mvit_forward.13} parent=0 // pred_region
    _
  $region37: #{mvit_forward.13} parent=0 // pred_fallthru
    _

// kernel: mvit_forward.12
$region0: #{mvit_forward.12}
  #allocation0 [shape = 'u32[]', space=smem, size = 0x4, offset = 0x4, fixed_abs, tag = 'smem constant byte address 0x4 - core index']
  #allocation1 [shape = 'u32[144,128]{1,0:T(1,128)}', space=vmem, size = 0x12000, scoped, tag = 'internal scratch']
  %s0 = inlined_call_operand.vmem [shape: f32[2,16,32], index: 0, kind: input, shape index: {}]
  %s1 = inlined_call_operand.vmem [shape: f32[32,96], index: 1, kind: input, shape index: {}]
  %s2 = inlined_call_operand.vmem [shape: f32[1,96], index: 2, kind: input, shape index: {}]
  %s3 = inlined_call_operand.vmem [shape: f32[32,32], index: 3, kind: input, shape index: {}]
  %s4 = inlined_call_operand.vmem [shape: f32[1,32], index: 4, kind: input, shape index: {}]
  %s5 = inlined_call_operand.vmem [shape: f32[1,32], index: 5, kind: input, shape index: {}]
  %s6 = inlined_call_operand.vmem [shape: f32[1,32], index: 6, kind: input, shape index: {}]
  %s7 = inlined_call_operand.vmem [shape: f32[2,16,32], index: 7, kind: output, shape index: {}]
  %s8 = sld [smem:[#allocation0]]
  $region61: #{mvit_forward.12} parent=0
    _
  %s10 = ssub.s32 1, %s8
  %s11 = scalar_select 0, %s10, %s8
  loop: start=0, step=1, limit=4
  $region2: #{mvit_forward.12} parent=0 // loop_pre_header
    _
  $region3: #{mvit_forward.12} parent=0 // loop_header
    %s13 = sphi 0, %s17
    %p14 = scmp.ge.s32.totalorder %s13, 4
    %s23 = sphi 0, %s25
    %s26 = sphi 0, %s23
    %s27 = sphi 0, %s26
    %s43 = sphi 0, %s27
    %s47 = sphi 0, %s47
    %s49 = sphi 0, %s47
    %s50 = sphi 0, %s49
    %s64 = sphi 0, %s50
    %s68 = sphi 0, %s68
    %s70 = sphi 0, %s68
    %s71 = sphi 0, %s70
    %s85 = sphi 0, %s71
    %s89 = sphi 0, %s89
    %s91 = sphi 0, %s89
    %s92 = sphi 0, %s91
    %s106 = sphi 0, %s92
    %s110 = sphi 0, %s110
    %s112 = sphi 0, %s110
    %s113 = sphi 0, %s112
    %s127 = sphi 0, %s113
    %s131 = sphi 0, %s131
    %s133 = sphi 0, %s131
    %s134 = sphi 0, %s133
    %s148 = sphi 0, %s134
    %s152 = sphi 0, %s152
    %s154 = sphi 0, %s152
    %s155 = sphi 0, %s154
    %s169 = sphi 0, %s155
    %s175 = sphi 0, %s177
    %s178 = sphi 0, %s175
    %s179 = sphi 0, %s178
    %s195 = sphi 0, %s179
  $region4: #{mvit_forward.12} parent=0 // loop_header_branch
    %16 = sbr.rel (%p14) target = $region8
  $region5: #{mvit_forward.12} parent=0 // loop_body
    %s18 = ssub.s32 %s13, 1
    %s19 = ssub.s32 %s13, 2
    %s20 = sadd.s32 %s13, 1
    %s21 = ssub.s32 %s13, %s20
    %p22 = scmp.eq.s32.totalorder %s21, 0
    %s24 = sadd.s32 %s23, 1
    %s25 = scalar_select %p22, %s23, %s24
    %p28 = pneg %p22
    %p29 = scmp.eq.s32.totalorder %s13, 1
    %p30 = por %p28, %p29
    %p31 = scmp.ne.s32.totalorder %s23, %s26
    %p32 = scmp.eq.s32.totalorder %s13, 0
    %p33 = por %p31, %p32
    %p34 = scmp.ne.s32.totalorder %s23, %s26
    %p35 = scmp.eq.s32.totalorder %s18, 1
    %p36 = por %p34, %p35
    %p37 = scmp.ne.s32.totalorder %s26, %s27
    %p38 = scmp.eq.s32.totalorder %s18, 0
    %p39 = por %p37, %p38
    %p40 = scmp.ne.s32.totalorder %s26, %s27
    %p41 = scmp.eq.s32.totalorder %s19, 1
    %p42 = por %p40, %p41
    %p44 = scmp.ne.s32.totalorder %s27, %s43
    %p45 = scmp.eq.s32.totalorder %s19, 0
    %p46 = por %p44, %p45
    %s48 = sadd.s32 %s47, 1
    %p51 = scmp.eq.s32.totalorder %s13, 1
    %p52 = scmp.ne.s32.totalorder %s47, %s49
    %p53 = scmp.eq.s32.totalorder %s13, 0
    %p54 = por %p52, %p53
    %p55 = scmp.ne.s32.totalorder %s47, %s49
    %p56 = scmp.eq.s32.totalorder %s18, 1
    %p57 = por %p55, %p56
    %p58 = scmp.ne.s32.totalorder %s49, %s50
    %p59 = scmp.eq.s32.totalorder %s18, 0
    %p60 = por %p58, %p59
    %p61 = scmp.ne.s32.totalorder %s49, %s50
    %p62 = scmp.eq.s32.totalorder %s19, 1
    %p63 = por %p61, %p62
    %p65 = scmp.ne.s32.totalorder %s50, %s64
    %p66 = scmp.eq.s32.totalorder %s19, 0
    %p67 = por %p65, %p66
    %s69 = sadd.s32 %s68, 1
    %p72 = scmp.eq.s32.totalorder %s13, 1
    %p73 = scmp.ne.s32.totalorder %s68, %s70
    %p74 = scmp.eq.s32.totalorder %s13, 0
    %p75 = por %p73, %p74
    %p76 = scmp.ne.s32.totalorder %s68, %s70
    %p77 = scmp.eq.s32.totalorder %s18, 1
    %p78 = por %p76, %p77
    %p79 = scmp.ne.s32.totalorder %s70, %s71
    %p80 = scmp.eq.s32.totalorder %s18, 0
    %p81 = por %p79, %p80
    %p82 = scmp.ne.s32.totalorder %s70, %s71
    %p83 = scmp.eq.s32.totalorder %s19, 1
    %p84 = por %p82, %p83
    %p86 = scmp.ne.s32.totalorder %s71, %s85
    %p87 = scmp.eq.s32.totalorder %s19, 0
    %p88 = por %p86, %p87
    %s90 = sadd.s32 %s89, 1
    %p93 = scmp.eq.s32.totalorder %s13, 1
    %p94 = scmp.ne.s32.totalorder %s89, %s91
    %p95 = scmp.eq.s32.totalorder %s13, 0
    %p96 = por %p94, %p95
    %p97 = scmp.ne.s32.totalorder %s89, %s91
    %p98 = scmp.eq.s32.totalorder %s18, 1
    %p99 = por %p97, %p98
    %p100 = scmp.ne.s32.totalorder %s91, %s92
    %p101 = scmp.eq.s32.totalorder %s18, 0
    %p102 = por %p100, %p101
    %p103 = scmp.ne.s32.totalorder %s91, %s92
    %p104 = scmp.eq.s32.totalorder %s19, 1
    %p105 = por %p103, %p104
    %p107 = scmp.ne.s32.totalorder %s92, %s106
    %p108 = scmp.eq.s32.totalorder %s19, 0
    %p109 = por %p107, %p108
    %s111 = sadd.s32 %s110, 1
    %p114 = scmp.eq.s32.totalorder %s13, 1
    %p115 = scmp.ne.s32.totalorder %s110, %s112
    %p116 = scmp.eq.s32.totalorder %s13, 0
    %p117 = por %p115, %p116
    %p118 = scmp.ne.s32.totalorder %s110, %s112
    %p119 = scmp.eq.s32.totalorder %s18, 1
    %p120 = por %p118, %p119
    %p121 = scmp.ne.s32.totalorder %s112, %s113
    %p122 = scmp.eq.s32.totalorder %s18, 0
    %p123 = por %p121, %p122
    %p124 = scmp.ne.s32.totalorder %s112, %s113
    %p125 = scmp.eq.s32.totalorder %s19, 1
    %p126 = por %p124, %p125
    %p128 = scmp.ne.s32.totalorder %s113, %s127
    %p129 = scmp.eq.s32.totalorder %s19, 0
    %p130 = por %p128, %p129
    %s132 = sadd.s32 %s131, 1
    %p135 = scmp.eq.s32.totalorder %s13, 1
    %p136 = scmp.ne.s32.totalorder %s131, %s133
    %p137 = scmp.eq.s32.totalorder %s13, 0
    %p138 = por %p136, %p137
    %p139 = scmp.ne.s32.totalorder %s131, %s133
    %p140 = scmp.eq.s32.totalorder %s18, 1
    %p141 = por %p139, %p140
    %p142 = scmp.ne.s32.totalorder %s133, %s134
    %p143 = scmp.eq.s32.totalorder %s18, 0
    %p144 = por %p142, %p143
    %p145 = scmp.ne.s32.totalorder %s133, %s134
    %p146 = scmp.eq.s32.totalorder %s19, 1
    %p147 = por %p145, %p146
    %p149 = scmp.ne.s32.totalorder %s134, %s148
    %p150 = scmp.eq.s32.totalorder %s19, 0
    %p151 = por %p149, %p150
    %s153 = sadd.s32 %s152, 1
    %p156 = scmp.eq.s32.totalorder %s13, 1
    %p157 = scmp.ne.s32.totalorder %s152, %s154
    %p158 = scmp.eq.s32.totalorder %s13, 0
    %p159 = por %p157, %p158
    %p160 = scmp.ne.s32.totalorder %s152, %s154
    %p161 = scmp.eq.s32.totalorder %s18, 1
    %p162 = por %p160, %p161
    %p163 = scmp.ne.s32.totalorder %s154, %s155
    %p164 = scmp.eq.s32.totalorder %s18, 0
    %p165 = por %p163, %p164
    %p166 = scmp.ne.s32.totalorder %s154, %s155
    %p167 = scmp.eq.s32.totalorder %s19, 1
    %p168 = por %p166, %p167
    %p170 = scmp.ne.s32.totalorder %s155, %s169
    %p171 = scmp.eq.s32.totalorder %s19, 0
    %p172 = por %p170, %p171
    %s173 = ssub.s32 %s13, %s20
    %p174 = scmp.eq.s32.totalorder %s173, 0
    %s176 = sadd.s32 %s175, 1
    %s177 = scalar_select %p174, %s175, %s176
    %p180 = pneg %p174
    %p181 = scmp.eq.s32.totalorder %s13, 1
    %p182 = por %p180, %p181
    %p183 = scmp.ne.s32.totalorder %s175, %s178
    %p184 = scmp.eq.s32.totalorder %s13, 0
    %p185 = por %p183, %p184
    %p186 = scmp.ne.s32.totalorder %s175, %s178
    %p187 = scmp.eq.s32.totalorder %s18, 1
    %p188 = por %p186, %p187
    %p189 = scmp.ne.s32.totalorder %s178, %s179
    %p190 = scmp.eq.s32.totalorder %s18, 0
    %p191 = por %p189, %p190
    %p192 = scmp.ne.s32.totalorder %s178, %s179
    %p193 = scmp.eq.s32.totalorder %s19, 1
    %p194 = por %p192, %p193
    %p196 = scmp.ne.s32.totalorder %s179, %s195
    %p197 = scmp.eq.s32.totalorder %s19, 0
    %p198 = por %p196, %p197
    %p199 = scmp.le.s32.totalorder 1, %s13
    %p200 = scmp.lt.s32.totalorder %s13, 3
    %p201 = pnand %p199, %p200
    %p202 = pneg %p201
    // Predicated region
    $region9: #{mvit_forward.12} parent=5 // pred_check
      _
    $region10: #{mvit_forward.12} parent=5 // pred_check_branch
      %204 = sbr.rel (%p201) target = $region12
    $region11: #{mvit_forward.12} parent=5 // pred_region
      %s205 = ssub.s32 %s13, 1
      // Predicated region
      $region13: #{mvit_forward.12} parent=11 // pred_check
        %p206 = pneg %p60
      $region14: #{mvit_forward.12} parent=11 // pred_check_branch
        %208 = sbr.rel (%p206) target = $region16
      $region15: #{mvit_forward.12} parent=11 // pred_region
        _
      $region16: #{mvit_forward.12} parent=11 // pred_fallthru
        _
      // Predicated region
      $region17: #{mvit_forward.12} parent=11 // pred_check
        %p209 = pneg %p81
      $region18: #{mvit_forward.12} parent=11 // pred_check_branch
        %211 = sbr.rel (%p209) target = $region20
      $region19: #{mvit_forward.12} parent=11 // pred_region
        _
      $region20: #{mvit_forward.12} parent=11 // pred_fallthru
        _
      // Predicated region
      $region21: #{mvit_forward.12} parent=11 // pred_check
        %p212 = pneg %p102
      $region22: #{mvit_forward.12} parent=11 // pred_check_branch
        %214 = sbr.rel (%p212) target = $region24
      $region23: #{mvit_forward.12} parent=11 // pred_region
        _
      $region24: #{mvit_forward.12} parent=11 // pred_fallthru
        _
      // Predicated region
      $region25: #{mvit_forward.12} parent=11 // pred_check
        %p215 = pneg %p123
      $region26: #{mvit_forward.12} parent=11 // pred_check_branch
        %217 = sbr.rel (%p215) target = $region28
      $region27: #{mvit_forward.12} parent=11 // pred_region
        _
      $region28: #{mvit_forward.12} parent=11 // pred_fallthru
        _
      // Predicated region
      $region29: #{mvit_forward.12} parent=11 // pred_check
        %p218 = pneg %p144
      $region30: #{mvit_forward.12} parent=11 // pred_check_branch
        %220 = sbr.rel (%p218) target = $region32
      $region31: #{mvit_forward.12} parent=11 // pred_region
        _
      $region32: #{mvit_forward.12} parent=11 // pred_fallthru
        _
      // Predicated region
      $region33: #{mvit_forward.12} parent=11 // pred_check
        %p221 = pneg %p165
      $region34: #{mvit_forward.12} parent=11 // pred_check_branch
        %223 = sbr.rel (%p221) target = $region36
      $region35: #{mvit_forward.12} parent=11 // pred_region
        _
      $region36: #{mvit_forward.12} parent=11 // pred_fallthru
        _
    $region12: #{mvit_forward.12} parent=5 // pred_fallthru
      _
    %p224 = scmp.lt.s32.totalorder %s13, 2
    // Predicated region
    $region37: #{mvit_forward.12} parent=5 // pred_check
      %p225 = pneg %p224
    $region38: #{mvit_forward.12} parent=5 // pred_check_branch
      %227 = sbr.rel (%p225) target = $region40
    $region39: #{mvit_forward.12} parent=5 // pred_region
      // Predicated region
      $region41: #{mvit_forward.12} parent=39 // pred_check
        %p228 = pneg %p33
      $region42: #{mvit_forward.12} parent=39 // pred_check_branch
        %230 = sbr.rel (%p228) target = $region44
      $region43: #{mvit_forward.12} parent=39 // pred_region
        %p231 = scmp.lt.s32.totalorder %s13, 1
        %s232 = scalar_select %p231, %s13, 1
        %s233 = smul.addr %s232, 2
        %s234 = smul.addr %s233, 8
        %s235 = scalar_lea.vmem %s0, %s234
      $region44: #{mvit_forward.12} parent=39 // pred_fallthru
        _
    $region40: #{mvit_forward.12} parent=5 // pred_fallthru
      _
    %p236 = scmp.le.s32.totalorder 1, %s13
    %p237 = scmp.lt.s32.totalorder %s13, 3
    %p238 = pnand %p236, %p237
    %p239 = pneg %p238
    // Predicated region
    $region45: #{mvit_forward.12} parent=5 // pred_check
      _
    $region46: #{mvit_forward.12} parent=5 // pred_check_branch
      %241 = sbr.rel (%p238) target = $region48
    $region47: #{mvit_forward.12} parent=5 // pred_region
      %s242 = ssub.s32 %s13, 1
      %p243 = scmp.lt.s32.totalorder %s18, 1
      %s244 = scalar_select %p243, %s18, 1
      %s245 = smul.addr %s244, 2
      %s246 = smul.addr %s245, 8
      %s247 = scalar_lea.vmem %s0, %s246
      %p248 = pneg %p39
      %p249 = pneg %p36
      %p250 = pneg %p60
      %p251 = pneg %p57
      %p252 = pneg %p81
      %p253 = pneg %p78
      %p254 = pneg %p102
      %p255 = pneg %p99
      %p256 = pneg %p123
      %p257 = pneg %p120
      %p258 = pneg %p144
      %p259 = pneg %p141
      %p260 = pneg %p165
      %p261 = pneg %p162
      %p262 = pneg %p191
      %p263 = pneg %p188
      %p264 = scmp.lt.s32.totalorder %s18, 1
      %s265 = scalar_select %p264, %s18, 1
      %s266 = smul.addr %s265, 2
      %s267 = smul.addr %s266, 8
      %s268 = scalar_lea.vmem %s7, %s267
      %p269 = scmp.lt.s32.totalorder %s18, 1
      %s270 = scalar_select %p269, %s18, 1
      %s271 = smul.addr %s270, 2
      %s272 = smul.addr %s271, 8
      %s273 = scalar_lea.vmem %s0, %s272
      %p274 = scmp.lt.s32.totalorder %s18, 1
      %s275 = scalar_select %p274, %s18, 1
      %s276 = smul.addr %s275, 2
      %s277 = smul.addr %s276, 8
      %s278 = scalar_lea.vmem %s7, %s277
      %v280 = vld [vmem:[%s273] sm:$0xff]
      %v281 = vld [vmem:[%s273 + $0x8] sm:$0xff]
      %v282 = vld [vmem:[%s1] sm:$0xff]
      %v283 = vld [vmem:[%s1 + $0x8] sm:$0xff]
      %v284 = vld [vmem:[%s1 + $0x10] sm:$0xff]
      %v285 = vld [vmem:[%s1 + $0x18] sm:$0xff]
      %v286 = vpack.c.bf16 %v281, %v280
      %v287 = vpack.c.bf16 %v283, %v282
      %v288 = vpack.c.bf16 %v285, %v284
      %v289 = vld [vmem:[%s2] sm:$0x1]
      %v291 = vlaneseq
      %v292 = vshrl.u32 %v291, 7
      %v293 = vsub.s32 0, %v292
      %v294 = vrot.slane %v289, %v293
      %vm296 = vcmask 261120
      %v298 = vsel %vm296, %v286, 0
      %300 = vmatprep.subr.bf16.mxu0 0
      %301 = vmatpush1.bf16.msra.mxu0 0
      %302 = vmatprep.subr.bf16.mxu0 0
      %303 = vmatpush1.bf16.msra.mxu0 0
      %304 = vmatprep.subr.bf16.mxu0 0
      %305 = vmatpush1.bf16.msra.mxu0 0
      %306 = vmatprep.subr.bf16.mxu0 0
      %307 = vmatpush1.bf16.msra.mxu0 0
      %308 = vmatprep.subr.bf16.mxu0 0
      %309 = vmatpush1.bf16.msra.mxu0 0
      %310 = vmatprep.subr.bf16.mxu0 0
      %311 = vmatpush1.bf16.msra.mxu0 0
      %312 = vmatprep.subr.bf16.mxu0 0
      %313 = vmatpush1.bf16.msra.mxu0 %v288
      %314 = vmatprep.subr.bf16.mxu0 0
      %315 = vmatpush1.bf16.msra.mxu0 %v287
      %316 = vmatprep.subr.bf16.mxu0 0
      %317 = vmatpush2.bf16.msra.mxu0 0
      %318 = vmatprep.subr.bf16.mxu0 0
      %319 = vmatpush2.bf16.msra.mxu0 0
      %320 = vmatprep.subr.bf16.mxu0 0
      %321 = vmatpush2.bf16.msra.mxu0 0
      %322 = vmatprep.subr.bf16.mxu0 0
      %323 = vmatpush2.bf16.msra.mxu0 0
      %324 = vmatprep.subr.bf16.mxu0 0
      %325 = vmatpush2.bf16.msra.mxu0 0
      %326 = vmatprep.subr.bf16.mxu0 0
      %327 = vmatpush2.bf16.msra.mxu0 0
      %328 = vmatprep.subr.bf16.mxu0 0
      %329 = vmatpush2.bf16.msra.mxu0 0
      %330 = vmatprep.subr.bf16.mxu0 0
      %331 = vmatpush2.bf16.msra.mxu0 0
      %332 = vmatprep.mubr.bf16.mxu0 0
      %333 = vmatmul.mubr.bf16.gmra.mxu0 %v298
      %v334 = vpop.f32.mrf.mxu0
      %v335 = vadd.f32 %v294, %v334
      %v336 = vpop.f32.mrf.mxu0
      %v337 = vpop.f32.mrf.mxu0
      %v338 = vadd.f32 %v294, %v337
      %v339 = vpop.f32.mrf.mxu0
      %340 = vdwg.mxu0
      %v341 = vpack.c.bf16 %v338, %v335
      %343 = vrot.lane.b32.xlu0 %v341, 96
      %v344 = vpop.permute.xlu0 %343
      %vm345 = vcmask 64512
      %v347 = vsel %vm345, %v341, 0
      %v350 = vsel %vm345, %v344, 0
      %352 = vmatprep.subr.bf16.mxu0 0
      %353 = vmatpush1.bf16.xpose.msra.mxu0 0
      %354 = vmatprep.subr.bf16.mxu0 0
      %355 = vmatpush1.bf16.xpose.msra.mxu0 0
      %356 = vmatprep.subr.bf16.mxu0 0
      %357 = vmatpush1.bf16.xpose.msra.mxu0 0
      %358 = vmatprep.subr.bf16.mxu0 0
      %359 = vmatpush1.bf16.xpose.msra.mxu0 0
      %360 = vmatprep.subr.bf16.mxu0 0
      %361 = vmatpush1.bf16.xpose.msra.mxu0 0
      %362 = vmatprep.subr.bf16.mxu0 0
      %363 = vmatpush1.bf16.xpose.msra.mxu0 0
      %364 = vmatprep.subr.bf16.mxu0 0
      %365 = vmatpush1.bf16.xpose.msra.mxu0 0
      %366 = vmatprep.subr.bf16.mxu0 0
      %367 = vmatpush1.bf16.xpose.msra.mxu0 %v350
      %368 = vmatprep.subr.bf16.mxu0 0
      %369 = vmatpush2.bf16.xpose.msra.mxu0 0
      %370 = vmatprep.subr.bf16.mxu0 0
      %371 = vmatpush2.bf16.xpose.msra.mxu0 0
      %372 = vmatprep.subr.bf16.mxu0 0
      %373 = vmatpush2.bf16.xpose.msra.mxu0 0
      %374 = vmatprep.subr.bf16.mxu0 0
      %375 = vmatpush2.bf16.xpose.msra.mxu0 0
      %376 = vmatprep.subr.bf16.mxu0 0
      %377 = vmatpush2.bf16.xpose.msra.mxu0 0
      %378 = vmatprep.subr.bf16.mxu0 0
      %379 = vmatpush2.bf16.xpose.msra.mxu0 0
      %380 = vmatprep.subr.bf16.mxu0 0
      %381 = vmatpush2.bf16.xpose.msra.mxu0 0
      %382 = vmatprep.subr.bf16.mxu0 0
      %383 = vmatpush2.bf16.xpose.msra.mxu0 0
      %384 = vmatprep.mubr.bf16.mxu0 0
      %385 = vmatmul.mubr.bf16.gmra.mxu0 %v347
      %v386 = vpop.f32.mrf.mxu0
      %v387 = vadd.f32 0.0, %v386
      %v388 = vpop.f32.mrf.mxu0
      %v389 = vpop.f32.mrf.mxu0
      %v390 = vadd.f32 0.0, %v389
      %v391 = vpop.f32.mrf.mxu0
      %392 = vdwg.mxu0
      %v393 = vmul.f32 %v387, 0.35355338
      %v394 = vmul.f32 %v390, 0.35355338
      %vm395 = vcmask 130048
      %v396 = vsel %vm395, %v393, -inf
      %397 = vmax.xlane.f32.xlu0 %v396
      %v398 = vpop.xlane.xlu0 %397
      %v399 = vsel %vm395, %v394, -inf
      %400 = vmax.xlane.f32.xlu0 %v399
      %v401 = vpop.xlane.xlu0 %400
      %v402 = vsub.f32 %v393, %v398
      %v403 = vsub.f32 %v394, %v401
      %v404 = vmul.f32 %v402, 1.442695
      %v405 = vpow.pop %v404
      %v406 = vmul.f32 %v403, 1.442695
      %v407 = vpow.pop %v406
      %v408 = vsel %vm395, %v405, 0.0
      %409 = vadd.xlane.f32.xlu0 %v408
      %v410 = vpop.xlane.xlu0 %409
      %v411 = vsel %vm395, %v407, 0.0
      %412 = vadd.xlane.f32.xlu0 %v411
      %v413 = vpop.xlane.xlu0 %412
      %v414 = vrcp.pop %v410
      %v415 = vrcp.pop %v413
      %v416 = vmul.f32 %v405, %v414
      %v417 = vmul.f32 %v407, %v415
      %v418 = vpack.c.bf16 %v417, %v416
      %419 = vrot.lane.b32.xlu0 %v341, 64
      %v420 = vpop.permute.xlu0 %419
      %v423 = vsel %vm395, %v418, 0
      %425 = vmatprep.subr.bf16.mxu0 0
      %426 = vmatpush1.bf16.msra.mxu0 0
      %427 = vmatprep.subr.bf16.mxu0 0
      %428 = vmatpush1.bf16.msra.mxu0 0
      %429 = vmatprep.subr.bf16.mxu0 0
      %430 = vmatpush1.bf16.msra.mxu0 0
      %431 = vmatprep.subr.bf16.mxu0 0
      %432 = vmatpush1.bf16.msra.mxu0 0
      %433 = vmatprep.subr.bf16.mxu0 0
      %434 = vmatpush1.bf16.msra.mxu0 0
      %435 = vmatprep.subr.bf16.mxu0 0
      %436 = vmatpush1.bf16.msra.mxu0 0
      %437 = vmatprep.subr.bf16.mxu0 0
      %438 = vmatpush1.bf16.msra.mxu0 0
      %439 = vmatprep.subr.bf16.mxu0 0
      %440 = vmatpush1.bf16.msra.mxu0 %v420
      %441 = vmatprep.subr.bf16.mxu0 0
      %442 = vmatpush2.bf16.msra.mxu0 0
      %443 = vmatprep.subr.bf16.mxu0 0
      %444 = vmatpush2.bf16.msra.mxu0 0
      %445 = vmatprep.subr.bf16.mxu0 0
      %446 = vmatpush2.bf16.msra.mxu0 0
      %447 = vmatprep.subr.bf16.mxu0 0
      %448 = vmatpush2.bf16.msra.mxu0 0
      %449 = vmatprep.subr.bf16.mxu0 0
      %450 = vmatpush2.bf16.msra.mxu0 0
      %451 = vmatprep.subr.bf16.mxu0 0
      %452 = vmatpush2.bf16.msra.mxu0 0
      %453 = vmatprep.subr.bf16.mxu0 0
      %454 = vmatpush2.bf16.msra.mxu0 0
      %455 = vmatprep.subr.bf16.mxu0 0
      %456 = vmatpush2.bf16.msra.mxu0 0
      %457 = vmatprep.mubr.bf16.mxu0 0
      %458 = vmatmul.mubr.bf16.gmra.mxu0 %v423
      %v459 = vpop.f32.mrf.mxu0
      %v460 = vadd.f32 0.0, %v459
      %v461 = vpop.f32.mrf.mxu0
      %v462 = vpop.f32.mrf.mxu0
      %v463 = vadd.f32 0.0, %v462
      %v464 = vpop.f32.mrf.mxu0
      %465 = vdwg.mxu0
      %v466 = vld [vmem:[%s3] sm:$0xff]
      %v467 = vpack.c.bf16 %v463, %v460
      %v468 = vpack.c.bf16 %v466, %v466
      %469 = vrot.lane.b32.xlu0 %v341, 120
      %v470 = vpop.permute.xlu0 %469
      %471 = vrot.lane.b32.xlu0 %v341, 88
      %v472 = vpop.permute.xlu0 %471
      %v474 = vsel %vm345, %v470, 0
      %v477 = vsel %vm345, %v472, 0
      %479 = vmatprep.subr.bf16.mxu0 0
      %480 = vmatpush1.bf16.xpose.msra.mxu0 0
      %481 = vmatprep.subr.bf16.mxu0 0
      %482 = vmatpush1.bf16.xpose.msra.mxu0 0
      %483 = vmatprep.subr.bf16.mxu0 0
      %484 = vmatpush1.bf16.xpose.msra.mxu0 0
      %485 = vmatprep.subr.bf16.mxu0 0
      %486 = vmatpush1.bf16.xpose.msra.mxu0 0
      %487 = vmatprep.subr.bf16.mxu0 0
      %488 = vmatpush1.bf16.xpose.msra.mxu0 0
      %489 = vmatprep.subr.bf16.mxu0 0
      %490 = vmatpush1.bf16.xpose.msra.mxu0 0
      %491 = vmatprep.subr.bf16.mxu0 0
      %492 = vmatpush1.bf16.xpose.msra.mxu0 0
      %493 = vmatprep.subr.bf16.mxu0 0
      %494 = vmatpush1.bf16.xpose.msra.mxu0 %v477
      %495 = vmatprep.subr.bf16.mxu0 0
      %496 = vmatpush2.bf16.xpose.msra.mxu0 0
      %497 = vmatprep.subr.bf16.mxu0 0
      %498 = vmatpush2.bf16.xpose.msra.mxu0 0
      %499 = vmatprep.subr.bf16.mxu0 0
      %500 = vmatpush2.bf16.xpose.msra.mxu0 0
      %501 = vmatprep.subr.bf16.mxu0 0
      %502 = vmatpush2.bf16.xpose.msra.mxu0 0
      %503 = vmatprep.subr.bf16.mxu0 0
      %504 = vmatpush2.bf16.xpose.msra.mxu0 0
      %505 = vmatprep.subr.bf16.mxu0 0
      %506 = vmatpush2.bf16.xpose.msra.mxu0 0
      %507 = vmatprep.subr.bf16.mxu0 0
      %508 = vmatpush2.bf16.xpose.msra.mxu0 0
      %509 = vmatprep.subr.bf16.mxu0 0
      %510 = vmatpush2.bf16.xpose.msra.mxu0 0
      %511 = vmatprep.mubr.bf16.mxu0 0
      %512 = vmatmul.mubr.bf16.gmra.mxu0 %v474
      %v513 = vpop.f32.mrf.mxu0
      %v514 = vadd.f32 0.0, %v513
      %v515 = vpop.f32.mrf.mxu0
      %v516 = vpop.f32.mrf.mxu0
      %v517 = vadd.f32 0.0, %v516
      %v518 = vpop.f32.mrf.mxu0
      %519 = vdwg.mxu0
      %v520 = vmul.f32 %v514, 0.35355338
      %v521 = vmul.f32 %v517, 0.35355338
      %v522 = vsel %vm395, %v520, -inf
      %523 = vmax.xlane.f32.xlu0 %v522
      %v524 = vpop.xlane.xlu0 %523
      %v525 = vsel %vm395, %v521, -inf
      %526 = vmax.xlane.f32.xlu0 %v525
      %v527 = vpop.xlane.xlu0 %526
      %v528 = vsub.f32 %v520, %v524
      %v529 = vsub.f32 %v521, %v527
      %v530 = vmul.f32 %v528, 1.442695
      %v531 = vpow.pop %v530
      %v532 = vmul.f32 %v529, 1.442695
      %v533 = vpow.pop %v532
      %v534 = vsel %vm395, %v531, 0.0
      %535 = vadd.xlane.f32.xlu0 %v534
      %v536 = vpop.xlane.xlu0 %535
      %v537 = vsel %vm395, %v533, 0.0
      %538 = vadd.xlane.f32.xlu0 %v537
      %v539 = vpop.xlane.xlu0 %538
      %v540 = vrcp.pop %v536
      %v541 = vrcp.pop %v539
      %v542 = vmul.f32 %v531, %v540
      %v543 = vmul.f32 %v533, %v541
      %v544 = vpack.c.bf16 %v543, %v542
      %545 = vrot.lane.b32.xlu0 %v341, 56
      %v546 = vpop.permute.xlu0 %545
      %v549 = vsel %vm395, %v544, 0
      %551 = vmatprep.subr.bf16.mxu0 0
      %552 = vmatpush1.bf16.msra.mxu0 0
      %553 = vmatprep.subr.bf16.mxu0 0
      %554 = vmatpush1.bf16.msra.mxu0 0
      %555 = vmatprep.subr.bf16.mxu0 0
      %556 = vmatpush1.bf16.msra.mxu0 0
      %557 = vmatprep.subr.bf16.mxu0 0
      %558 = vmatpush1.bf16.msra.mxu0 0
      %559 = vmatprep.subr.bf16.mxu0 0
      %560 = vmatpush1.bf16.msra.mxu0 0
      %561 = vmatprep.subr.bf16.mxu0 0
      %562 = vmatpush1.bf16.msra.mxu0 0
      %563 = vmatprep.subr.bf16.mxu0 0
      %564 = vmatpush1.bf16.msra.mxu0 0
      %565 = vmatprep.subr.bf16.mxu0 0
      %566 = vmatpush1.bf16.msra.mxu0 %v546
      %567 = vmatprep.subr.bf16.mxu0 0
      %568 = vmatpush2.bf16.msra.mxu0 0
      %569 = vmatprep.subr.bf16.mxu0 0
      %570 = vmatpush2.bf16.msra.mxu0 0
      %571 = vmatprep.subr.bf16.mxu0 0
      %572 = vmatpush2.bf16.msra.mxu0 0
      %573 = vmatprep.subr.bf16.mxu0 0
      %574 = vmatpush2.bf16.msra.mxu0 0
      %575 = vmatprep.subr.bf16.mxu0 0
      %576 = vmatpush2.bf16.msra.mxu0 0
      %577 = vmatprep.subr.bf16.mxu0 0
      %578 = vmatpush2.bf16.msra.mxu0 0
      %579 = vmatprep.subr.bf16.mxu0 0
      %580 = vmatpush2.bf16.msra.mxu0 0
      %581 = vmatprep.subr.bf16.mxu0 0
      %582 = vmatpush2.bf16.msra.mxu0 0
      %583 = vmatprep.mubr.bf16.mxu0 0
      %584 = vmatmul.mubr.bf16.gmra.mxu0 %v549
      %v585 = vpop.f32.mrf.mxu0
      %v586 = vadd.f32 0.0, %v585
      %v587 = vpop.f32.mrf.mxu0
      %v588 = vpop.f32.mrf.mxu0
      %v589 = vadd.f32 0.0, %v588
      %v590 = vpop.f32.mrf.mxu0
      %591 = vdwg.mxu0
      %v592 = vld [vmem:[%s3 + $0x8] sm:$0xff]
      %v593 = vpack.c.bf16 %v589, %v586
      %v594 = vpack.c.bf16 %v592, %v592
      %v596 = vsel %vm345, %v593, 0
      %vm598 = vcmask 1043456
      %v600 = vsel %vm598, %v594, 0
      %602 = vmatprep.subr.bf16.mxu0 0
      %603 = vmatpush1.bf16.msra.mxu0 0
      %604 = vmatprep.subr.bf16.mxu0 0
      %605 = vmatpush1.bf16.msra.mxu0 0
      %606 = vmatprep.subr.bf16.mxu0 0
      %607 = vmatpush1.bf16.msra.mxu0 0
      %608 = vmatprep.subr.bf16.mxu0 0
      %609 = vmatpush1.bf16.msra.mxu0 0
      %610 = vmatprep.subr.bf16.mxu0 0
      %611 = vmatpush1.bf16.msra.mxu0 0
      %612 = vmatprep.subr.bf16.mxu0 0
      %613 = vmatpush1.bf16.msra.mxu0 0
      %614 = vmatprep.subr.bf16.mxu0 0
      %615 = vmatpush1.bf16.msra.mxu0 0
      %616 = vmatprep.subr.bf16.mxu0 0
      %617 = vmatpush1.bf16.msra.mxu0 %v600
      %618 = vmatprep.subr.bf16.mxu0 0
      %619 = vmatpush2.bf16.msra.mxu0 0
      %620 = vmatprep.subr.bf16.mxu0 0
      %621 = vmatpush2.bf16.msra.mxu0 0
      %622 = vmatprep.subr.bf16.mxu0 0
      %623 = vmatpush2.bf16.msra.mxu0 0
      %624 = vmatprep.subr.bf16.mxu0 0
      %625 = vmatpush2.bf16.msra.mxu0 0
      %626 = vmatprep.subr.bf16.mxu0 0
      %627 = vmatpush2.bf16.msra.mxu0 0
      %628 = vmatprep.subr.bf16.mxu0 0
      %629 = vmatpush2.bf16.msra.mxu0 0
      %630 = vmatprep.subr.bf16.mxu0 0
      %631 = vmatpush2.bf16.msra.mxu0 0
      %632 = vmatprep.subr.bf16.mxu0 0
      %633 = vmatpush2.bf16.msra.mxu0 0
      %634 = vmatprep.mubr.bf16.mxu0 0
      %635 = vmatmul.mubr.bf16.gmra.mxu0 %v596
      %v636 = vpop.f32.mrf.mxu0
      %v637 = vadd.f32 0.0, %v636
      %v638 = vpop.f32.mrf.mxu0
      %v639 = vpop.f32.mrf.mxu0
      %v640 = vadd.f32 0.0, %v639
      %v641 = vpop.f32.mrf.mxu0
      %642 = vdwg.mxu0
      %v644 = vsel %vm345, %v467, 0
      %v647 = vsel %vm598, %v468, 0
      %649 = vmatprep.subr.bf16.mxu0 0
      %650 = vmatpush1.bf16.msra.mxu0 0
      %651 = vmatprep.subr.bf16.mxu0 0
      %652 = vmatpush1.bf16.msra.mxu0 0
      %653 = vmatprep.subr.bf16.mxu0 0
      %654 = vmatpush1.bf16.msra.mxu0 0
      %655 = vmatprep.subr.bf16.mxu0 0
      %656 = vmatpush1.bf16.msra.mxu0 0
      %657 = vmatprep.subr.bf16.mxu0 0
      %658 = vmatpush1.bf16.msra.mxu0 0
      %659 = vmatprep.subr.bf16.mxu0 0
      %660 = vmatpush1.bf16.msra.mxu0 0
      %661 = vmatprep.subr.bf16.mxu0 0
      %662 = vmatpush1.bf16.msra.mxu0 0
      %663 = vmatprep.subr.bf16.mxu0 0
      %664 = vmatpush1.bf16.msra.mxu0 %v647
      %665 = vmatprep.subr.bf16.mxu0 0
      %666 = vmatpush2.bf16.msra.mxu0 0
      %667 = vmatprep.subr.bf16.mxu0 0
      %668 = vmatpush2.bf16.msra.mxu0 0
      %669 = vmatprep.subr.bf16.mxu0 0
      %670 = vmatpush2.bf16.msra.mxu0 0
      %671 = vmatprep.subr.bf16.mxu0 0
      %672 = vmatpush2.bf16.msra.mxu0 0
      %673 = vmatprep.subr.bf16.mxu0 0
      %674 = vmatpush2.bf16.msra.mxu0 0
      %675 = vmatprep.subr.bf16.mxu0 0
      %676 = vmatpush2.bf16.msra.mxu0 0
      %677 = vmatprep.subr.bf16.mxu0 0
      %678 = vmatpush2.bf16.msra.mxu0 0
      %679 = vmatprep.subr.bf16.mxu0 0
      %680 = vmatpush2.bf16.msra.mxu0 0
      %681 = vmatprep.mubr.bf16.mxu0 0
      %682 = vmatmul.mubr.bf16.gmra.mxu0 %v644
      %v683 = vpop.f32.mrf.mxu0
      %v684 = vadd.f32 %v637, %v683
      %v685 = vpop.f32.mrf.mxu0
      %v686 = vpop.f32.mrf.mxu0
      %v687 = vadd.f32 %v640, %v686
      %v688 = vpop.f32.mrf.mxu0
      %689 = vdwg.mxu0
      %690 = vrot.lane.b32.xlu0 %v341, 112
      %v691 = vpop.permute.xlu0 %690
      %692 = vrot.lane.b32.xlu0 %v341, 80
      %v693 = vpop.permute.xlu0 %692
      %v695 = vsel %vm345, %v691, 0
      %v698 = vsel %vm345, %v693, 0
      %700 = vmatprep.subr.bf16.mxu0 0
      %701 = vmatpush1.bf16.xpose.msra.mxu0 0
      %702 = vmatprep.subr.bf16.mxu0 0
      %703 = vmatpush1.bf16.xpose.msra.mxu0 0
      %704 = vmatprep.subr.bf16.mxu0 0
      %705 = vmatpush1.bf16.xpose.msra.mxu0 0
      %706 = vmatprep.subr.bf16.mxu0 0
      %707 = vmatpush1.bf16.xpose.msra.mxu0 0
      %708 = vmatprep.subr.bf16.mxu0 0
      %709 = vmatpush1.bf16.xpose.msra.mxu0 0
      %710 = vmatprep.subr.bf16.mxu0 0
      %711 = vmatpush1.bf16.xpose.msra.mxu0 0
      %712 = vmatprep.subr.bf16.mxu0 0
      %713 = vmatpush1.bf16.xpose.msra.mxu0 0
      %714 = vmatprep.subr.bf16.mxu0 0
      %715 = vmatpush1.bf16.xpose.msra.mxu0 %v698
      %716 = vmatprep.subr.bf16.mxu0 0
      %717 = vmatpush2.bf16.xpose.msra.mxu0 0
      %718 = vmatprep.subr.bf16.mxu0 0
      %719 = vmatpush2.bf16.xpose.msra.mxu0 0
      %720 = vmatprep.subr.bf16.mxu0 0
      %721 = vmatpush2.bf16.xpose.msra.mxu0 0
      %722 = vmatprep.subr.bf16.mxu0 0
      %723 = vmatpush2.bf16.xpose.msra.mxu0 0
      %724 = vmatprep.subr.bf16.mxu0 0
      %725 = vmatpush2.bf16.xpose.msra.mxu0 0
      %726 = vmatprep.subr.bf16.mxu0 0
      %727 = vmatpush2.bf16.xpose.msra.mxu0 0
      %728 = vmatprep.subr.bf16.mxu0 0
      %729 = vmatpush2.bf16.xpose.msra.mxu0 0
      %730 = vmatprep.subr.bf16.mxu0 0
      %731 = vmatpush2.bf16.xpose.msra.mxu0 0
      %732 = vmatprep.mubr.bf16.mxu0 0
      %733 = vmatmul.mubr.bf16.gmra.mxu0 %v695
      %v734 = vpop.f32.mrf.mxu0
      %v735 = vadd.f32 0.0, %v734
      %v736 = vpop.f32.mrf.mxu0
      %v737 = vpop.f32.mrf.mxu0
      %v738 = vadd.f32 0.0, %v737
      %v739 = vpop.f32.mrf.mxu0
      %740 = vdwg.mxu0
      %v741 = vmul.f32 %v735, 0.35355338
      %v742 = vmul.f32 %v738, 0.35355338
      %v743 = vsel %vm395, %v741, -inf
      %744 = vmax.xlane.f32.xlu0 %v743
      %v745 = vpop.xlane.xlu0 %744
      %v746 = vsel %vm395, %v742, -inf
      %747 = vmax.xlane.f32.xlu0 %v746
      %v748 = vpop.xlane.xlu0 %747
      %v749 = vsub.f32 %v741, %v745
      %v750 = vsub.f32 %v742, %v748
      %v751 = vmul.f32 %v749, 1.442695
      %v752 = vpow.pop %v751
      %v753 = vmul.f32 %v750, 1.442695
      %v754 = vpow.pop %v753
      %v755 = vsel %vm395, %v752, 0.0
      %756 = vadd.xlane.f32.xlu0 %v755
      %v757 = vpop.xlane.xlu0 %756
      %v758 = vsel %vm395, %v754, 0.0
      %759 = vadd.xlane.f32.xlu0 %v758
      %v760 = vpop.xlane.xlu0 %759
      %v761 = vrcp.pop %v757
      %v762 = vrcp.pop %v760
      %v763 = vmul.f32 %v752, %v761
      %v764 = vmul.f32 %v754, %v762
      %v765 = vpack.c.bf16 %v764, %v763
      %766 = vrot.lane.b32.xlu0 %v341, 48
      %v767 = vpop.permute.xlu0 %766
      %v770 = vsel %vm395, %v765, 0
      %772 = vmatprep.subr.bf16.mxu0 0
      %773 = vmatpush1.bf16.msra.mxu0 0
      %774 = vmatprep.subr.bf16.mxu0 0
      %775 = vmatpush1.bf16.msra.mxu0 0
      %776 = vmatprep.subr.bf16.mxu0 0
      %777 = vmatpush1.bf16.msra.mxu0 0
      %778 = vmatprep.subr.bf16.mxu0 0
      %779 = vmatpush1.bf16.msra.mxu0 0
      %780 = vmatprep.subr.bf16.mxu0 0
      %781 = vmatpush1.bf16.msra.mxu0 0
      %782 = vmatprep.subr.bf16.mxu0 0
      %783 = vmatpush1.bf16.msra.mxu0 0
      %784 = vmatprep.subr.bf16.mxu0 0
      %785 = vmatpush1.bf16.msra.mxu0 0
      %786 = vmatprep.subr.bf16.mxu0 0
      %787 = vmatpush1.bf16.msra.mxu0 %v767
      %788 = vmatprep.subr.bf16.mxu0 0
      %789 = vmatpush2.bf16.msra.mxu0 0
      %790 = vmatprep.subr.bf16.mxu0 0
      %791 = vmatpush2.bf16.msra.mxu0 0
      %792 = vmatprep.subr.bf16.mxu0 0
      %793 = vmatpush2.bf16.msra.mxu0 0
      %794 = vmatprep.subr.bf16.mxu0 0
      %795 = vmatpush2.bf16.msra.mxu0 0
      %796 = vmatprep.subr.bf16.mxu0 0
      %797 = vmatpush2.bf16.msra.mxu0 0
      %798 = vmatprep.subr.bf16.mxu0 0
      %799 = vmatpush2.bf16.msra.mxu0 0
      %800 = vmatprep.subr.bf16.mxu0 0
      %801 = vmatpush2.bf16.msra.mxu0 0
      %802 = vmatprep.subr.bf16.mxu0 0
      %803 = vmatpush2.bf16.msra.mxu0 0
      %804 = vmatprep.mubr.bf16.mxu0 0
      %805 = vmatmul.mubr.bf16.gmra.mxu0 %v770
      %v806 = vpop.f32.mrf.mxu0
      %v807 = vadd.f32 0.0, %v806
      %v808 = vpop.f32.mrf.mxu0
      %v809 = vpop.f32.mrf.mxu0
      %v810 = vadd.f32 0.0, %v809
      %v811 = vpop.f32.mrf.mxu0
      %812 = vdwg.mxu0
      %v813 = vld [vmem:[%s3 + $0x10] sm:$0xff]
      %v814 = vpack.c.bf16 %v810, %v807
      %v815 = vpack.c.bf16 %v813, %v813
      %v817 = vsel %vm345, %v814, 0
      %v820 = vsel %vm598, %v815, 0
      %822 = vmatprep.subr.bf16.mxu0 0
      %823 = vmatpush1.bf16.msra.mxu0 0
      %824 = vmatprep.subr.bf16.mxu0 0
      %825 = vmatpush1.bf16.msra.mxu0 0
      %826 = vmatprep.subr.bf16.mxu0 0
      %827 = vmatpush1.bf16.msra.mxu0 0
      %828 = vmatprep.subr.bf16.mxu0 0
      %829 = vmatpush1.bf16.msra.mxu0 0
      %830 = vmatprep.subr.bf16.mxu0 0
      %831 = vmatpush1.bf16.msra.mxu0 0
      %832 = vmatprep.subr.bf16.mxu0 0
      %833 = vmatpush1.bf16.msra.mxu0 0
      %834 = vmatprep.subr.bf16.mxu0 0
      %835 = vmatpush1.bf16.msra.mxu0 0
      %836 = vmatprep.subr.bf16.mxu0 0
      %837 = vmatpush1.bf16.msra.mxu0 %v820
      %838 = vmatprep.subr.bf16.mxu0 0
      %839 = vmatpush2.bf16.msra.mxu0 0
      %840 = vmatprep.subr.bf16.mxu0 0
      %841 = vmatpush2.bf16.msra.mxu0 0
      %842 = vmatprep.subr.bf16.mxu0 0
      %843 = vmatpush2.bf16.msra.mxu0 0
      %844 = vmatprep.subr.bf16.mxu0 0
      %845 = vmatpush2.bf16.msra.mxu0 0
      %846 = vmatprep.subr.bf16.mxu0 0
      %847 = vmatpush2.bf16.msra.mxu0 0
      %848 = vmatprep.subr.bf16.mxu0 0
      %849 = vmatpush2.bf16.msra.mxu0 0
      %850 = vmatprep.subr.bf16.mxu0 0
      %851 = vmatpush2.bf16.msra.mxu0 0
      %852 = vmatprep.subr.bf16.mxu0 0
      %853 = vmatpush2.bf16.msra.mxu0 0
      %854 = vmatprep.mubr.bf16.mxu0 0
      %855 = vmatmul.mubr.bf16.gmra.mxu0 %v817
      %v856 = vpop.f32.mrf.mxu0
      %v857 = vadd.f32 0.0, %v856
      %v858 = vpop.f32.mrf.mxu0
      %v859 = vpop.f32.mrf.mxu0
      %v860 = vadd.f32 0.0, %v859
      %v861 = vpop.f32.mrf.mxu0
      %862 = vdwg.mxu0
      %v863 = vadd.f32 %v684, %v857
      %v864 = vadd.f32 %v687, %v860
      %865 = vrot.lane.b32.xlu0 %v341, 104
      %v866 = vpop.permute.xlu0 %865
      %867 = vrot.lane.b32.xlu0 %v341, 72
      %v868 = vpop.permute.xlu0 %867
      %v870 = vsel %vm345, %v866, 0
      %v873 = vsel %vm345, %v868, 0
      %875 = vmatprep.subr.bf16.mxu0 0
      %876 = vmatpush1.bf16.xpose.msra.mxu0 0
      %877 = vmatprep.subr.bf16.mxu0 0
      %878 = vmatpush1.bf16.xpose.msra.mxu0 0
      %879 = vmatprep.subr.bf16.mxu0 0
      %880 = vmatpush1.bf16.xpose.msra.mxu0 0
      %881 = vmatprep.subr.bf16.mxu0 0
      %882 = vmatpush1.bf16.xpose.msra.mxu0 0
      %883 = vmatprep.subr.bf16.mxu0 0
      %884 = vmatpush1.bf16.xpose.msra.mxu0 0
      %885 = vmatprep.subr.bf16.mxu0 0
      %886 = vmatpush1.bf16.xpose.msra.mxu0 0
      %887 = vmatprep.subr.bf16.mxu0 0
      %888 = vmatpush1.bf16.xpose.msra.mxu0 0
      %889 = vmatprep.subr.bf16.mxu0 0
      %890 = vmatpush1.bf16.xpose.msra.mxu0 %v873
      %891 = vmatprep.subr.bf16.mxu0 0
      %892 = vmatpush2.bf16.xpose.msra.mxu0 0
      %893 = vmatprep.subr.bf16.mxu0 0
      %894 = vmatpush2.bf16.xpose.msra.mxu0 0
      %895 = vmatprep.subr.bf16.mxu0 0
      %896 = vmatpush2.bf16.xpose.msra.mxu0 0
      %897 = vmatprep.subr.bf16.mxu0 0
      %898 = vmatpush2.bf16.xpose.msra.mxu0 0
      %899 = vmatprep.subr.bf16.mxu0 0
      %900 = vmatpush2.bf16.xpose.msra.mxu0 0
      %901 = vmatprep.subr.bf16.mxu0 0
      %902 = vmatpush2.bf16.xpose.msra.mxu0 0
      %903 = vmatprep.subr.bf16.mxu0 0
      %904 = vmatpush2.bf16.xpose.msra.mxu0 0
      %905 = vmatprep.subr.bf16.mxu0 0
      %906 = vmatpush2.bf16.xpose.msra.mxu0 0
      %907 = vmatprep.mubr.bf16.mxu0 0
      %908 = vmatmul.mubr.bf16.gmra.mxu0 %v870
      %v909 = vpop.f32.mrf.mxu0
      %v910 = vadd.f32 0.0, %v909
      %v911 = vpop.f32.mrf.mxu0
      %v912 = vpop.f32.mrf.mxu0
      %v913 = vadd.f32 0.0, %v912
      %v914 = vpop.f32.mrf.mxu0
      %915 = vdwg.mxu0
      %v916 = vmul.f32 %v910, 0.35355338
      %v917 = vmul.f32 %v913, 0.35355338
      %v918 = vsel %vm395, %v916, -inf
      %919 = vmax.xlane.f32.xlu0 %v918
      %v920 = vpop.xlane.xlu0 %919
      %v921 = vsel %vm395, %v917, -inf
      %922 = vmax.xlane.f32.xlu0 %v921
      %v923 = vpop.xlane.xlu0 %922
      %v924 = vsub.f32 %v916, %v920
      %v925 = vsub.f32 %v917, %v923
      %v926 = vmul.f32 %v924, 1.442695
      %v927 = vpow.pop %v926
      %v928 = vmul.f32 %v925, 1.442695
      %v929 = vpow.pop %v928
      %v930 = vsel %vm395, %v927, 0.0
      %931 = vadd.xlane.f32.xlu0 %v930
      %v932 = vpop.xlane.xlu0 %931
      %v933 = vsel %vm395, %v929, 0.0
      %934 = vadd.xlane.f32.xlu0 %v933
      %v935 = vpop.xlane.xlu0 %934
      %v936 = vrcp.pop %v932
      %v937 = vrcp.pop %v935
      %v938 = vmul.f32 %v927, %v936
      %v939 = vmul.f32 %v929, %v937
      %v940 = vpack.c.bf16 %v939, %v938
      %941 = vrot.lane.b32.xlu0 %v341, 40
      %v942 = vpop.permute.xlu0 %941
      %v945 = vsel %vm395, %v940, 0
      %947 = vmatprep.subr.bf16.mxu0 0
      %948 = vmatpush1.bf16.msra.mxu0 0
      %949 = vmatprep.subr.bf16.mxu0 0
      %950 = vmatpush1.bf16.msra.mxu0 0
      %951 = vmatprep.subr.bf16.mxu0 0
      %952 = vmatpush1.bf16.msra.mxu0 0
      %953 = vmatprep.subr.bf16.mxu0 0
      %954 = vmatpush1.bf16.msra.mxu0 0
      %955 = vmatprep.subr.bf16.mxu0 0
      %956 = vmatpush1.bf16.msra.mxu0 0
      %957 = vmatprep.subr.bf16.mxu0 0
      %958 = vmatpush1.bf16.msra.mxu0 0
      %959 = vmatprep.subr.bf16.mxu0 0
      %960 = vmatpush1.bf16.msra.mxu0 0
      %961 = vmatprep.subr.bf16.mxu0 0
      %962 = vmatpush1.bf16.msra.mxu0 %v942
      %963 = vmatprep.subr.bf16.mxu0 0
      %964 = vmatpush2.bf16.msra.mxu0 0
      %965 = vmatprep.subr.bf16.mxu0 0
      %966 = vmatpush2.bf16.msra.mxu0 0
      %967 = vmatprep.subr.bf16.mxu0 0
      %968 = vmatpush2.bf16.msra.mxu0 0
      %969 = vmatprep.subr.bf16.mxu0 0
      %970 = vmatpush2.bf16.msra.mxu0 0
      %971 = vmatprep.subr.bf16.mxu0 0
      %972 = vmatpush2.bf16.msra.mxu0 0
      %973 = vmatprep.subr.bf16.mxu0 0
      %974 = vmatpush2.bf16.msra.mxu0 0
      %975 = vmatprep.subr.bf16.mxu0 0
      %976 = vmatpush2.bf16.msra.mxu0 0
      %977 = vmatprep.subr.bf16.mxu0 0
      %978 = vmatpush2.bf16.msra.mxu0 0
      %979 = vmatprep.mubr.bf16.mxu0 0
      %980 = vmatmul.mubr.bf16.gmra.mxu0 %v945
      %v981 = vpop.f32.mrf.mxu0
      %v982 = vadd.f32 0.0, %v981
      %v983 = vpop.f32.mrf.mxu0
      %v984 = vpop.f32.mrf.mxu0
      %v985 = vadd.f32 0.0, %v984
      %v986 = vpop.f32.mrf.mxu0
      %987 = vdwg.mxu0
      %v988 = vld [vmem:[%s3 + $0x18] sm:$0xff]
      %v989 = vpack.c.bf16 %v985, %v982
      %v990 = vpack.c.bf16 %v988, %v988
      %v992 = vsel %vm345, %v989, 0
      %v995 = vsel %vm598, %v990, 0
      %997 = vmatprep.subr.bf16.mxu0 0
      %998 = vmatpush1.bf16.msra.mxu0 0
      %999 = vmatprep.subr.bf16.mxu0 0
      %1000 = vmatpush1.bf16.msra.mxu0 0
      %1001 = vmatprep.subr.bf16.mxu0 0
      %1002 = vmatpush1.bf16.msra.mxu0 0
      %1003 = vmatprep.subr.bf16.mxu0 0
      %1004 = vmatpush1.bf16.msra.mxu0 0
      %1005 = vmatprep.subr.bf16.mxu0 0
      %1006 = vmatpush1.bf16.msra.mxu0 0
      %1007 = vmatprep.subr.bf16.mxu0 0
      %1008 = vmatpush1.bf16.msra.mxu0 0
      %1009 = vmatprep.subr.bf16.mxu0 0
      %1010 = vmatpush1.bf16.msra.mxu0 0
      %1011 = vmatprep.subr.bf16.mxu0 0
      %1012 = vmatpush1.bf16.msra.mxu0 %v995
      %1013 = vmatprep.subr.bf16.mxu0 0
      %1014 = vmatpush2.bf16.msra.mxu0 0
      %1015 = vmatprep.subr.bf16.mxu0 0
      %1016 = vmatpush2.bf16.msra.mxu0 0
      %1017 = vmatprep.subr.bf16.mxu0 0
      %1018 = vmatpush2.bf16.msra.mxu0 0
      %1019 = vmatprep.subr.bf16.mxu0 0
      %1020 = vmatpush2.bf16.msra.mxu0 0
      %1021 = vmatprep.subr.bf16.mxu0 0
      %1022 = vmatpush2.bf16.msra.mxu0 0
      %1023 = vmatprep.subr.bf16.mxu0 0
      %1024 = vmatpush2.bf16.msra.mxu0 0
      %1025 = vmatprep.subr.bf16.mxu0 0
      %1026 = vmatpush2.bf16.msra.mxu0 0
      %1027 = vmatprep.subr.bf16.mxu0 0
      %1028 = vmatpush2.bf16.msra.mxu0 0
      %1029 = vmatprep.mubr.bf16.mxu0 0
      %1030 = vmatmul.mubr.bf16.gmra.mxu0 %v992
      %v1031 = vpop.f32.mrf.mxu0
      %v1032 = vadd.f32 0.0, %v1031
      %v1033 = vpop.f32.mrf.mxu0
      %v1034 = vpop.f32.mrf.mxu0
      %v1035 = vadd.f32 0.0, %v1034
      %v1036 = vpop.f32.mrf.mxu0
      %1037 = vdwg.mxu0
      %v1038 = vadd.f32 %v863, %v1032
      %v1039 = vadd.f32 %v864, %v1035
      %v1040 = vadd.f32 %v280, %v1038
      %v1041 = vadd.f32 %v281, %v1039
      %v1042 = vld [vmem:[%s4] sm:$0x1]
      %v1044 = vlaneseq
      %v1045 = vshrl.u32 %v1044, 7
      %v1046 = vsub.s32 0, %v1045
      %v1047 = vrot.slane %v1042, %v1046
      %v1049 = vadd.f32 %v1040, %v1047
      %v1050 = vadd.f32 %v1041, %v1047
      %v1051 = vld [vmem:[%s5] sm:$0x1]
      %v1052 = vld [vmem:[%s6] sm:$0x1]
      %v1053 = vsel %vm296, %v1049, 0.0
      %1054 = vadd.xlane.f32.xlu0 %v1053
      %v1055 = vpop.xlane.xlu0 %1054
      %v1056 = vsel %vm296, %v1050, 0.0
      %1057 = vadd.xlane.f32.xlu0 %v1056
      %v1058 = vpop.xlane.xlu0 %1057
      %v1059 = vrcp.pop 32.0
      %v1060 = vmul.f32 %v1055, %v1059
      %v1061 = vmul.f32 %v1058, %v1059
      %v1062 = vsub.f32 %v1049, %v1060
      %v1063 = vsub.f32 %v1050, %v1061
      %v1064 = vmul.f32 %v1062, %v1062
      %v1065 = vmul.f32 %v1063, %v1063
      %v1066 = vsel %vm296, %v1064, 0.0
      %1067 = vadd.xlane.f32.xlu0 %v1066
      %v1068 = vpop.xlane.xlu0 %1067
      %v1069 = vsel %vm296, %v1065, 0.0
      %1070 = vadd.xlane.f32.xlu0 %v1069
      %v1071 = vpop.xlane.xlu0 %1070
      %v1072 = vmul.f32 %v1068, %v1059
      %v1073 = vmul.f32 %v1071, %v1059
      %v1074 = vadd.f32 %v1072, 1e-05
      %v1075 = vadd.f32 %v1073, 1e-05
      %v1076 = vrsqrt.pop %v1074
      %v1077 = vrsqrt.pop %v1075
      %v1078 = vmul.f32 %v1062, %v1076
      %v1079 = vmul.f32 %v1063, %v1077
      %v1081 = vlaneseq
      %v1082 = vshrl.u32 %v1081, 7
      %v1083 = vsub.s32 0, %v1082
      %v1084 = vrot.slane %v1051, %v1083
      %v1086 = vmul.f32 %v1078, %v1084
      %v1087 = vmul.f32 %v1079, %v1084
      %v1089 = vlaneseq
      %v1090 = vshrl.u32 %v1089, 7
      %v1091 = vsub.s32 0, %v1090
      %v1092 = vrot.slane %v1052, %v1091
      %v1094 = vadd.f32 %v1086, %v1092
      %v1095 = vadd.f32 %v1087, %v1092
      %1096 = vst.msk [vmem:[%s278] sm:$0xff] %vm296, %v1094
      %1097 = vst.msk [vmem:[%s278 + $0x8] sm:$0xff] %vm296, %v1095
      %p1098 = scmp.lt.s32.totalorder %s18, 1
      %s1099 = scalar_select %p1098, %s18, 1
      %s1100 = smul.addr %s1099, 2
      %s1101 = smul.addr %s1100, 8
      %s1102 = scalar_lea.vmem %s7, %s1101
      // Predicated region
      $region49: #{mvit_forward.12} parent=47 // pred_check
        %p1103 = pneg %p188
      $region50: #{mvit_forward.12} parent=47 // pred_check_branch
        %1105 = sbr.rel (%p1103) target = $region52
      $region51: #{mvit_forward.12} parent=47 // pred_region
        _
      $region52: #{mvit_forward.12} parent=47 // pred_fallthru
        _
    $region48: #{mvit_forward.12} parent=5 // pred_fallthru
      _
    %p1106 = scmp.le.s32.totalorder 2, %s13
    // Predicated region
    $region53: #{mvit_forward.12} parent=5 // pred_check
      %p1107 = pneg %p1106
    $region54: #{mvit_forward.12} parent=5 // pred_check_branch
      %1109 = sbr.rel (%p1107) target = $region56
    $region55: #{mvit_forward.12} parent=5 // pred_region
      %s1110 = ssub.s32 %s13, 2
      // Predicated region
      $region57: #{mvit_forward.12} parent=55 // pred_check
        %p1111 = pneg %p194
      $region58: #{mvit_forward.12} parent=55 // pred_check_branch
        %1113 = sbr.rel (%p1111) target = $region60
      $region59: #{mvit_forward.12} parent=55 // pred_region
        %p1114 = scmp.lt.s32.totalorder %s19, 1
        %s1115 = scalar_select %p1114, %s19, 1
        %s1116 = smul.addr %s1115, 2
        %s1117 = smul.addr %s1116, 8
        %s1118 = scalar_lea.vmem %s7, %s1117
      $region60: #{mvit_forward.12} parent=55 // pred_fallthru
        _
    $region56: #{mvit_forward.12} parent=5 // pred_fallthru
      _
  $region6: #{mvit_forward.12} parent=0 // loop_footer
    %s17 = sadd.s32 1, %s13
  $region7: #{mvit_forward.12} parent=0 // loop_footer_branch
    %12 = sbr.rel target = $region3
  $region8: #{mvit_forward.12} parent=0 // loop_exit
    _

// kernel: mvit_forward.20
$region0: #{mvit_forward.20}
  #allocation0 [shape = 'u32[]', space=smem, size = 0x4, offset = 0x4, fixed_abs, tag = 'smem constant byte address 0x4 - core index']
  #allocation1 [shape = 'u32[144,128]{1,0:T(1,128)}', space=vmem, size = 0x12000, scoped, tag = 'internal scratch']
  %s0 = inlined_call_operand.vmem [shape: f32[2,4,326], index: 0, kind: input, shape index: {}]
  %s1 = inlined_call_operand.vmem [shape: f32[9,32,4], index: 1, kind: input, shape index: {}]
  %s2 = inlined_call_operand.vmem [shape: f32[32,1], index: 2, kind: input, shape index: {}]
  %s3 = inlined_call_operand.vmem [shape: f32[2,8,32], index: 3, kind: input, shape index: {}]
  %s4 = inlined_call_operand.vmem [shape: f32[2,8,288], index: 4, kind: output, shape index: {}]
  %s5 = sld [smem:[#allocation0]]
  $region49: #{mvit_forward.20} parent=0
    _
  %s7 = ssub.s32 1, %s5
  %s8 = scalar_select 0, %s7, %s5
  loop: start=0, step=1, limit=4
  $region2: #{mvit_forward.20} parent=0 // loop_pre_header
    _
  $region3: #{mvit_forward.20} parent=0 // loop_header
    %s10 = sphi 0, %s14
    %p11 = scmp.ge.s32.totalorder %s10, 4
    %s20 = sphi 0, %s22
    %s23 = sphi 0, %s20
    %s24 = sphi 0, %s23
    %s40 = sphi 0, %s24
    %s44 = sphi 0, %s44
    %s46 = sphi 0, %s44
    %s47 = sphi 0, %s46
    %s61 = sphi 0, %s47
    %s65 = sphi 0, %s65
    %s67 = sphi 0, %s65
    %s68 = sphi 0, %s67
    %s82 = sphi 0, %s68
    %s88 = sphi 0, %s90
    %s91 = sphi 0, %s88
    %s92 = sphi 0, %s91
    %s108 = sphi 0, %s92
    %s114 = sphi 0, %s116
    %s117 = sphi 0, %s114
    %s118 = sphi 0, %s117
    %s134 = sphi 0, %s118
  $region4: #{mvit_forward.20} parent=0 // loop_header_branch
    %13 = sbr.rel (%p11) target = $region8
  $region5: #{mvit_forward.20} parent=0 // loop_body
    %s15 = ssub.s32 %s10, 1
    %s16 = ssub.s32 %s10, 2
    %s17 = sadd.s32 %s10, 1
    %s18 = ssub.s32 %s10, %s17
    %p19 = scmp.eq.s32.totalorder %s18, 0
    %s21 = sadd.s32 %s20, 1
    %s22 = scalar_select %p19, %s20, %s21
    %p25 = pneg %p19
    %p26 = scmp.eq.s32.totalorder %s10, 1
    %p27 = por %p25, %p26
    %p28 = scmp.ne.s32.totalorder %s20, %s23
    %p29 = scmp.eq.s32.totalorder %s10, 0
    %p30 = por %p28, %p29
    %p31 = scmp.ne.s32.totalorder %s20, %s23
    %p32 = scmp.eq.s32.totalorder %s15, 1
    %p33 = por %p31, %p32
    %p34 = scmp.ne.s32.totalorder %s23, %s24
    %p35 = scmp.eq.s32.totalorder %s15, 0
    %p36 = por %p34, %p35
    %p37 = scmp.ne.s32.totalorder %s23, %s24
    %p38 = scmp.eq.s32.totalorder %s16, 1
    %p39 = por %p37, %p38
    %p41 = scmp.ne.s32.totalorder %s24, %s40
    %p42 = scmp.eq.s32.totalorder %s16, 0
    %p43 = por %p41, %p42
    %s45 = sadd.s32 %s44, 1
    %p48 = scmp.eq.s32.totalorder %s10, 1
    %p49 = scmp.ne.s32.totalorder %s44, %s46
    %p50 = scmp.eq.s32.totalorder %s10, 0
    %p51 = por %p49, %p50
    %p52 = scmp.ne.s32.totalorder %s44, %s46
    %p53 = scmp.eq.s32.totalorder %s15, 1
    %p54 = por %p52, %p53
    %p55 = scmp.ne.s32.totalorder %s46, %s47
    %p56 = scmp.eq.s32.totalorder %s15, 0
    %p57 = por %p55, %p56
    %p58 = scmp.ne.s32.totalorder %s46, %s47
    %p59 = scmp.eq.s32.totalorder %s16, 1
    %p60 = por %p58, %p59
    %p62 = scmp.ne.s32.totalorder %s47, %s61
    %p63 = scmp.eq.s32.totalorder %s16, 0
    %p64 = por %p62, %p63
    %s66 = sadd.s32 %s65, 1
    %p69 = scmp.eq.s32.totalorder %s10, 1
    %p70 = scmp.ne.s32.totalorder %s65, %s67
    %p71 = scmp.eq.s32.totalorder %s10, 0
    %p72 = por %p70, %p71
    %p73 = scmp.ne.s32.totalorder %s65, %s67
    %p74 = scmp.eq.s32.totalorder %s15, 1
    %p75 = por %p73, %p74
    %p76 = scmp.ne.s32.totalorder %s67, %s68
    %p77 = scmp.eq.s32.totalorder %s15, 0
    %p78 = por %p76, %p77
    %p79 = scmp.ne.s32.totalorder %s67, %s68
    %p80 = scmp.eq.s32.totalorder %s16, 1
    %p81 = por %p79, %p80
    %p83 = scmp.ne.s32.totalorder %s68, %s82
    %p84 = scmp.eq.s32.totalorder %s16, 0
    %p85 = por %p83, %p84
    %s86 = ssub.s32 %s10, %s17
    %p87 = scmp.eq.s32.totalorder %s86, 0
    %s89 = sadd.s32 %s88, 1
    %s90 = scalar_select %p87, %s88, %s89
    %p93 = pneg %p87
    %p94 = scmp.eq.s32.totalorder %s10, 1
    %p95 = por %p93, %p94
    %p96 = scmp.ne.s32.totalorder %s88, %s91
    %p97 = scmp.eq.s32.totalorder %s10, 0
    %p98 = por %p96, %p97
    %p99 = scmp.ne.s32.totalorder %s88, %s91
    %p100 = scmp.eq.s32.totalorder %s15, 1
    %p101 = por %p99, %p100
    %p102 = scmp.ne.s32.totalorder %s91, %s92
    %p103 = scmp.eq.s32.totalorder %s15, 0
    %p104 = por %p102, %p103
    %p105 = scmp.ne.s32.totalorder %s91, %s92
    %p106 = scmp.eq.s32.totalorder %s16, 1
    %p107 = por %p105, %p106
    %p109 = scmp.ne.s32.totalorder %s92, %s108
    %p110 = scmp.eq.s32.totalorder %s16, 0
    %p111 = por %p109, %p110
    %s112 = ssub.s32 %s10, %s17
    %p113 = scmp.eq.s32.totalorder %s112, 0
    %s115 = sadd.s32 %s114, 1
    %s116 = scalar_select %p113, %s114, %s115
    %p119 = pneg %p113
    %p120 = scmp.eq.s32.totalorder %s10, 1
    %p121 = por %p119, %p120
    %p122 = scmp.ne.s32.totalorder %s114, %s117
    %p123 = scmp.eq.s32.totalorder %s10, 0
    %p124 = por %p122, %p123
    %p125 = scmp.ne.s32.totalorder %s114, %s117
    %p126 = scmp.eq.s32.totalorder %s15, 1
    %p127 = por %p125, %p126
    %p128 = scmp.ne.s32.totalorder %s117, %s118
    %p129 = scmp.eq.s32.totalorder %s15, 0
    %p130 = por %p128, %p129
    %p131 = scmp.ne.s32.totalorder %s117, %s118
    %p132 = scmp.eq.s32.totalorder %s16, 1
    %p133 = por %p131, %p132
    %p135 = scmp.ne.s32.totalorder %s118, %s134
    %p136 = scmp.eq.s32.totalorder %s16, 0
    %p137 = por %p135, %p136
    %p138 = scmp.le.s32.totalorder 1, %s10
    %p139 = scmp.lt.s32.totalorder %s10, 3
    %p140 = pnand %p138, %p139
    %p141 = pneg %p140
    // Predicated region
    $region9: #{mvit_forward.20} parent=5 // pred_check
      _
    $region10: #{mvit_forward.20} parent=5 // pred_check_branch
      %143 = sbr.rel (%p140) target = $region12
    $region11: #{mvit_forward.20} parent=5 // pred_region
      %s144 = ssub.s32 %s10, 1
      // Predicated region
      $region13: #{mvit_forward.20} parent=11 // pred_check
        %p145 = pneg %p57
      $region14: #{mvit_forward.20} parent=11 // pred_check_branch
        %147 = sbr.rel (%p145) target = $region16
      $region15: #{mvit_forward.20} parent=11 // pred_region
        _
      $region16: #{mvit_forward.20} parent=11 // pred_fallthru
        _
      // Predicated region
      $region17: #{mvit_forward.20} parent=11 // pred_check
        %p148 = pneg %p78
      $region18: #{mvit_forward.20} parent=11 // pred_check_branch
        %150 = sbr.rel (%p148) target = $region20
      $region19: #{mvit_forward.20} parent=11 // pred_region
        _
      $region20: #{mvit_forward.20} parent=11 // pred_fallthru
        _
    $region12: #{mvit_forward.20} parent=5 // pred_fallthru
      _
    %p151 = scmp.lt.s32.totalorder %s10, 2
    // Predicated region
    $region21: #{mvit_forward.20} parent=5 // pred_check
      %p152 = pneg %p151
    $region22: #{mvit_forward.20} parent=5 // pred_check_branch
      %154 = sbr.rel (%p152) target = $region24
    $region23: #{mvit_forward.20} parent=5 // pred_region
      // Predicated region
      $region25: #{mvit_forward.20} parent=23 // pred_check
        %p155 = pneg %p30
      $region26: #{mvit_forward.20} parent=23 // pred_check_branch
        %157 = sbr.rel (%p155) target = $region28
      $region27: #{mvit_forward.20} parent=23 // pred_region
        %p158 = scmp.lt.s32.totalorder %s10, 1
        %s159 = scalar_select %p158, %s10, 1
        %s160 = smul.addr %s159, 3
        %s161 = smul.addr %s160, 4
        %s162 = scalar_lea.vmem %s0, %s161
      $region28: #{mvit_forward.20} parent=23 // pred_fallthru
        _
      // Predicated region
      $region29: #{mvit_forward.20} parent=23 // pred_check
        %p163 = pneg %p98
      $region30: #{mvit_forward.20} parent=23 // pred_check_branch
        %165 = sbr.rel (%p163) target = $region32
      $region31: #{mvit_forward.20} parent=23 // pred_region
        %p166 = scmp.lt.s32.totalorder %s10, 1
        %s167 = scalar_select %p166, %s10, 1
        %s168 = smul.addr %s167, 8
        %s169 = scalar_lea.vmem %s3, %s168
      $region32: #{mvit_forward.20} parent=23 // pred_fallthru
        _
    $region24: #{mvit_forward.20} parent=5 // pred_fallthru
      _
    %p170 = scmp.le.s32.totalorder 1, %s10
    %p171 = scmp.lt.s32.totalorder %s10, 3
    %p172 = pnand %p170, %p171
    %p173 = pneg %p172
    // Predicated region
    $region33: #{mvit_forward.20} parent=5 // pred_check
      _
    $region34: #{mvit_forward.20} parent=5 // pred_check_branch
      %175 = sbr.rel (%p172) target = $region36
    $region35: #{mvit_forward.20} parent=5 // pred_region
      %s176 = ssub.s32 %s10, 1
      %p177 = scmp.lt.s32.totalorder %s15, 1
      %s178 = scalar_select %p177, %s15, 1
      %s179 = smul.addr %s178, 3
      %s180 = smul.addr %s179, 4
      %s181 = scalar_lea.vmem %s0, %s180
      %p182 = pneg %p36
      %p183 = pneg %p33
      %p184 = pneg %p57
      %p185 = pneg %p54
      %p186 = pneg %p78
      %p187 = pneg %p75
      %p188 = scmp.lt.s32.totalorder %s15, 1
      %s189 = scalar_select %p188, %s15, 1
      %s190 = smul.addr %s189, 8
      %s191 = scalar_lea.vmem %s3, %s190
      %p192 = pneg %p104
      %p193 = pneg %p101
      %p194 = pneg %p130
      %p195 = pneg %p127
      %p196 = scmp.lt.s32.totalorder %s15, 1
      %s197 = scalar_select %p196, %s15, 1
      %s198 = smul.addr %s197, 3
      %s199 = smul.addr %s198, 8
      %s200 = scalar_lea.vmem %s4, %s199
      %p201 = scmp.lt.s32.totalorder %s15, 1
      %s202 = scalar_select %p201, %s15, 1
      %s203 = smul.addr %s202, 3
      %s204 = smul.addr %s203, 4
      %s205 = scalar_lea.vmem %s0, %s204
      %p206 = scmp.lt.s32.totalorder %s15, 1
      %s207 = scalar_select %p206, %s15, 1
      %s208 = smul.addr %s207, 8
      %s209 = scalar_lea.vmem %s3, %s208
      %p210 = scmp.lt.s32.totalorder %s15, 1
      %s211 = scalar_select %p210, %s15, 1
      %s212 = smul.addr %s211, 3
      %s213 = smul.addr %s212, 8
      %s214 = scalar_lea.vmem %s4, %s213
      %v216 = vld [vmem:[%s205] sm:$0xff]
      %v217 = vld [vmem:[%s205 + $0x8] sm:$0xf]
      %v218 = vld [vmem:[%s1] sm:$0xff]
      %v219 = vld [vmem:[%s1 + $0x8] sm:$0xff]
      %v220 = vld [vmem:[%s1 + $0x10] sm:$0xff]
      %v221 = vld [vmem:[%s1 + $0x18] sm:$0xff]
      %v222 = vpack.c.bf16 %v219, %v218
      %v223 = vpack.c.bf16 %v221, %v220
      %v225 = vcombine.high %v216, %v216
      %v227 = vpack.c.bf16 %v216, %v216
      %v228 = vpack.c.bf16 %v225, %v225
      %v229 = vpack.c.bf16 %v217, %v217
      %s230 = scalar_lea.vmem %s1, 32
      %v231 = vld [vmem:[%s230] sm:$0xff]
      %v232 = vld [vmem:[%s230 + $0x8] sm:$0xff]
      %v233 = vld [vmem:[%s230 + $0x10] sm:$0xff]
      %v234 = vld [vmem:[%s230 + $0x18] sm:$0xff]
      %v235 = vpack.c.bf16 %v232, %v231
      %v236 = vpack.c.bf16 %v234, %v233
      %240 = vrot.lane.b32.xlu0 %v227, 127
      %v241 = vpop.permute.xlu0 %240
      %242 = vrot.lane.b32.xlu0 %v228, 127
      %v243 = vpop.permute.xlu0 %242
      %244 = vrot.lane.b32.xlu0 %v229, 127
      %v245 = vpop.permute.xlu0 %244
      %vm246 = vcmask 1039360
      %v247 = vsel %vm246, %v241, %v243
      %v248 = vsel %vm246, %v243, %v245
      %vm249 = vcmask 31744
      %v251 = vsel %vm249, %v235, 0
      %v254 = vsel %vm249, %v236, 0
      %vm256 = vcmask 1041408
      %v258 = vsel %vm256, %v247, 0
      %v261 = vsel %vm256, %v248, 0
      %v264 = vsel %vm256, %v245, 0
      %266 = vmatprep.subr.bf16.mxu0 0
      %267 = vmatpush1.bf16.msra.mxu0 0
      %268 = vmatprep.subr.bf16.mxu0 0
      %269 = vmatpush1.bf16.msra.mxu0 0
      %270 = vmatprep.subr.bf16.mxu0 0
      %271 = vmatpush1.bf16.msra.mxu0 0
      %272 = vmatprep.subr.bf16.mxu0 0
      %273 = vmatpush1.bf16.msra.mxu0 0
      %274 = vmatprep.subr.bf16.mxu0 0
      %275 = vmatpush1.bf16.msra.mxu0 0
      %276 = vmatprep.subr.bf16.mxu0 0
      %277 = vmatpush1.bf16.msra.mxu0 0
      %278 = vmatprep.subr.bf16.mxu0 0
      %279 = vmatpush1.bf16.msra.mxu0 0
      %280 = vmatprep.subr.bf16.mxu0 %v261
      %281 = vmatpush1.bf16.msra.mxu0 %v258
      %282 = vmatprep.subr.bf16.mxu0 0
      %283 = vmatpush2.bf16.msra.mxu0 0
      %284 = vmatprep.subr.bf16.mxu0 0
      %285 = vmatpush2.bf16.msra.mxu0 0
      %286 = vmatprep.subr.bf16.mxu0 0
      %287 = vmatpush2.bf16.msra.mxu0 0
      %288 = vmatprep.subr.bf16.mxu0 0
      %289 = vmatpush2.bf16.msra.mxu0 0
      %290 = vmatprep.subr.bf16.mxu0 0
      %291 = vmatpush2.bf16.msra.mxu0 0
      %292 = vmatprep.subr.bf16.mxu0 0
      %293 = vmatpush2.bf16.msra.mxu0 0
      %294 = vmatprep.subr.bf16.mxu0 0
      %295 = vmatpush2.bf16.msra.mxu0 0
      %296 = vmatprep.subr.bf16.mxu0 0
      %297 = vmatpush2.bf16.msra.mxu0 0
      %298 = vmatprep.mubr.bf16.mxu0 0
      %299 = vmatmul.mubr.bf16.gmra.mxu0 %v251
      %v300 = vpop.f32.mrf.mxu0
      %v301 = vadd.f32 0.0, %v300
      %v302 = vpop.f32.mrf.mxu0
      %v303 = vadd.f32 0.0, %v302
      %v304 = vpop.f32.mrf.mxu0
      %v305 = vadd.f32 0.0, %v304
      %v306 = vpop.f32.mrf.mxu0
      %v307 = vadd.f32 0.0, %v306
      %308 = vmatprep.mubr.bf16.mxu0 0
      %309 = vmatmul.mubr.bf16.gmra.mxu0 %v254
      %v310 = vpop.f32.mrf.mxu0
      %v311 = vadd.f32 0.0, %v310
      %v312 = vpop.f32.mrf.mxu0
      %v313 = vadd.f32 0.0, %v312
      %v314 = vpop.f32.mrf.mxu0
      %v315 = vadd.f32 0.0, %v314
      %v316 = vpop.f32.mrf.mxu0
      %v317 = vadd.f32 0.0, %v316
      %318 = vdwg.mxu0
      %319 = vmatprep.subr.bf16.mxu0 0
      %320 = vmatpush1.bf16.msra.mxu0 0
      %321 = vmatprep.subr.bf16.mxu0 0
      %322 = vmatpush1.bf16.msra.mxu0 0
      %323 = vmatprep.subr.bf16.mxu0 0
      %324 = vmatpush1.bf16.msra.mxu0 0
      %325 = vmatprep.subr.bf16.mxu0 0
      %326 = vmatpush1.bf16.msra.mxu0 0
      %327 = vmatprep.subr.bf16.mxu0 0
      %328 = vmatpush1.bf16.msra.mxu0 0
      %329 = vmatprep.subr.bf16.mxu0 0
      %330 = vmatpush1.bf16.msra.mxu0 0
      %331 = vmatprep.subr.bf16.mxu0 0
      %332 = vmatpush1.bf16.msra.mxu0 0
      %333 = vmatprep.subr.bf16.mxu0 0
      %334 = vmatpush1.bf16.msra.mxu0 %v264
      %335 = vmatprep.subr.bf16.mxu0 0
      %336 = vmatpush2.bf16.msra.mxu0 0
      %337 = vmatprep.subr.bf16.mxu0 0
      %338 = vmatpush2.bf16.msra.mxu0 0
      %339 = vmatprep.subr.bf16.mxu0 0
      %340 = vmatpush2.bf16.msra.mxu0 0
      %341 = vmatprep.subr.bf16.mxu0 0
      %342 = vmatpush2.bf16.msra.mxu0 0
      %343 = vmatprep.subr.bf16.mxu0 0
      %344 = vmatpush2.bf16.msra.mxu0 0
      %345 = vmatprep.subr.bf16.mxu0 0
      %346 = vmatpush2.bf16.msra.mxu0 0
      %347 = vmatprep.subr.bf16.mxu0 0
      %348 = vmatpush2.bf16.msra.mxu0 0
      %349 = vmatprep.subr.bf16.mxu0 0
      %350 = vmatpush2.bf16.msra.mxu0 0
      %351 = vmatprep.mubr.bf16.mxu0 0
      %352 = vmatmul.mubr.bf16.gmra.mxu0 %v251
      %v353 = vpop.f32.mrf.mxu0
      %v354 = vadd.f32 0.0, %v353
      %v355 = vpop.f32.mrf.mxu0
      %v356 = vpop.f32.mrf.mxu0
      %v357 = vadd.f32 0.0, %v356
      %v358 = vpop.f32.mrf.mxu0
      %359 = vmatprep.mubr.bf16.mxu0 0
      %360 = vmatmul.mubr.bf16.gmra.mxu0 %v254
      %v361 = vpop.f32.mrf.mxu0
      %v362 = vadd.f32 0.0, %v361
      %v363 = vpop.f32.mrf.mxu0
      %v364 = vpop.f32.mrf.mxu0
      %v365 = vadd.f32 0.0, %v364
      %v366 = vpop.f32.mrf.mxu0
      %367 = vdwg.mxu0
      %v369 = vsel %vm249, %v222, 0
      %v372 = vsel %vm249, %v223, 0
      %v375 = vsel %vm256, %v227, 0
      %v378 = vsel %vm256, %v228, 0
      %v381 = vsel %vm256, %v229, 0
      %383 = vmatprep.subr.bf16.mxu0 0
      %384 = vmatpush1.bf16.msra.mxu0 0
      %385 = vmatprep.subr.bf16.mxu0 0
      %386 = vmatpush1.bf16.msra.mxu0 0
      %387 = vmatprep.subr.bf16.mxu0 0
      %388 = vmatpush1.bf16.msra.mxu0 0
      %389 = vmatprep.subr.bf16.mxu0 0
      %390 = vmatpush1.bf16.msra.mxu0 0
      %391 = vmatprep.subr.bf16.mxu0 0
      %392 = vmatpush1.bf16.msra.mxu0 0
      %393 = vmatprep.subr.bf16.mxu0 0
      %394 = vmatpush1.bf16.msra.mxu0 0
      %395 = vmatprep.subr.bf16.mxu0 0
      %396 = vmatpush1.bf16.msra.mxu0 0
      %397 = vmatprep.subr.bf16.mxu0 %v378
      %398 = vmatpush1.bf16.msra.mxu0 %v375
      %399 = vmatprep.subr.bf16.mxu0 0
      %400 = vmatpush2.bf16.msra.mxu0 0
      %401 = vmatprep.subr.bf16.mxu0 0
      %402 = vmatpush2.bf16.msra.mxu0 0
      %403 = vmatprep.subr.bf16.mxu0 0
      %404 = vmatpush2.bf16.msra.mxu0 0
      %405 = vmatprep.subr.bf16.mxu0 0
      %406 = vmatpush2.bf16.msra.mxu0 0
      %407 = vmatprep.subr.bf16.mxu0 0
      %408 = vmatpush2.bf16.msra.mxu0 0
      %409 = vmatprep.subr.bf16.mxu0 0
      %410 = vmatpush2.bf16.msra.mxu0 0
      %411 = vmatprep.subr.bf16.mxu0 0
      %412 = vmatpush2.bf16.msra.mxu0 0
      %413 = vmatprep.subr.bf16.mxu0 0
      %414 = vmatpush2.bf16.msra.mxu0 0
      %415 = vmatprep.mubr.bf16.mxu0 0
      %416 = vmatmul.mubr.bf16.gmra.mxu0 %v369
      %v417 = vpop.f32.mrf.mxu0
      %v418 = vadd.f32 %v301, %v417
      %v419 = vpop.f32.mrf.mxu0
      %v420 = vadd.f32 %v303, %v419
      %v421 = vpop.f32.mrf.mxu0
      %v422 = vadd.f32 %v305, %v421
      %v423 = vpop.f32.mrf.mxu0
      %v424 = vadd.f32 %v307, %v423
      %425 = vmatprep.mubr.bf16.mxu0 0
      %426 = vmatmul.mubr.bf16.gmra.mxu0 %v372
      %v427 = vpop.f32.mrf.mxu0
      %v428 = vadd.f32 %v311, %v427
      %v429 = vpop.f32.mrf.mxu0
      %v430 = vadd.f32 %v313, %v429
      %v431 = vpop.f32.mrf.mxu0
      %v432 = vadd.f32 %v315, %v431
      %v433 = vpop.f32.mrf.mxu0
      %v434 = vadd.f32 %v317, %v433
      %435 = vdwg.mxu0
      %436 = vmatprep.subr.bf16.mxu0 0
      %437 = vmatpush1.bf16.msra.mxu0 0
      %438 = vmatprep.subr.bf16.mxu0 0
      %439 = vmatpush1.bf16.msra.mxu0 0
      %440 = vmatprep.subr.bf16.mxu0 0
      %441 = vmatpush1.bf16.msra.mxu0 0
      %442 = vmatprep.subr.bf16.mxu0 0
      %443 = vmatpush1.bf16.msra.mxu0 0
      %444 = vmatprep.subr.bf16.mxu0 0
      %445 = vmatpush1.bf16.msra.mxu0 0
      %446 = vmatprep.subr.bf16.mxu0 0
      %447 = vmatpush1.bf16.msra.mxu0 0
      %448 = vmatprep.subr.bf16.mxu0 0
      %449 = vmatpush1.bf16.msra.mxu0 0
      %450 = vmatprep.subr.bf16.mxu0 0
      %451 = vmatpush1.bf16.msra.mxu0 %v381
      %452 = vmatprep.subr.bf16.mxu0 0
      %453 = vmatpush2.bf16.msra.mxu0 0
      %454 = vmatprep.subr.bf16.mxu0 0
      %455 = vmatpush2.bf16.msra.mxu0 0
      %456 = vmatprep.subr.bf16.mxu0 0
      %457 = vmatpush2.bf16.msra.mxu0 0
      %458 = vmatprep.subr.bf16.mxu0 0
      %459 = vmatpush2.bf16.msra.mxu0 0
      %460 = vmatprep.subr.bf16.mxu0 0
      %461 = vmatpush2.bf16.msra.mxu0 0
      %462 = vmatprep.subr.bf16.mxu0 0
      %463 = vmatpush2.bf16.msra.mxu0 0
      %464 = vmatprep.subr.bf16.mxu0 0
      %465 = vmatpush2.bf16.msra.mxu0 0
      %466 = vmatprep.subr.bf16.mxu0 0
      %467 = vmatpush2.bf16.msra.mxu0 0
      %468 = vmatprep.mubr.bf16.mxu0 0
      %469 = vmatmul.mubr.bf16.gmra.mxu0 %v369
      %v470 = vpop.f32.mrf.mxu0
      %v471 = vadd.f32 %v354, %v470
      %v472 = vpop.f32.mrf.mxu0
      %v473 = vpop.f32.mrf.mxu0
      %v474 = vadd.f32 %v357, %v473
      %v475 = vpop.f32.mrf.mxu0
      %476 = vmatprep.mubr.bf16.mxu0 0
      %477 = vmatmul.mubr.bf16.gmra.mxu0 %v372
      %v478 = vpop.f32.mrf.mxu0
      %v479 = vadd.f32 %v362, %v478
      %v480 = vpop.f32.mrf.mxu0
      %v481 = vpop.f32.mrf.mxu0
      %v482 = vadd.f32 %v365, %v481
      %v483 = vpop.f32.mrf.mxu0
      %484 = vdwg.mxu0
      %v485 = vld [vmem:[%s205] sm:$0xff]
      %v486 = vld [vmem:[%s205 + $0x8] sm:$0xf]
      %s487 = scalar_lea.vmem %s1, 64
      %v488 = vld [vmem:[%s487] sm:$0xff]
      %v489 = vld [vmem:[%s487 + $0x8] sm:$0xff]
      %v490 = vld [vmem:[%s487 + $0x10] sm:$0xff]
      %v491 = vld [vmem:[%s487 + $0x18] sm:$0xff]
      %v492 = vpack.c.bf16 %v489, %v488
      %v493 = vpack.c.bf16 %v491, %v490
      %v495 = vcombine.high %v485, %v485
      %v497 = vpack.c.bf16 %v485, %v485
      %v498 = vpack.c.bf16 %v495, %v495
      %v499 = vpack.c.bf16 %v486, %v486
      %503 = vrot.lane.b32.xlu0 %v497, 126
      %v504 = vpop.permute.xlu0 %503
      %505 = vrot.lane.b32.xlu0 %v498, 126
      %v506 = vpop.permute.xlu0 %505
      %507 = vrot.lane.b32.xlu0 %v499, 126
      %v508 = vpop.permute.xlu0 %507
      %vm509 = vcmask 1031168
      %v510 = vsel %vm509, %v504, %v506
      %v511 = vsel %vm509, %v506, %v508
      %v513 = vsel %vm249, %v492, 0
      %v516 = vsel %vm249, %v493, 0
      %v519 = vsel %vm256, %v510, 0
      %v522 = vsel %vm256, %v511, 0
      %v525 = vsel %vm256, %v508, 0
      %527 = vmatprep.subr.bf16.mxu0 0
      %528 = vmatpush1.bf16.msra.mxu0 0
      %529 = vmatprep.subr.bf16.mxu0 0
      %530 = vmatpush1.bf16.msra.mxu0 0
      %531 = vmatprep.subr.bf16.mxu0 0
      %532 = vmatpush1.bf16.msra.mxu0 0
      %533 = vmatprep.subr.bf16.mxu0 0
      %534 = vmatpush1.bf16.msra.mxu0 0
      %535 = vmatprep.subr.bf16.mxu0 0
      %536 = vmatpush1.bf16.msra.mxu0 0
      %537 = vmatprep.subr.bf16.mxu0 0
      %538 = vmatpush1.bf16.msra.mxu0 0
      %539 = vmatprep.subr.bf16.mxu0 0
      %540 = vmatpush1.bf16.msra.mxu0 0
      %541 = vmatprep.subr.bf16.mxu0 %v522
      %542 = vmatpush1.bf16.msra.mxu0 %v519
      %543 = vmatprep.subr.bf16.mxu0 0
      %544 = vmatpush2.bf16.msra.mxu0 0
      %545 = vmatprep.subr.bf16.mxu0 0
      %546 = vmatpush2.bf16.msra.mxu0 0
      %547 = vmatprep.subr.bf16.mxu0 0
      %548 = vmatpush2.bf16.msra.mxu0 0
      %549 = vmatprep.subr.bf16.mxu0 0
      %550 = vmatpush2.bf16.msra.mxu0 0
      %551 = vmatprep.subr.bf16.mxu0 0
      %552 = vmatpush2.bf16.msra.mxu0 0
      %553 = vmatprep.subr.bf16.mxu0 0
      %554 = vmatpush2.bf16.msra.mxu0 0
      %555 = vmatprep.subr.bf16.mxu0 0
      %556 = vmatpush2.bf16.msra.mxu0 0
      %557 = vmatprep.subr.bf16.mxu0 0
      %558 = vmatpush2.bf16.msra.mxu0 0
      %559 = vmatprep.mubr.bf16.mxu0 0
      %560 = vmatmul.mubr.bf16.gmra.mxu0 %v513
      %v561 = vpop.f32.mrf.mxu0
      %v562 = vadd.f32 0.0, %v561
      %v563 = vpop.f32.mrf.mxu0
      %v564 = vadd.f32 0.0, %v563
      %v565 = vpop.f32.mrf.mxu0
      %v566 = vadd.f32 0.0, %v565
      %v567 = vpop.f32.mrf.mxu0
      %v568 = vadd.f32 0.0, %v567
      %569 = vmatprep.mubr.bf16.mxu0 0
      %570 = vmatmul.mubr.bf16.gmra.mxu0 %v516
      %v571 = vpop.f32.mrf.mxu0
      %v572 = vadd.f32 0.0, %v571
      %v573 = vpop.f32.mrf.mxu0
      %v574 = vadd.f32 0.0, %v573
      %v575 = vpop.f32.mrf.mxu0
      %v576 = vadd.f32 0.0, %v575
      %v577 = vpop.f32.mrf.mxu0
      %v578 = vadd.f32 0.0, %v577
      %579 = vdwg.mxu0
      %580 = vmatprep.subr.bf16.mxu0 0
      %581 = vmatpush1.bf16.msra.mxu0 0
      %582 = vmatprep.subr.bf16.mxu0 0
      %583 = vmatpush1.bf16.msra.mxu0 0
      %584 = vmatprep.subr.bf16.mxu0 0
      %585 = vmatpush1.bf16.msra.mxu0 0
      %586 = vmatprep.subr.bf16.mxu0 0
      %587 = vmatpush1.bf16.msra.mxu0 0
      %588 = vmatprep.subr.bf16.mxu0 0
      %589 = vmatpush1.bf16.msra.mxu0 0
      %590 = vmatprep.subr.bf16.mxu0 0
      %591 = vmatpush1.bf16.msra.mxu0 0
      %592 = vmatprep.subr.bf16.mxu0 0
      %593 = vmatpush1.bf16.msra.mxu0 0
      %594 = vmatprep.subr.bf16.mxu0 0
      %595 = vmatpush1.bf16.msra.mxu0 %v525
      %596 = vmatprep.subr.bf16.mxu0 0
      %597 = vmatpush2.bf16.msra.mxu0 0
      %598 = vmatprep.subr.bf16.mxu0 0
      %599 = vmatpush2.bf16.msra.mxu0 0
      %600 = vmatprep.subr.bf16.mxu0 0
      %601 = vmatpush2.bf16.msra.mxu0 0
      %602 = vmatprep.subr.bf16.mxu0 0
      %603 = vmatpush2.bf16.msra.mxu0 0
      %604 = vmatprep.subr.bf16.mxu0 0
      %605 = vmatpush2.bf16.msra.mxu0 0
      %606 = vmatprep.subr.bf16.mxu0 0
      %607 = vmatpush2.bf16.msra.mxu0 0
      %608 = vmatprep.subr.bf16.mxu0 0
      %609 = vmatpush2.bf16.msra.mxu0 0
      %610 = vmatprep.subr.bf16.mxu0 0
      %611 = vmatpush2.bf16.msra.mxu0 0
      %612 = vmatprep.mubr.bf16.mxu0 0
      %613 = vmatmul.mubr.bf16.gmra.mxu0 %v513
      %v614 = vpop.f32.mrf.mxu0
      %v615 = vadd.f32 0.0, %v614
      %v616 = vpop.f32.mrf.mxu0
      %v617 = vpop.f32.mrf.mxu0
      %v618 = vadd.f32 0.0, %v617
      %v619 = vpop.f32.mrf.mxu0
      %620 = vmatprep.mubr.bf16.mxu0 0
      %621 = vmatmul.mubr.bf16.gmra.mxu0 %v516
      %v622 = vpop.f32.mrf.mxu0
      %v623 = vadd.f32 0.0, %v622
      %v624 = vpop.f32.mrf.mxu0
      %v625 = vpop.f32.mrf.mxu0
      %v626 = vadd.f32 0.0, %v625
      %v627 = vpop.f32.mrf.mxu0
      %628 = vdwg.mxu0
      %v629 = vadd.f32 %v418, %v562
      %v630 = vadd.f32 %v420, %v564
      %v631 = vadd.f32 %v471, %v615
      %v632 = vadd.f32 %v422, %v566
      %v633 = vadd.f32 %v424, %v568
      %v634 = vadd.f32 %v474, %v618
      %v635 = vadd.f32 %v428, %v572
      %v636 = vadd.f32 %v430, %v574
      %v637 = vadd.f32 %v479, %v623
      %v638 = vadd.f32 %v432, %v576
      %v639 = vadd.f32 %v434, %v578
      %v640 = vadd.f32 %v482, %v626
      %v641 = vld [vmem:[%s205] sm:$0xff]
      %v642 = vld [vmem:[%s205 + $0x8] sm:$0xf]
      %s643 = scalar_lea.vmem %s1, 96
      %v644 = vld [vmem:[%s643] sm:$0xff]
      %v645 = vld [vmem:[%s643 + $0x8] sm:$0xff]
      %v646 = vld [vmem:[%s643 + $0x10] sm:$0xff]
      %v647 = vld [vmem:[%s643 + $0x18] sm:$0xff]
      %v648 = vpack.c.bf16 %v645, %v644
      %v649 = vpack.c.bf16 %v647, %v646
      %v651 = vcombine.high %v641, %v641
      %v653 = vpack.c.bf16 %v641, %v641
      %v654 = vpack.c.bf16 %v651, %v651
      %v655 = vpack.c.bf16 %v642, %v642
      %659 = vrot.lane.b32.xlu0 %v653, 110
      %v660 = vpop.permute.xlu0 %659
      %661 = vrot.lane.b32.xlu0 %v654, 110
      %v662 = vpop.permute.xlu0 %661
      %663 = vrot.lane.b32.xlu0 %v655, 110
      %v664 = vpop.permute.xlu0 %663
      %vm665 = vcmask 900096
      %v666 = vsel %vm665, %v660, %v662
      %v667 = vsel %vm665, %v662, %v664
      %v669 = vsel %vm249, %v648, 0
      %v672 = vsel %vm249, %v649, 0
      %v675 = vsel %vm256, %v666, 0
      %v678 = vsel %vm256, %v667, 0
      %v681 = vsel %vm256, %v664, 0
      %683 = vmatprep.subr.bf16.mxu0 0
      %684 = vmatpush1.bf16.msra.mxu0 0
      %685 = vmatprep.subr.bf16.mxu0 0
      %686 = vmatpush1.bf16.msra.mxu0 0
      %687 = vmatprep.subr.bf16.mxu0 0
      %688 = vmatpush1.bf16.msra.mxu0 0
      %689 = vmatprep.subr.bf16.mxu0 0
      %690 = vmatpush1.bf16.msra.mxu0 0
      %691 = vmatprep.subr.bf16.mxu0 0
      %692 = vmatpush1.bf16.msra.mxu0 0
      %693 = vmatprep.subr.bf16.mxu0 0
      %694 = vmatpush1.bf16.msra.mxu0 0
      %695 = vmatprep.subr.bf16.mxu0 0
      %696 = vmatpush1.bf16.msra.mxu0 0
      %697 = vmatprep.subr.bf16.mxu0 %v678
      %698 = vmatpush1.bf16.msra.mxu0 %v675
      %699 = vmatprep.subr.bf16.mxu0 0
      %700 = vmatpush2.bf16.msra.mxu0 0
      %701 = vmatprep.subr.bf16.mxu0 0
      %702 = vmatpush2.bf16.msra.mxu0 0
      %703 = vmatprep.subr.bf16.mxu0 0
      %704 = vmatpush2.bf16.msra.mxu0 0
      %705 = vmatprep.subr.bf16.mxu0 0
      %706 = vmatpush2.bf16.msra.mxu0 0
      %707 = vmatprep.subr.bf16.mxu0 0
      %708 = vmatpush2.bf16.msra.mxu0 0
      %709 = vmatprep.subr.bf16.mxu0 0
      %710 = vmatpush2.bf16.msra.mxu0 0
      %711 = vmatprep.subr.bf16.mxu0 0
      %712 = vmatpush2.bf16.msra.mxu0 0
      %713 = vmatprep.subr.bf16.mxu0 0
      %714 = vmatpush2.bf16.msra.mxu0 0
      %715 = vmatprep.mubr.bf16.mxu0 0
      %716 = vmatmul.mubr.bf16.gmra.mxu0 %v669
      %v717 = vpop.f32.mrf.mxu0
      %v718 = vadd.f32 0.0, %v717
      %v719 = vpop.f32.mrf.mxu0
      %v720 = vadd.f32 0.0, %v719
      %v721 = vpop.f32.mrf.mxu0
      %v722 = vadd.f32 0.0, %v721
      %v723 = vpop.f32.mrf.mxu0
      %v724 = vadd.f32 0.0, %v723
      %725 = vmatprep.mubr.bf16.mxu0 0
      %726 = vmatmul.mubr.bf16.gmra.mxu0 %v672
      %v727 = vpop.f32.mrf.mxu0
      %v728 = vadd.f32 0.0, %v727
      %v729 = vpop.f32.mrf.mxu0
      %v730 = vadd.f32 0.0, %v729
      %v731 = vpop.f32.mrf.mxu0
      %v732 = vadd.f32 0.0, %v731
      %v733 = vpop.f32.mrf.mxu0
      %v734 = vadd.f32 0.0, %v733
      %735 = vdwg.mxu0
      %736 = vmatprep.subr.bf16.mxu0 0
      %737 = vmatpush1.bf16.msra.mxu0 0
      %738 = vmatprep.subr.bf16.mxu0 0
      %739 = vmatpush1.bf16.msra.mxu0 0
      %740 = vmatprep.subr.bf16.mxu0 0
      %741 = vmatpush1.bf16.msra.mxu0 0
      %742 = vmatprep.subr.bf16.mxu0 0
      %743 = vmatpush1.bf16.msra.mxu0 0
      %744 = vmatprep.subr.bf16.mxu0 0
      %745 = vmatpush1.bf16.msra.mxu0 0
      %746 = vmatprep.subr.bf16.mxu0 0
      %747 = vmatpush1.bf16.msra.mxu0 0
      %748 = vmatprep.subr.bf16.mxu0 0
      %749 = vmatpush1.bf16.msra.mxu0 0
      %750 = vmatprep.subr.bf16.mxu0 0
      %751 = vmatpush1.bf16.msra.mxu0 %v681
      %752 = vmatprep.subr.bf16.mxu0 0
      %753 = vmatpush2.bf16.msra.mxu0 0
      %754 = vmatprep.subr.bf16.mxu0 0
      %755 = vmatpush2.bf16.msra.mxu0 0
      %756 = vmatprep.subr.bf16.mxu0 0
      %757 = vmatpush2.bf16.msra.mxu0 0
      %758 = vmatprep.subr.bf16.mxu0 0
      %759 = vmatpush2.bf16.msra.mxu0 0
      %760 = vmatprep.subr.bf16.mxu0 0
      %761 = vmatpush2.bf16.msra.mxu0 0
      %762 = vmatprep.subr.bf16.mxu0 0
      %763 = vmatpush2.bf16.msra.mxu0 0
      %764 = vmatprep.subr.bf16.mxu0 0
      %765 = vmatpush2.bf16.msra.mxu0 0
      %766 = vmatprep.subr.bf16.mxu0 0
      %767 = vmatpush2.bf16.msra.mxu0 0
      %768 = vmatprep.mubr.bf16.mxu0 0
      %769 = vmatmul.mubr.bf16.gmra.mxu0 %v669
      %v770 = vpop.f32.mrf.mxu0
      %v771 = vadd.f32 0.0, %v770
      %v772 = vpop.f32.mrf.mxu0
      %v773 = vpop.f32.mrf.mxu0
      %v774 = vadd.f32 0.0, %v773
      %v775 = vpop.f32.mrf.mxu0
      %776 = vmatprep.mubr.bf16.mxu0 0
      %777 = vmatmul.mubr.bf16.gmra.mxu0 %v672
      %v778 = vpop.f32.mrf.mxu0
      %v779 = vadd.f32 0.0, %v778
      %v780 = vpop.f32.mrf.mxu0
      %v781 = vpop.f32.mrf.mxu0
      %v782 = vadd.f32 0.0, %v781
      %v783 = vpop.f32.mrf.mxu0
      %784 = vdwg.mxu0
      %v785 = vadd.f32 %v629, %v718
      %v786 = vadd.f32 %v630, %v720
      %v787 = vadd.f32 %v631, %v771
      %v788 = vadd.f32 %v632, %v722
      %v789 = vadd.f32 %v633, %v724
      %v790 = vadd.f32 %v634, %v774
      %v791 = vadd.f32 %v635, %v728
      %v792 = vadd.f32 %v636, %v730
      %v793 = vadd.f32 %v637, %v779
      %v794 = vadd.f32 %v638, %v732
      %v795 = vadd.f32 %v639, %v734
      %v796 = vadd.f32 %v640, %v782
      %v797 = vld [vmem:[%s205] sm:$0xff]
      %v798 = vld [vmem:[%s205 + $0x8] sm:$0xf]
      %s799 = scalar_lea.vmem %s1, 128
      %v800 = vld [vmem:[%s799] sm:$0xff]
      %v801 = vld [vmem:[%s799 + $0x8] sm:$0xff]
      %v802 = vld [vmem:[%s799 + $0x10] sm:$0xff]
      %v803 = vld [vmem:[%s799 + $0x18] sm:$0xff]
      %v804 = vpack.c.bf16 %v801, %v800
      %v805 = vpack.c.bf16 %v803, %v802
      %v807 = vcombine.high %v797, %v797
      %v809 = vpack.c.bf16 %v797, %v797
      %v810 = vpack.c.bf16 %v807, %v807
      %v811 = vpack.c.bf16 %v798, %v798
      %815 = vrot.lane.b32.xlu0 %v809, 109
      %v816 = vpop.permute.xlu0 %815
      %817 = vrot.lane.b32.xlu0 %v810, 109
      %v818 = vpop.permute.xlu0 %817
      %819 = vrot.lane.b32.xlu0 %v811, 109
      %v820 = vpop.permute.xlu0 %819
      %vm821 = vcmask 891904
      %v822 = vsel %vm821, %v816, %v818
      %v823 = vsel %vm821, %v818, %v820
      %v825 = vsel %vm249, %v804, 0
      %v828 = vsel %vm249, %v805, 0
      %v831 = vsel %vm256, %v822, 0
      %v834 = vsel %vm256, %v823, 0
      %v837 = vsel %vm256, %v820, 0
      %839 = vmatprep.subr.bf16.mxu0 0
      %840 = vmatpush1.bf16.msra.mxu0 0
      %841 = vmatprep.subr.bf16.mxu0 0
      %842 = vmatpush1.bf16.msra.mxu0 0
      %843 = vmatprep.subr.bf16.mxu0 0
      %844 = vmatpush1.bf16.msra.mxu0 0
      %845 = vmatprep.subr.bf16.mxu0 0
      %846 = vmatpush1.bf16.msra.mxu0 0
      %847 = vmatprep.subr.bf16.mxu0 0
      %848 = vmatpush1.bf16.msra.mxu0 0
      %849 = vmatprep.subr.bf16.mxu0 0
      %850 = vmatpush1.bf16.msra.mxu0 0
      %851 = vmatprep.subr.bf16.mxu0 0
      %852 = vmatpush1.bf16.msra.mxu0 0
      %853 = vmatprep.subr.bf16.mxu0 %v834
      %854 = vmatpush1.bf16.msra.mxu0 %v831
      %855 = vmatprep.subr.bf16.mxu0 0
      %856 = vmatpush2.bf16.msra.mxu0 0
      %857 = vmatprep.subr.bf16.mxu0 0
      %858 = vmatpush2.bf16.msra.mxu0 0
      %859 = vmatprep.subr.bf16.mxu0 0
      %860 = vmatpush2.bf16.msra.mxu0 0
      %861 = vmatprep.subr.bf16.mxu0 0
      %862 = vmatpush2.bf16.msra.mxu0 0
      %863 = vmatprep.subr.bf16.mxu0 0
      %864 = vmatpush2.bf16.msra.mxu0 0
      %865 = vmatprep.subr.bf16.mxu0 0
      %866 = vmatpush2.bf16.msra.mxu0 0
      %867 = vmatprep.subr.bf16.mxu0 0
      %868 = vmatpush2.bf16.msra.mxu0 0
      %869 = vmatprep.subr.bf16.mxu0 0
      %870 = vmatpush2.bf16.msra.mxu0 0
      %871 = vmatprep.mubr.bf16.mxu0 0
      %872 = vmatmul.mubr.bf16.gmra.mxu0 %v825
      %v873 = vpop.f32.mrf.mxu0
      %v874 = vadd.f32 0.0, %v873
      %v875 = vpop.f32.mrf.mxu0
      %v876 = vadd.f32 0.0, %v875
      %v877 = vpop.f32.mrf.mxu0
      %v878 = vadd.f32 0.0, %v877
      %v879 = vpop.f32.mrf.mxu0
      %v880 = vadd.f32 0.0, %v879
      %881 = vmatprep.mubr.bf16.mxu0 0
      %882 = vmatmul.mubr.bf16.gmra.mxu0 %v828
      %v883 = vpop.f32.mrf.mxu0
      %v884 = vadd.f32 0.0, %v883
      %v885 = vpop.f32.mrf.mxu0
      %v886 = vadd.f32 0.0, %v885
      %v887 = vpop.f32.mrf.mxu0
      %v888 = vadd.f32 0.0, %v887
      %v889 = vpop.f32.mrf.mxu0
      %v890 = vadd.f32 0.0, %v889
      %891 = vdwg.mxu0
      %892 = vmatprep.subr.bf16.mxu0 0
      %893 = vmatpush1.bf16.msra.mxu0 0
      %894 = vmatprep.subr.bf16.mxu0 0
      %895 = vmatpush1.bf16.msra.mxu0 0
      %896 = vmatprep.subr.bf16.mxu0 0
      %897 = vmatpush1.bf16.msra.mxu0 0
      %898 = vmatprep.subr.bf16.mxu0 0
      %899 = vmatpush1.bf16.msra.mxu0 0
      %900 = vmatprep.subr.bf16.mxu0 0
      %901 = vmatpush1.bf16.msra.mxu0 0
      %902 = vmatprep.subr.bf16.mxu0 0
      %903 = vmatpush1.bf16.msra.mxu0 0
      %904 = vmatprep.subr.bf16.mxu0 0
      %905 = vmatpush1.bf16.msra.mxu0 0
      %906 = vmatprep.subr.bf16.mxu0 0
      %907 = vmatpush1.bf16.msra.mxu0 %v837
      %908 = vmatprep.subr.bf16.mxu0 0
      %909 = vmatpush2.bf16.msra.mxu0 0
      %910 = vmatprep.subr.bf16.mxu0 0
      %911 = vmatpush2.bf16.msra.mxu0 0
      %912 = vmatprep.subr.bf16.mxu0 0
      %913 = vmatpush2.bf16.msra.mxu0 0
      %914 = vmatprep.subr.bf16.mxu0 0
      %915 = vmatpush2.bf16.msra.mxu0 0
      %916 = vmatprep.subr.bf16.mxu0 0
      %917 = vmatpush2.bf16.msra.mxu0 0
      %918 = vmatprep.subr.bf16.mxu0 0
      %919 = vmatpush2.bf16.msra.mxu0 0
      %920 = vmatprep.subr.bf16.mxu0 0
      %921 = vmatpush2.bf16.msra.mxu0 0
      %922 = vmatprep.subr.bf16.mxu0 0
      %923 = vmatpush2.bf16.msra.mxu0 0
      %924 = vmatprep.mubr.bf16.mxu0 0
      %925 = vmatmul.mubr.bf16.gmra.mxu0 %v825
      %v926 = vpop.f32.mrf.mxu0
      %v927 = vadd.f32 0.0, %v926
      %v928 = vpop.f32.mrf.mxu0
      %v929 = vpop.f32.mrf.mxu0
      %v930 = vadd.f32 0.0, %v929
      %v931 = vpop.f32.mrf.mxu0
      %932 = vmatprep.mubr.bf16.mxu0 0
      %933 = vmatmul.mubr.bf16.gmra.mxu0 %v828
      %v934 = vpop.f32.mrf.mxu0
      %v935 = vadd.f32 0.0, %v934
      %v936 = vpop.f32.mrf.mxu0
      %v937 = vpop.f32.mrf.mxu0
      %v938 = vadd.f32 0.0, %v937
      %v939 = vpop.f32.mrf.mxu0
      %940 = vdwg.mxu0
      %v941 = vadd.f32 %v785, %v874
      %v942 = vadd.f32 %v786, %v876
      %v943 = vadd.f32 %v787, %v927
      %v944 = vadd.f32 %v788, %v878
      %v945 = vadd.f32 %v789, %v880
      %v946 = vadd.f32 %v790, %v930
      %v947 = vadd.f32 %v791, %v884
      %v948 = vadd.f32 %v792, %v886
      %v949 = vadd.f32 %v793, %v935
      %v950 = vadd.f32 %v794, %v888
      %v951 = vadd.f32 %v795, %v890
      %v952 = vadd.f32 %v796, %v938
      %v953 = vld [vmem:[%s205] sm:$0xff]
      %v954 = vld [vmem:[%s205 + $0x8] sm:$0xf]
      %s955 = scalar_lea.vmem %s1, 160
      %v956 = vld [vmem:[%s955] sm:$0xff]
      %v957 = vld [vmem:[%s955 + $0x8] sm:$0xff]
      %v958 = vld [vmem:[%s955 + $0x10] sm:$0xff]
      %v959 = vld [vmem:[%s955 + $0x18] sm:$0xff]
      %v960 = vpack.c.bf16 %v957, %v956
      %v961 = vpack.c.bf16 %v959, %v958
      %v963 = vcombine.high %v953, %v953
      %v965 = vpack.c.bf16 %v953, %v953
      %v966 = vpack.c.bf16 %v963, %v963
      %v967 = vpack.c.bf16 %v954, %v954
      %971 = vrot.lane.b32.xlu0 %v965, 108
      %v972 = vpop.permute.xlu0 %971
      %973 = vrot.lane.b32.xlu0 %v966, 108
      %v974 = vpop.permute.xlu0 %973
      %975 = vrot.lane.b32.xlu0 %v967, 108
      %v976 = vpop.permute.xlu0 %975
      %vm977 = vcmask 883712
      %v978 = vsel %vm977, %v972, %v974
      %v979 = vsel %vm977, %v974, %v976
      %v981 = vsel %vm249, %v960, 0
      %v984 = vsel %vm249, %v961, 0
      %v987 = vsel %vm256, %v978, 0
      %v990 = vsel %vm256, %v979, 0
      %v993 = vsel %vm256, %v976, 0
      %995 = vmatprep.subr.bf16.mxu0 0
      %996 = vmatpush1.bf16.msra.mxu0 0
      %997 = vmatprep.subr.bf16.mxu0 0
      %998 = vmatpush1.bf16.msra.mxu0 0
      %999 = vmatprep.subr.bf16.mxu0 0
      %1000 = vmatpush1.bf16.msra.mxu0 0
      %1001 = vmatprep.subr.bf16.mxu0 0
      %1002 = vmatpush1.bf16.msra.mxu0 0
      %1003 = vmatprep.subr.bf16.mxu0 0
      %1004 = vmatpush1.bf16.msra.mxu0 0
      %1005 = vmatprep.subr.bf16.mxu0 0
      %1006 = vmatpush1.bf16.msra.mxu0 0
      %1007 = vmatprep.subr.bf16.mxu0 0
      %1008 = vmatpush1.bf16.msra.mxu0 0
      %1009 = vmatprep.subr.bf16.mxu0 %v990
      %1010 = vmatpush1.bf16.msra.mxu0 %v987
      %1011 = vmatprep.subr.bf16.mxu0 0
      %1012 = vmatpush2.bf16.msra.mxu0 0
      %1013 = vmatprep.subr.bf16.mxu0 0
      %1014 = vmatpush2.bf16.msra.mxu0 0
      %1015 = vmatprep.subr.bf16.mxu0 0
      %1016 = vmatpush2.bf16.msra.mxu0 0
      %1017 = vmatprep.subr.bf16.mxu0 0
      %1018 = vmatpush2.bf16.msra.mxu0 0
      %1019 = vmatprep.subr.bf16.mxu0 0
      %1020 = vmatpush2.bf16.msra.mxu0 0
      %1021 = vmatprep.subr.bf16.mxu0 0
      %1022 = vmatpush2.bf16.msra.mxu0 0
      %1023 = vmatprep.subr.bf16.mxu0 0
      %1024 = vmatpush2.bf16.msra.mxu0 0
      %1025 = vmatprep.subr.bf16.mxu0 0
      %1026 = vmatpush2.bf16.msra.mxu0 0
      %1027 = vmatprep.mubr.bf16.mxu0 0
      %1028 = vmatmul.mubr.bf16.gmra.mxu0 %v981
      %v1029 = vpop.f32.mrf.mxu0
      %v1030 = vadd.f32 0.0, %v1029
      %v1031 = vpop.f32.mrf.mxu0
      %v1032 = vadd.f32 0.0, %v1031
      %v1033 = vpop.f32.mrf.mxu0
      %v1034 = vadd.f32 0.0, %v1033
      %v1035 = vpop.f32.mrf.mxu0
      %v1036 = vadd.f32 0.0, %v1035
      %1037 = vmatprep.mubr.bf16.mxu0 0
      %1038 = vmatmul.mubr.bf16.gmra.mxu0 %v984
      %v1039 = vpop.f32.mrf.mxu0
      %v1040 = vadd.f32 0.0, %v1039
      %v1041 = vpop.f32.mrf.mxu0
      %v1042 = vadd.f32 0.0, %v1041
      %v1043 = vpop.f32.mrf.mxu0
      %v1044 = vadd.f32 0.0, %v1043
      %v1045 = vpop.f32.mrf.mxu0
      %v1046 = vadd.f32 0.0, %v1045
      %1047 = vdwg.mxu0
      %1048 = vmatprep.subr.bf16.mxu0 0
      %1049 = vmatpush1.bf16.msra.mxu0 0
      %1050 = vmatprep.subr.bf16.mxu0 0
      %1051 = vmatpush1.bf16.msra.mxu0 0
      %1052 = vmatprep.subr.bf16.mxu0 0
      %1053 = vmatpush1.bf16.msra.mxu0 0
      %1054 = vmatprep.subr.bf16.mxu0 0
      %1055 = vmatpush1.bf16.msra.mxu0 0
      %1056 = vmatprep.subr.bf16.mxu0 0
      %1057 = vmatpush1.bf16.msra.mxu0 0
      %1058 = vmatprep.subr.bf16.mxu0 0
      %1059 = vmatpush1.bf16.msra.mxu0 0
      %1060 = vmatprep.subr.bf16.mxu0 0
      %1061 = vmatpush1.bf16.msra.mxu0 0
      %1062 = vmatprep.subr.bf16.mxu0 0
      %1063 = vmatpush1.bf16.msra.mxu0 %v993
      %1064 = vmatprep.subr.bf16.mxu0 0
      %1065 = vmatpush2.bf16.msra.mxu0 0
      %1066 = vmatprep.subr.bf16.mxu0 0
      %1067 = vmatpush2.bf16.msra.mxu0 0
      %1068 = vmatprep.subr.bf16.mxu0 0
      %1069 = vmatpush2.bf16.msra.mxu0 0
      %1070 = vmatprep.subr.bf16.mxu0 0
      %1071 = vmatpush2.bf16.msra.mxu0 0
      %1072 = vmatprep.subr.bf16.mxu0 0
      %1073 = vmatpush2.bf16.msra.mxu0 0
      %1074 = vmatprep.subr.bf16.mxu0 0
      %1075 = vmatpush2.bf16.msra.mxu0 0
      %1076 = vmatprep.subr.bf16.mxu0 0
      %1077 = vmatpush2.bf16.msra.mxu0 0
      %1078 = vmatprep.subr.bf16.mxu0 0
      %1079 = vmatpush2.bf16.msra.mxu0 0
      %1080 = vmatprep.mubr.bf16.mxu0 0
      %1081 = vmatmul.mubr.bf16.gmra.mxu0 %v981
      %v1082 = vpop.f32.mrf.mxu0
      %v1083 = vadd.f32 0.0, %v1082
      %v1084 = vpop.f32.mrf.mxu0
      %v1085 = vpop.f32.mrf.mxu0
      %v1086 = vadd.f32 0.0, %v1085
      %v1087 = vpop.f32.mrf.mxu0
      %1088 = vmatprep.mubr.bf16.mxu0 0
      %1089 = vmatmul.mubr.bf16.gmra.mxu0 %v984
      %v1090 = vpop.f32.mrf.mxu0
      %v1091 = vadd.f32 0.0, %v1090
      %v1092 = vpop.f32.mrf.mxu0
      %v1093 = vpop.f32.mrf.mxu0
      %v1094 = vadd.f32 0.0, %v1093
      %v1095 = vpop.f32.mrf.mxu0
      %1096 = vdwg.mxu0
      %v1097 = vadd.f32 %v941, %v1030
      %v1098 = vadd.f32 %v942, %v1032
      %v1099 = vadd.f32 %v943, %v1083
      %v1100 = vadd.f32 %v944, %v1034
      %v1101 = vadd.f32 %v945, %v1036
      %v1102 = vadd.f32 %v946, %v1086
      %v1103 = vadd.f32 %v947, %v1040
      %v1104 = vadd.f32 %v948, %v1042
      %v1105 = vadd.f32 %v949, %v1091
      %v1106 = vadd.f32 %v950, %v1044
      %v1107 = vadd.f32 %v951, %v1046
      %v1108 = vadd.f32 %v952, %v1094
      %v1109 = vld [vmem:[%s205] sm:$0xff]
      %v1110 = vld [vmem:[%s205 + $0x8] sm:$0xf]
      %s1111 = scalar_lea.vmem %s1, 192
      %v1112 = vld [vmem:[%s1111] sm:$0xff]
      %v1113 = vld [vmem:[%s1111 + $0x8] sm:$0xff]
      %v1114 = vld [vmem:[%s1111 + $0x10] sm:$0xff]
      %v1115 = vld [vmem:[%s1111 + $0x18] sm:$0xff]
      %v1116 = vpack.c.bf16 %v1113, %v1112
      %v1117 = vpack.c.bf16 %v1115, %v1114
      %v1119 = vcombine.high %v1109, %v1109
      %v1121 = vpack.c.bf16 %v1109, %v1109
      %v1122 = vpack.c.bf16 %v1119, %v1119
      %v1123 = vpack.c.bf16 %v1110, %v1110
      %1127 = vrot.lane.b32.xlu0 %v1121, 92
      %v1128 = vpop.permute.xlu0 %1127
      %1129 = vrot.lane.b32.xlu0 %v1122, 92
      %v1130 = vpop.permute.xlu0 %1129
      %1131 = vrot.lane.b32.xlu0 %v1123, 92
      %v1132 = vpop.permute.xlu0 %1131
      %vm1133 = vcmask 752640
      %v1134 = vsel %vm1133, %v1128, %v1130
      %v1135 = vsel %vm1133, %v1130, %v1132
      %v1137 = vsel %vm249, %v1116, 0
      %v1140 = vsel %vm249, %v1117, 0
      %v1143 = vsel %vm256, %v1134, 0
      %v1146 = vsel %vm256, %v1135, 0
      %v1149 = vsel %vm256, %v1132, 0
      %1151 = vmatprep.subr.bf16.mxu0 0
      %1152 = vmatpush1.bf16.msra.mxu0 0
      %1153 = vmatprep.subr.bf16.mxu0 0
      %1154 = vmatpush1.bf16.msra.mxu0 0
      %1155 = vmatprep.subr.bf16.mxu0 0
      %1156 = vmatpush1.bf16.msra.mxu0 0
      %1157 = vmatprep.subr.bf16.mxu0 0
      %1158 = vmatpush1.bf16.msra.mxu0 0
      %1159 = vmatprep.subr.bf16.mxu0 0
      %1160 = vmatpush1.bf16.msra.mxu0 0
      %1161 = vmatprep.subr.bf16.mxu0 0
      %1162 = vmatpush1.bf16.msra.mxu0 0
      %1163 = vmatprep.subr.bf16.mxu0 0
      %1164 = vmatpush1.bf16.msra.mxu0 0
      %1165 = vmatprep.subr.bf16.mxu0 %v1146
      %1166 = vmatpush1.bf16.msra.mxu0 %v1143
      %1167 = vmatprep.subr.bf16.mxu0 0
      %1168 = vmatpush2.bf16.msra.mxu0 0
      %1169 = vmatprep.subr.bf16.mxu0 0
      %1170 = vmatpush2.bf16.msra.mxu0 0
      %1171 = vmatprep.subr.bf16.mxu0 0
      %1172 = vmatpush2.bf16.msra.mxu0 0
      %1173 = vmatprep.subr.bf16.mxu0 0
      %1174 = vmatpush2.bf16.msra.mxu0 0
      %1175 = vmatprep.subr.bf16.mxu0 0
      %1176 = vmatpush2.bf16.msra.mxu0 0
      %1177 = vmatprep.subr.bf16.mxu0 0
      %1178 = vmatpush2.bf16.msra.mxu0 0
      %1179 = vmatprep.subr.bf16.mxu0 0
      %1180 = vmatpush2.bf16.msra.mxu0 0
      %1181 = vmatprep.subr.bf16.mxu0 0
      %1182 = vmatpush2.bf16.msra.mxu0 0
      %1183 = vmatprep.mubr.bf16.mxu0 0
      %1184 = vmatmul.mubr.bf16.gmra.mxu0 %v1137
      %v1185 = vpop.f32.mrf.mxu0
      %v1186 = vadd.f32 0.0, %v1185
      %v1187 = vpop.f32.mrf.mxu0
      %v1188 = vadd.f32 0.0, %v1187
      %v1189 = vpop.f32.mrf.mxu0
      %v1190 = vadd.f32 0.0, %v1189
      %v1191 = vpop.f32.mrf.mxu0
      %v1192 = vadd.f32 0.0, %v1191
      %1193 = vmatprep.mubr.bf16.mxu0 0
      %1194 = vmatmul.mubr.bf16.gmra.mxu0 %v1140
      %v1195 = vpop.f32.mrf.mxu0
      %v1196 = vadd.f32 0.0, %v1195
      %v1197 = vpop.f32.mrf.mxu0
      %v1198 = vadd.f32 0.0, %v1197
      %v1199 = vpop.f32.mrf.mxu0
      %v1200 = vadd.f32 0.0, %v1199
      %v1201 = vpop.f32.mrf.mxu0
      %v1202 = vadd.f32 0.0, %v1201
      %1203 = vdwg.mxu0
      %1204 = vmatprep.subr.bf16.mxu0 0
      %1205 = vmatpush1.bf16.msra.mxu0 0
      %1206 = vmatprep.subr.bf16.mxu0 0
      %1207 = vmatpush1.bf16.msra.mxu0 0
      %1208 = vmatprep.subr.bf16.mxu0 0
      %1209 = vmatpush1.bf16.msra.mxu0 0
      %1210 = vmatprep.subr.bf16.mxu0 0
      %1211 = vmatpush1.bf16.msra.mxu0 0
      %1212 = vmatprep.subr.bf16.mxu0 0
      %1213 = vmatpush1.bf16.msra.mxu0 0
      %1214 = vmatprep.subr.bf16.mxu0 0
      %1215 = vmatpush1.bf16.msra.mxu0 0
      %1216 = vmatprep.subr.bf16.mxu0 0
      %1217 = vmatpush1.bf16.msra.mxu0 0
      %1218 = vmatprep.subr.bf16.mxu0 0
      %1219 = vmatpush1.bf16.msra.mxu0 %v1149
      %1220 = vmatprep.subr.bf16.mxu0 0
      %1221 = vmatpush2.bf16.msra.mxu0 0
      %1222 = vmatprep.subr.bf16.mxu0 0
      %1223 = vmatpush2.bf16.msra.mxu0 0
      %1224 = vmatprep.subr.bf16.mxu0 0
      %1225 = vmatpush2.bf16.msra.mxu0 0
      %1226 = vmatprep.subr.bf16.mxu0 0
      %1227 = vmatpush2.bf16.msra.mxu0 0
      %1228 = vmatprep.subr.bf16.mxu0 0
      %1229 = vmatpush2.bf16.msra.mxu0 0
      %1230 = vmatprep.subr.bf16.mxu0 0
      %1231 = vmatpush2.bf16.msra.mxu0 0
      %1232 = vmatprep.subr.bf16.mxu0 0
      %1233 = vmatpush2.bf16.msra.mxu0 0
      %1234 = vmatprep.subr.bf16.mxu0 0
      %1235 = vmatpush2.bf16.msra.mxu0 0
      %1236 = vmatprep.mubr.bf16.mxu0 0
      %1237 = vmatmul.mubr.bf16.gmra.mxu0 %v1137
      %v1238 = vpop.f32.mrf.mxu0
      %v1239 = vadd.f32 0.0, %v1238
      %v1240 = vpop.f32.mrf.mxu0
      %v1241 = vpop.f32.mrf.mxu0
      %v1242 = vadd.f32 0.0, %v1241
      %v1243 = vpop.f32.mrf.mxu0
      %1244 = vmatprep.mubr.bf16.mxu0 0
      %1245 = vmatmul.mubr.bf16.gmra.mxu0 %v1140
      %v1246 = vpop.f32.mrf.mxu0
      %v1247 = vadd.f32 0.0, %v1246
      %v1248 = vpop.f32.mrf.mxu0
      %v1249 = vpop.f32.mrf.mxu0
      %v1250 = vadd.f32 0.0, %v1249
      %v1251 = vpop.f32.mrf.mxu0
      %1252 = vdwg.mxu0
      %v1253 = vadd.f32 %v1097, %v1186
      %v1254 = vadd.f32 %v1098, %v1188
      %v1255 = vadd.f32 %v1099, %v1239
      %v1256 = vadd.f32 %v1100, %v1190
      %v1257 = vadd.f32 %v1101, %v1192
      %v1258 = vadd.f32 %v1102, %v1242
      %v1259 = vadd.f32 %v1103, %v1196
      %v1260 = vadd.f32 %v1104, %v1198
      %v1261 = vadd.f32 %v1105, %v1247
      %v1262 = vadd.f32 %v1106, %v1200
      %v1263 = vadd.f32 %v1107, %v1202
      %v1264 = vadd.f32 %v1108, %v1250
      %v1265 = vld [vmem:[%s205] sm:$0xff]
      %v1266 = vld [vmem:[%s205 + $0x8] sm:$0xf]
      %s1267 = scalar_lea.vmem %s1, 224
      %v1268 = vld [vmem:[%s1267] sm:$0xff]
      %v1269 = vld [vmem:[%s1267 + $0x8] sm:$0xff]
      %v1270 = vld [vmem:[%s1267 + $0x10] sm:$0xff]
      %v1271 = vld [vmem:[%s1267 + $0x18] sm:$0xff]
      %v1272 = vpack.c.bf16 %v1269, %v1268
      %v1273 = vpack.c.bf16 %v1271, %v1270
      %v1275 = vcombine.high %v1265, %v1265
      %v1277 = vpack.c.bf16 %v1265, %v1265
      %v1278 = vpack.c.bf16 %v1275, %v1275
      %v1279 = vpack.c.bf16 %v1266, %v1266
      %1283 = vrot.lane.b32.xlu0 %v1277, 91
      %v1284 = vpop.permute.xlu0 %1283
      %1285 = vrot.lane.b32.xlu0 %v1278, 91
      %v1286 = vpop.permute.xlu0 %1285
      %1287 = vrot.lane.b32.xlu0 %v1279, 91
      %v1288 = vpop.permute.xlu0 %1287
      %vm1289 = vcmask 744448
      %v1290 = vsel %vm1289, %v1284, %v1286
      %v1291 = vsel %vm1289, %v1286, %v1288
      %v1293 = vsel %vm249, %v1272, 0
      %v1296 = vsel %vm249, %v1273, 0
      %v1299 = vsel %vm256, %v1290, 0
      %v1302 = vsel %vm256, %v1291, 0
      %v1305 = vsel %vm256, %v1288, 0
      %1307 = vmatprep.subr.bf16.mxu0 0
      %1308 = vmatpush1.bf16.msra.mxu0 0
      %1309 = vmatprep.subr.bf16.mxu0 0
      %1310 = vmatpush1.bf16.msra.mxu0 0
      %1311 = vmatprep.subr.bf16.mxu0 0
      %1312 = vmatpush1.bf16.msra.mxu0 0
      %1313 = vmatprep.subr.bf16.mxu0 0
      %1314 = vmatpush1.bf16.msra.mxu0 0
      %1315 = vmatprep.subr.bf16.mxu0 0
      %1316 = vmatpush1.bf16.msra.mxu0 0
      %1317 = vmatprep.subr.bf16.mxu0 0
      %1318 = vmatpush1.bf16.msra.mxu0 0
      %1319 = vmatprep.subr.bf16.mxu0 0
      %1320 = vmatpush1.bf16.msra.mxu0 0
      %1321 = vmatprep.subr.bf16.mxu0 %v1302
      %1322 = vmatpush1.bf16.msra.mxu0 %v1299
      %1323 = vmatprep.subr.bf16.mxu0 0
      %1324 = vmatpush2.bf16.msra.mxu0 0
      %1325 = vmatprep.subr.bf16.mxu0 0
      %1326 = vmatpush2.bf16.msra.mxu0 0
      %1327 = vmatprep.subr.bf16.mxu0 0
      %1328 = vmatpush2.bf16.msra.mxu0 0
      %1329 = vmatprep.subr.bf16.mxu0 0
      %1330 = vmatpush2.bf16.msra.mxu0 0
      %1331 = vmatprep.subr.bf16.mxu0 0
      %1332 = vmatpush2.bf16.msra.mxu0 0
      %1333 = vmatprep.subr.bf16.mxu0 0
      %1334 = vmatpush2.bf16.msra.mxu0 0
      %1335 = vmatprep.subr.bf16.mxu0 0
      %1336 = vmatpush2.bf16.msra.mxu0 0
      %1337 = vmatprep.subr.bf16.mxu0 0
      %1338 = vmatpush2.bf16.msra.mxu0 0
      %1339 = vmatprep.mubr.bf16.mxu0 0
      %1340 = vmatmul.mubr.bf16.gmra.mxu0 %v1293
      %v1341 = vpop.f32.mrf.mxu0
      %v1342 = vadd.f32 0.0, %v1341
      %v1343 = vpop.f32.mrf.mxu0
      %v1344 = vadd.f32 0.0, %v1343
      %v1345 = vpop.f32.mrf.mxu0
      %v1346 = vadd.f32 0.0, %v1345
      %v1347 = vpop.f32.mrf.mxu0
      %v1348 = vadd.f32 0.0, %v1347
      %1349 = vmatprep.mubr.bf16.mxu0 0
      %1350 = vmatmul.mubr.bf16.gmra.mxu0 %v1296
      %v1351 = vpop.f32.mrf.mxu0
      %v1352 = vadd.f32 0.0, %v1351
      %v1353 = vpop.f32.mrf.mxu0
      %v1354 = vadd.f32 0.0, %v1353
      %v1355 = vpop.f32.mrf.mxu0
      %v1356 = vadd.f32 0.0, %v1355
      %v1357 = vpop.f32.mrf.mxu0
      %v1358 = vadd.f32 0.0, %v1357
      %1359 = vdwg.mxu0
      %1360 = vmatprep.subr.bf16.mxu0 0
      %1361 = vmatpush1.bf16.msra.mxu0 0
      %1362 = vmatprep.subr.bf16.mxu0 0
      %1363 = vmatpush1.bf16.msra.mxu0 0
      %1364 = vmatprep.subr.bf16.mxu0 0
      %1365 = vmatpush1.bf16.msra.mxu0 0
      %1366 = vmatprep.subr.bf16.mxu0 0
      %1367 = vmatpush1.bf16.msra.mxu0 0
      %1368 = vmatprep.subr.bf16.mxu0 0
      %1369 = vmatpush1.bf16.msra.mxu0 0
      %1370 = vmatprep.subr.bf16.mxu0 0
      %1371 = vmatpush1.bf16.msra.mxu0 0
      %1372 = vmatprep.subr.bf16.mxu0 0
      %1373 = vmatpush1.bf16.msra.mxu0 0
      %1374 = vmatprep.subr.bf16.mxu0 0
      %1375 = vmatpush1.bf16.msra.mxu0 %v1305
      %1376 = vmatprep.subr.bf16.mxu0 0
      %1377 = vmatpush2.bf16.msra.mxu0 0
      %1378 = vmatprep.subr.bf16.mxu0 0
      %1379 = vmatpush2.bf16.msra.mxu0 0
      %1380 = vmatprep.subr.bf16.mxu0 0
      %1381 = vmatpush2.bf16.msra.mxu0 0
      %1382 = vmatprep.subr.bf16.mxu0 0
      %1383 = vmatpush2.bf16.msra.mxu0 0
      %1384 = vmatprep.subr.bf16.mxu0 0
      %1385 = vmatpush2.bf16.msra.mxu0 0
      %1386 = vmatprep.subr.bf16.mxu0 0
      %1387 = vmatpush2.bf16.msra.mxu0 0
      %1388 = vmatprep.subr.bf16.mxu0 0
      %1389 = vmatpush2.bf16.msra.mxu0 0
      %1390 = vmatprep.subr.bf16.mxu0 0
      %1391 = vmatpush2.bf16.msra.mxu0 0
      %1392 = vmatprep.mubr.bf16.mxu0 0
      %1393 = vmatmul.mubr.bf16.gmra.mxu0 %v1293
      %v1394 = vpop.f32.mrf.mxu0
      %v1395 = vadd.f32 0.0, %v1394
      %v1396 = vpop.f32.mrf.mxu0
      %v1397 = vpop.f32.mrf.mxu0
      %v1398 = vadd.f32 0.0, %v1397
      %v1399 = vpop.f32.mrf.mxu0
      %1400 = vmatprep.mubr.bf16.mxu0 0
      %1401 = vmatmul.mubr.bf16.gmra.mxu0 %v1296
      %v1402 = vpop.f32.mrf.mxu0
      %v1403 = vadd.f32 0.0, %v1402
      %v1404 = vpop.f32.mrf.mxu0
      %v1405 = vpop.f32.mrf.mxu0
      %v1406 = vadd.f32 0.0, %v1405
      %v1407 = vpop.f32.mrf.mxu0
      %1408 = vdwg.mxu0
      %v1409 = vadd.f32 %v1253, %v1342
      %v1410 = vadd.f32 %v1254, %v1344
      %v1411 = vadd.f32 %v1255, %v1395
      %v1412 = vadd.f32 %v1256, %v1346
      %v1413 = vadd.f32 %v1257, %v1348
      %v1414 = vadd.f32 %v1258, %v1398
      %v1415 = vadd.f32 %v1259, %v1352
      %v1416 = vadd.f32 %v1260, %v1354
      %v1417 = vadd.f32 %v1261, %v1403
      %v1418 = vadd.f32 %v1262, %v1356
      %v1419 = vadd.f32 %v1263, %v1358
      %v1420 = vadd.f32 %v1264, %v1406
      %v1421 = vld [vmem:[%s205] sm:$0xff]
      %v1422 = vld [vmem:[%s205 + $0x8] sm:$0xf]
      %s1423 = scalar_lea.vmem %s1, 256
      %v1424 = vld [vmem:[%s1423] sm:$0xff]
      %v1425 = vld [vmem:[%s1423 + $0x8] sm:$0xff]
      %v1426 = vld [vmem:[%s1423 + $0x10] sm:$0xff]
      %v1427 = vld [vmem:[%s1423 + $0x18] sm:$0xff]
      %v1428 = vpack.c.bf16 %v1425, %v1424
      %v1429 = vpack.c.bf16 %v1427, %v1426
      %v1431 = vcombine.high %v1421, %v1421
      %v1433 = vpack.c.bf16 %v1421, %v1421
      %v1434 = vpack.c.bf16 %v1431, %v1431
      %v1435 = vpack.c.bf16 %v1422, %v1422
      %1439 = vrot.lane.b32.xlu0 %v1433, 90
      %v1440 = vpop.permute.xlu0 %1439
      %1441 = vrot.lane.b32.xlu0 %v1434, 90
      %v1442 = vpop.permute.xlu0 %1441
      %1443 = vrot.lane.b32.xlu0 %v1435, 90
      %v1444 = vpop.permute.xlu0 %1443
      %vm1445 = vcmask 736256
      %v1446 = vsel %vm1445, %v1440, %v1442
      %v1447 = vsel %vm1445, %v1442, %v1444
      %v1449 = vsel %vm249, %v1428, 0
      %v1452 = vsel %vm249, %v1429, 0
      %v1455 = vsel %vm256, %v1446, 0
      %v1458 = vsel %vm256, %v1447, 0
      %v1461 = vsel %vm256, %v1444, 0
      %1463 = vmatprep.subr.bf16.mxu0 0
      %1464 = vmatpush1.bf16.msra.mxu0 0
      %1465 = vmatprep.subr.bf16.mxu0 0
      %1466 = vmatpush1.bf16.msra.mxu0 0
      %1467 = vmatprep.subr.bf16.mxu0 0
      %1468 = vmatpush1.bf16.msra.mxu0 0
      %1469 = vmatprep.subr.bf16.mxu0 0
      %1470 = vmatpush1.bf16.msra.mxu0 0
      %1471 = vmatprep.subr.bf16.mxu0 0
      %1472 = vmatpush1.bf16.msra.mxu0 0
      %1473 = vmatprep.subr.bf16.mxu0 0
      %1474 = vmatpush1.bf16.msra.mxu0 0
      %1475 = vmatprep.subr.bf16.mxu0 0
      %1476 = vmatpush1.bf16.msra.mxu0 0
      %1477 = vmatprep.subr.bf16.mxu0 %v1458
      %1478 = vmatpush1.bf16.msra.mxu0 %v1455
      %1479 = vmatprep.subr.bf16.mxu0 0
      %1480 = vmatpush2.bf16.msra.mxu0 0
      %1481 = vmatprep.subr.bf16.mxu0 0
      %1482 = vmatpush2.bf16.msra.mxu0 0
      %1483 = vmatprep.subr.bf16.mxu0 0
      %1484 = vmatpush2.bf16.msra.mxu0 0
      %1485 = vmatprep.subr.bf16.mxu0 0
      %1486 = vmatpush2.bf16.msra.mxu0 0
      %1487 = vmatprep.subr.bf16.mxu0 0
      %1488 = vmatpush2.bf16.msra.mxu0 0
      %1489 = vmatprep.subr.bf16.mxu0 0
      %1490 = vmatpush2.bf16.msra.mxu0 0
      %1491 = vmatprep.subr.bf16.mxu0 0
      %1492 = vmatpush2.bf16.msra.mxu0 0
      %1493 = vmatprep.subr.bf16.mxu0 0
      %1494 = vmatpush2.bf16.msra.mxu0 0
      %1495 = vmatprep.mubr.bf16.mxu0 0
      %1496 = vmatmul.mubr.bf16.gmra.mxu0 %v1449
      %v1497 = vpop.f32.mrf.mxu0
      %v1498 = vadd.f32 0.0, %v1497
      %v1499 = vpop.f32.mrf.mxu0
      %v1500 = vadd.f32 0.0, %v1499
      %v1501 = vpop.f32.mrf.mxu0
      %v1502 = vadd.f32 0.0, %v1501
      %v1503 = vpop.f32.mrf.mxu0
      %v1504 = vadd.f32 0.0, %v1503
      %1505 = vmatprep.mubr.bf16.mxu0 0
      %1506 = vmatmul.mubr.bf16.gmra.mxu0 %v1452
      %v1507 = vpop.f32.mrf.mxu0
      %v1508 = vadd.f32 0.0, %v1507
      %v1509 = vpop.f32.mrf.mxu0
      %v1510 = vadd.f32 0.0, %v1509
      %v1511 = vpop.f32.mrf.mxu0
      %v1512 = vadd.f32 0.0, %v1511
      %v1513 = vpop.f32.mrf.mxu0
      %v1514 = vadd.f32 0.0, %v1513
      %1515 = vdwg.mxu0
      %1516 = vmatprep.subr.bf16.mxu0 0
      %1517 = vmatpush1.bf16.msra.mxu0 0
      %1518 = vmatprep.subr.bf16.mxu0 0
      %1519 = vmatpush1.bf16.msra.mxu0 0
      %1520 = vmatprep.subr.bf16.mxu0 0
      %1521 = vmatpush1.bf16.msra.mxu0 0
      %1522 = vmatprep.subr.bf16.mxu0 0
      %1523 = vmatpush1.bf16.msra.mxu0 0
      %1524 = vmatprep.subr.bf16.mxu0 0
      %1525 = vmatpush1.bf16.msra.mxu0 0
      %1526 = vmatprep.subr.bf16.mxu0 0
      %1527 = vmatpush1.bf16.msra.mxu0 0
      %1528 = vmatprep.subr.bf16.mxu0 0
      %1529 = vmatpush1.bf16.msra.mxu0 0
      %1530 = vmatprep.subr.bf16.mxu0 0
      %1531 = vmatpush1.bf16.msra.mxu0 %v1461
      %1532 = vmatprep.subr.bf16.mxu0 0
      %1533 = vmatpush2.bf16.msra.mxu0 0
      %1534 = vmatprep.subr.bf16.mxu0 0
      %1535 = vmatpush2.bf16.msra.mxu0 0
      %1536 = vmatprep.subr.bf16.mxu0 0
      %1537 = vmatpush2.bf16.msra.mxu0 0
      %1538 = vmatprep.subr.bf16.mxu0 0
      %1539 = vmatpush2.bf16.msra.mxu0 0
      %1540 = vmatprep.subr.bf16.mxu0 0
      %1541 = vmatpush2.bf16.msra.mxu0 0
      %1542 = vmatprep.subr.bf16.mxu0 0
      %1543 = vmatpush2.bf16.msra.mxu0 0
      %1544 = vmatprep.subr.bf16.mxu0 0
      %1545 = vmatpush2.bf16.msra.mxu0 0
      %1546 = vmatprep.subr.bf16.mxu0 0
      %1547 = vmatpush2.bf16.msra.mxu0 0
      %1548 = vmatprep.mubr.bf16.mxu0 0
      %1549 = vmatmul.mubr.bf16.gmra.mxu0 %v1449
      %v1550 = vpop.f32.mrf.mxu0
      %v1551 = vadd.f32 0.0, %v1550
      %v1552 = vpop.f32.mrf.mxu0
      %v1553 = vpop.f32.mrf.mxu0
      %v1554 = vadd.f32 0.0, %v1553
      %v1555 = vpop.f32.mrf.mxu0
      %1556 = vmatprep.mubr.bf16.mxu0 0
      %1557 = vmatmul.mubr.bf16.gmra.mxu0 %v1452
      %v1558 = vpop.f32.mrf.mxu0
      %v1559 = vadd.f32 0.0, %v1558
      %v1560 = vpop.f32.mrf.mxu0
      %v1561 = vpop.f32.mrf.mxu0
      %v1562 = vadd.f32 0.0, %v1561
      %v1563 = vpop.f32.mrf.mxu0
      %1564 = vdwg.mxu0
      %v1565 = vadd.f32 %v1409, %v1498
      %v1566 = vadd.f32 %v1410, %v1500
      %v1567 = vadd.f32 %v1411, %v1551
      %v1568 = vadd.f32 %v1412, %v1502
      %v1569 = vadd.f32 %v1413, %v1504
      %v1570 = vadd.f32 %v1414, %v1554
      %v1571 = vadd.f32 %v1415, %v1508
      %v1572 = vadd.f32 %v1416, %v1510
      %v1573 = vadd.f32 %v1417, %v1559
      %v1574 = vadd.f32 %v1418, %v1512
      %v1575 = vadd.f32 %v1419, %v1514
      %v1576 = vadd.f32 %v1420, %v1562
      %v1577 = vld [vmem:[%s2] sm:$0xff]
      %v1578 = vld [vmem:[%s2 + $0x8] sm:$0xff]
      %v1579 = vld [vmem:[%s2 + $0x10] sm:$0xff]
      %v1580 = vld [vmem:[%s2 + $0x18] sm:$0xff]
      %1582 = vset.pattern.permute.xlu0 0
      %1583 = vperm.xlu0 %1582, %v1577
      %v1584 = vpop.permute.xlu0 %1583
      %1587 = vset.pattern.permute.xlu0 0
      %1588 = vperm.xlu0 %1587, %v1578
      %v1589 = vpop.permute.xlu0 %1588
      %1592 = vset.pattern.permute.xlu0 0
      %1593 = vperm.xlu0 %1592, %v1579
      %v1594 = vpop.permute.xlu0 %1593
      %1597 = vset.pattern.permute.xlu0 0
      %1598 = vperm.xlu0 %1597, %v1580
      %v1599 = vpop.permute.xlu0 %1598
      %v1601 = vadd.f32 %v1565, %v1584
      %v1602 = vadd.f32 %v1566, %v1584
      %v1603 = vadd.f32 %v1567, %v1584
      %v1604 = vadd.f32 %v1568, %v1589
      %v1605 = vadd.f32 %v1569, %v1589
      %v1606 = vadd.f32 %v1570, %v1589
      %v1607 = vadd.f32 %v1571, %v1594
      %v1608 = vadd.f32 %v1572, %v1594
      %v1609 = vadd.f32 %v1573, %v1594
      %v1610 = vadd.f32 %v1574, %v1599
      %v1611 = vadd.f32 %v1575, %v1599
      %v1612 = vadd.f32 %v1576, %v1599
      %v1613 = vld [vmem:[%s209] sm:$0xff]
      %v1614 = vpack.c.bf16 %v1613, %v1613
      %v1615 = vpack.c.bf16 %v1604, %v1601
      %v1616 = vpack.c.bf16 %v1605, %v1602
      %v1617 = vpack.c.bf16 %v1606, %v1603
      %v1618 = vpack.c.bf16 %v1610, %v1607
      %v1619 = vpack.c.bf16 %v1611, %v1608
      %v1620 = vpack.c.bf16 %v1612, %v1609
      %vm1621 = vcmask 261120
      %v1623 = vsel %vm1621, %v1614, 0
      %1625 = vmatprep.subr.bf16.mxu0 0
      %1626 = vmatpush1.bf16.msra.mxu0 0
      %1627 = vmatprep.subr.bf16.mxu0 0
      %1628 = vmatpush1.bf16.msra.mxu0 0
      %1629 = vmatprep.subr.bf16.mxu0 0
      %1630 = vmatpush1.bf16.msra.mxu0 0
      %1631 = vmatprep.subr.bf16.mxu0 0
      %1632 = vmatpush1.bf16.msra.mxu0 0
      %1633 = vmatprep.subr.bf16.mxu0 0
      %1634 = vmatpush1.bf16.msra.mxu0 0
      %1635 = vmatprep.subr.bf16.mxu0 0
      %1636 = vmatpush1.bf16.msra.mxu0 0
      %1637 = vmatprep.subr.bf16.mxu0 %v1619
      %1638 = vmatpush1.bf16.msra.mxu0 %v1618
      %1639 = vmatprep.subr.bf16.mxu0 %v1616
      %1640 = vmatpush1.bf16.msra.mxu0 %v1615
      %1641 = vmatprep.subr.bf16.mxu0 0
      %1642 = vmatpush2.bf16.msra.mxu0 0
      %1643 = vmatprep.subr.bf16.mxu0 0
      %1644 = vmatpush2.bf16.msra.mxu0 0
      %1645 = vmatprep.subr.bf16.mxu0 0
      %1646 = vmatpush2.bf16.msra.mxu0 0
      %1647 = vmatprep.subr.bf16.mxu0 0
      %1648 = vmatpush2.bf16.msra.mxu0 0
      %1649 = vmatprep.subr.bf16.mxu0 0
      %1650 = vmatpush2.bf16.msra.mxu0 0
      %1651 = vmatprep.subr.bf16.mxu0 0
      %1652 = vmatpush2.bf16.msra.mxu0 0
      %1653 = vmatprep.subr.bf16.mxu0 0
      %1654 = vmatpush2.bf16.msra.mxu0 0
      %1655 = vmatprep.subr.bf16.mxu0 0
      %1656 = vmatpush2.bf16.msra.mxu0 0
      %1657 = vmatprep.mubr.bf16.mxu0 0
      %1658 = vmatmul.mubr.bf16.gmra.mxu0 %v1623
      %v1659 = vpop.f32.mrf.mxu0
      %v1660 = vadd.f32 0.0, %v1659
      %v1661 = vpop.f32.mrf.mxu0
      %v1662 = vadd.f32 0.0, %v1661
      %v1663 = vpop.f32.mrf.mxu0
      %v1664 = vpop.f32.mrf.mxu0
      %1665 = vdwg.mxu0
      %1666 = vmatprep.subr.bf16.mxu0 0
      %1667 = vmatpush1.bf16.msra.mxu0 0
      %1668 = vmatprep.subr.bf16.mxu0 0
      %1669 = vmatpush1.bf16.msra.mxu0 0
      %1670 = vmatprep.subr.bf16.mxu0 0
      %1671 = vmatpush1.bf16.msra.mxu0 0
      %1672 = vmatprep.subr.bf16.mxu0 0
      %1673 = vmatpush1.bf16.msra.mxu0 0
      %1674 = vmatprep.subr.bf16.mxu0 0
      %1675 = vmatpush1.bf16.msra.mxu0 0
      %1676 = vmatprep.subr.bf16.mxu0 0
      %1677 = vmatpush1.bf16.msra.mxu0 0
      %1678 = vmatprep.subr.bf16.mxu0 0
      %1679 = vmatpush1.bf16.msra.mxu0 %v1620
      %1680 = vmatprep.subr.bf16.mxu0 0
      %1681 = vmatpush1.bf16.msra.mxu0 %v1617
      %1682 = vmatprep.subr.bf16.mxu0 0
      %1683 = vmatpush2.bf16.msra.mxu0 0
      %1684 = vmatprep.subr.bf16.mxu0 0
      %1685 = vmatpush2.bf16.msra.mxu0 0
      %1686 = vmatprep.subr.bf16.mxu0 0
      %1687 = vmatpush2.bf16.msra.mxu0 0
      %1688 = vmatprep.subr.bf16.mxu0 0
      %1689 = vmatpush2.bf16.msra.mxu0 0
      %1690 = vmatprep.subr.bf16.mxu0 0
      %1691 = vmatpush2.bf16.msra.mxu0 0
      %1692 = vmatprep.subr.bf16.mxu0 0
      %1693 = vmatpush2.bf16.msra.mxu0 0
      %1694 = vmatprep.subr.bf16.mxu0 0
      %1695 = vmatpush2.bf16.msra.mxu0 0
      %1696 = vmatprep.subr.bf16.mxu0 0
      %1697 = vmatpush2.bf16.msra.mxu0 0
      %1698 = vmatprep.mubr.bf16.mxu0 0
      %1699 = vmatmul.mubr.bf16.gmra.mxu0 %v1623
      %v1700 = vpop.f32.mrf.mxu0
      %v1701 = vadd.f32 0.0, %v1700
      %v1702 = vpop.f32.mrf.mxu0
      %v1703 = vpop.f32.mrf.mxu0
      %v1704 = vpop.f32.mrf.mxu0
      %1705 = vdwg.mxu0
      %1706 = vst [vmem:[%s214] sm:$0xff] %v1660
      %1707 = vst [vmem:[%s214 + $0x8] sm:$0xff] %v1662
      %1708 = vst.msk [vmem:[%s214 + $0x10] sm:$0xff] %vm1621, %v1701
      %p1709 = scmp.lt.s32.totalorder %s15, 1
      %s1710 = scalar_select %p1709, %s15, 1
      %s1711 = smul.addr %s1710, 3
      %s1712 = smul.addr %s1711, 8
      %s1713 = scalar_lea.vmem %s4, %s1712
      // Predicated region
      $region37: #{mvit_forward.20} parent=35 // pred_check
        %p1714 = pneg %p127
      $region38: #{mvit_forward.20} parent=35 // pred_check_branch
        %1716 = sbr.rel (%p1714) target = $region40
      $region39: #{mvit_forward.20} parent=35 // pred_region
        _
      $region40: #{mvit_forward.20} parent=35 // pred_fallthru
        _
    $region36: #{mvit_forward.20} parent=5 // pred_fallthru
      _
    %p1717 = scmp.le.s32.totalorder 2, %s10
    // Predicated region
    $region41: #{mvit_forward.20} parent=5 // pred_check
      %p1718 = pneg %p1717
    $region42: #{mvit_forward.20} parent=5 // pred_check_branch
      %1720 = sbr.rel (%p1718) target = $region44
    $region43: #{mvit_forward.20} parent=5 // pred_region
      %s1721 = ssub.s32 %s10, 2
      // Predicated region
      $region45: #{mvit_forward.20} parent=43 // pred_check
        %p1722 = pneg %p133
      $region46: #{mvit_forward.20} parent=43 // pred_check_branch
        %1724 = sbr.rel (%p1722) target = $region48
      $region47: #{mvit_forward.20} parent=43 // pred_region
        %p1725 = scmp.lt.s32.totalorder %s16, 1
        %s1726 = scalar_select %p1725, %s16, 1
        %s1727 = smul.addr %s1726, 3
        %s1728 = smul.addr %s1727, 8
        %s1729 = scalar_lea.vmem %s4, %s1728
      $region48: #{mvit_forward.20} parent=43 // pred_fallthru
        _
    $region44: #{mvit_forward.20} parent=5 // pred_fallthru
      _
  $region6: #{mvit_forward.20} parent=0 // loop_footer
    %s14 = sadd.s32 1, %s10
  $region7: #{mvit_forward.20} parent=0 // loop_footer_branch
    %9 = sbr.rel target = $region3
  $region8: #{mvit_forward.20} parent=0 // loop_exit
    _

// kernel: mvit_forward.21
$region0: #{mvit_forward.21}
  #allocation0 [shape = 'u32[]', space=smem, size = 0x4, offset = 0x4, fixed_abs, tag = 'smem constant byte address 0x4 - core index']
  #allocation1 [shape = 'u32[144,128]{1,0:T(1,128)}', space=vmem, size = 0x12000, scoped, tag = 'internal scratch']
  %s0 = inlined_call_operand.vmem [shape: f32[2,32], index: 0, kind: input, shape index: {}]
  %s1 = inlined_call_operand.vmem [shape: f32[32,256], index: 1, kind: input, shape index: {}]
  %s2 = inlined_call_operand.vmem [shape: f32[1,256], index: 2, kind: input, shape index: {}]
  %s3 = inlined_call_operand.vmem [shape: f32[256,256], index: 3, kind: input, shape index: {}]
  %s4 = inlined_call_operand.vmem [shape: f32[1,256], index: 4, kind: input, shape index: {}]
  %s5 = inlined_call_operand.vmem [shape: f32[256,16], index: 5, kind: input, shape index: {}]
  %s6 = inlined_call_operand.vmem [shape: f32[1,16], index: 6, kind: input, shape index: {}]
  %s7 = inlined_call_operand.hbm [shape: f32[2,16], index: 7, kind: output, shape index: {}]
  %s8 = sld [smem:[#allocation0]]
  $region38: #{mvit_forward.21} parent=0
    _
  %s10 = ssub.s32 1, %s8
  %s11 = scalar_select 0, %s10, %s8
  $region1: #{mvit_forward.21} parent=0
    #allocation2 [shape = 'u8[1024]{0}', space=vmem, size = 0x400, scoped, tag = 'output window, operand 0, single buffered']
    #allocation3 [shape = 's32[1]{0}', space=sflag, size = 0x4, scoped, tag = 'scoped memory for mvit_forward.21']
    %12 = vsyncpa [#allocation3], 0
    // Predicated region
    $region2: #{mvit_forward.21} parent=1 // pred_check
      _
    $region3: #{mvit_forward.21} parent=1 // pred_check_branch
      %14 = sbr.rel (0) target = $region5
    $region4: #{mvit_forward.21} parent=1 // pred_region
      _
    $region5: #{mvit_forward.21} parent=1 // pred_fallthru
      _
    // Predicated region
    $region6: #{mvit_forward.21} parent=1 // pred_check
      _
    $region7: #{mvit_forward.21} parent=1 // pred_check_branch
      %16 = sbr.rel (0) target = $region9
    $region8: #{mvit_forward.21} parent=1 // pred_region
      _
    $region9: #{mvit_forward.21} parent=1 // pred_fallthru
      _
    // Predicated region
    $region10: #{mvit_forward.21} parent=1 // pred_check
      _
    $region11: #{mvit_forward.21} parent=1 // pred_check_branch
      %18 = sbr.rel (0) target = $region13
    $region12: #{mvit_forward.21} parent=1 // pred_region
      _
    $region13: #{mvit_forward.21} parent=1 // pred_fallthru
      _
    // Predicated region
    $region14: #{mvit_forward.21} parent=1 // pred_check
      _
    $region15: #{mvit_forward.21} parent=1 // pred_check_branch
      %20 = sbr.rel (0) target = $region17
    $region16: #{mvit_forward.21} parent=1 // pred_region
      _
    $region17: #{mvit_forward.21} parent=1 // pred_fallthru
      _
    // Predicated region
    $region18: #{mvit_forward.21} parent=1 // pred_check
      _
    $region19: #{mvit_forward.21} parent=1 // pred_check_branch
      %22 = sbr.rel (0) target = $region21
    $region20: #{mvit_forward.21} parent=1 // pred_region
      _
    $region21: #{mvit_forward.21} parent=1 // pred_fallthru
      _
    // Predicated region
    $region22: #{mvit_forward.21} parent=1 // pred_check
      _
    $region23: #{mvit_forward.21} parent=1 // pred_check_branch
      %24 = sbr.rel (0) target = $region25
    $region24: #{mvit_forward.21} parent=1 // pred_region
      _
    $region25: #{mvit_forward.21} parent=1 // pred_fallthru
      _
    // Predicated region
    $region26: #{mvit_forward.21} parent=1 // pred_check
      _
    $region27: #{mvit_forward.21} parent=1 // pred_check_branch
      %26 = sbr.rel (0) target = $region29
    $region28: #{mvit_forward.21} parent=1 // pred_region
      _
    $region29: #{mvit_forward.21} parent=1 // pred_fallthru
      _
    %v27 = vld [vmem:[%s0] sm:$0x3]
    %v28 = vld [vmem:[%s1] sm:$0xff]
    %v29 = vld [vmem:[%s1 + $0x8] sm:$0xff]
    %v30 = vld [vmem:[%s1 + $0x10] sm:$0xff]
    %v31 = vld [vmem:[%s1 + $0x18] sm:$0xff]
    %v32 = vld [vmem:[%s1 + $0x20] sm:$0xff]
    %v33 = vld [vmem:[%s1 + $0x28] sm:$0xff]
    %v34 = vld [vmem:[%s1 + $0x30] sm:$0xff]
    %v35 = vld [vmem:[%s1 + $0x38] sm:$0xff]
    %v36 = vld [vmem:[%s2] sm:$0x3]
    %v38 = vlaneseq
    %v39 = vshrl.u32 %v38, 7
    %v40 = vsub.s32 0, %v39
    %v41 = vrot.slane %v36, %v40
    %v42 = vlaneseq
    %v43 = vshrl.u32 %v42, 7
    %v44 = vsub.s32 1, %v43
    %v45 = vrot.slane %v36, %v44
    %vm48 = vcmask 261120
    %v50 = vsel %vm48, %v27, 0
    %52 = vmatprep.subr.mxu0 0.0
    %53 = vmatpush1.msra.mxu0 0.0
    %54 = vmatprep.subr.mxu0 0.0
    %55 = vmatpush1.msra.mxu0 0.0
    %56 = vmatprep.subr.mxu0 0.0
    %57 = vmatpush1.msra.mxu0 0.0
    %58 = vmatprep.subr.mxu0 0.0
    %59 = vmatpush1.msra.mxu0 0.0
    %60 = vmatprep.subr.mxu0 0.0
    %61 = vmatpush1.msra.mxu0 0.0
    %62 = vmatprep.subr.mxu0 0.0
    %63 = vmatpush1.msra.mxu0 0.0
    %64 = vmatprep.subr.mxu0 0.0
    %65 = vmatpush1.msra.mxu0 0.0
    %66 = vmatprep.subr.mxu0 0.0
    %67 = vmatpush1.msra.mxu0 0.0
    %68 = vmatprep.subr.mxu0 0.0
    %69 = vmatpush1.msra.mxu0 0.0
    %70 = vmatprep.subr.mxu0 0.0
    %71 = vmatpush1.msra.mxu0 0.0
    %72 = vmatprep.subr.mxu0 0.0
    %73 = vmatpush1.msra.mxu0 0.0
    %74 = vmatprep.subr.mxu0 0.0
    %75 = vmatpush1.msra.mxu0 0.0
    %76 = vmatprep.subr.mxu0 %v35
    %77 = vmatpush1.msra.mxu0 %v34
    %78 = vmatprep.subr.mxu0 %v33
    %79 = vmatpush1.msra.mxu0 %v32
    %80 = vmatprep.subr.mxu0 %v31
    %81 = vmatpush1.msra.mxu0 %v30
    %82 = vmatprep.subr.mxu0 %v29
    %83 = vmatpush1.msra.mxu0 %v28
    %84 = vmatprep.subr.mxu0 0.0
    %85 = vmatpush2.msra.mxu0 0.0
    %86 = vmatprep.subr.mxu0 0.0
    %87 = vmatpush2.msra.mxu0 0.0
    %88 = vmatprep.subr.mxu0 0.0
    %89 = vmatpush2.msra.mxu0 0.0
    %90 = vmatprep.subr.mxu0 0.0
    %91 = vmatpush2.msra.mxu0 0.0
    %92 = vmatprep.subr.mxu0 0.0
    %93 = vmatpush2.msra.mxu0 0.0
    %94 = vmatprep.subr.mxu0 0.0
    %95 = vmatpush2.msra.mxu0 0.0
    %96 = vmatprep.subr.mxu0 0.0
    %97 = vmatpush2.msra.mxu0 0.0
    %98 = vmatprep.subr.mxu0 0.0
    %99 = vmatpush2.msra.mxu0 0.0
    %100 = vmatprep.subr.mxu0 0.0
    %101 = vmatpush2.msra.mxu0 0.0
    %102 = vmatprep.subr.mxu0 0.0
    %103 = vmatpush2.msra.mxu0 0.0
    %104 = vmatprep.subr.mxu0 0.0
    %105 = vmatpush2.msra.mxu0 0.0
    %106 = vmatprep.subr.mxu0 0.0
    %107 = vmatpush2.msra.mxu0 0.0
    %108 = vmatprep.subr.mxu0 0.0
    %109 = vmatpush2.msra.mxu0 0.0
    %110 = vmatprep.subr.mxu0 0.0
    %111 = vmatpush2.msra.mxu0 0.0
    %112 = vmatprep.subr.mxu0 0.0
    %113 = vmatpush2.msra.mxu0 0.0
    %114 = vmatprep.subr.mxu0 0.0
    %115 = vmatpush2.msra.mxu0 0.0
    %116 = vmatprep.mubr.f32.mxu0 0.0
    %117 = vmatmul.mubr.f32.gmra.mxu0 %v50
    %v118 = vpop.f32.mrf.mxu0
    %v119 = vadd.f32 %v41, %v118
    %v120 = vpop.f32.mrf.mxu0
    %v121 = vadd.f32 %v45, %v120
    %122 = vdwg.mxu0
    %vm123 = vcmp.ge.f32.partialorder %v119, 0.0
    %vm124 = vcmp.ge.f32.partialorder %v121, 0.0
    %v125 = vmul.f32 %v119, 0.01
    %v126 = vmul.f32 %v121, 0.01
    %v127 = vsel %vm123, %v119, %v125
    %v128 = vsel %vm124, %v121, %v126
    %v129 = vld [vmem:[%s3] sm:$0xff]
    %v130 = vld [vmem:[%s3 + $0x8] sm:$0xff]
    %v131 = vld [vmem:[%s3 + $0x10] sm:$0xff]
    %v132 = vld [vmem:[%s3 + $0x18] sm:$0xff]
    %v133 = vld [vmem:[%s3 + $0x20] sm:$0xff]
    %v134 = vld [vmem:[%s3 + $0x28] sm:$0xff]
    %v135 = vld [vmem:[%s3 + $0x30] sm:$0xff]
    %v136 = vld [vmem:[%s3 + $0x38] sm:$0xff]
    %v137 = vld [vmem:[%s3 + $0x40] sm:$0xff]
    %v138 = vld [vmem:[%s3 + $0x48] sm:$0xff]
    %v139 = vld [vmem:[%s3 + $0x50] sm:$0xff]
    %v140 = vld [vmem:[%s3 + $0x58] sm:$0xff]
    %v141 = vld [vmem:[%s3 + $0x60] sm:$0xff]
    %v142 = vld [vmem:[%s3 + $0x68] sm:$0xff]
    %v143 = vld [vmem:[%s3 + $0x70] sm:$0xff]
    %v144 = vld [vmem:[%s3 + $0x78] sm:$0xff]
    %v145 = vld [vmem:[%s3 + $0x80] sm:$0xff]
    %v146 = vld [vmem:[%s3 + $0x88] sm:$0xff]
    %v147 = vld [vmem:[%s3 + $0x90] sm:$0xff]
    %v148 = vld [vmem:[%s3 + $0x98] sm:$0xff]
    %v149 = vld [vmem:[%s3 + $0xa0] sm:$0xff]
    %v150 = vld [vmem:[%s3 + $0xa8] sm:$0xff]
    %v151 = vld [vmem:[%s3 + $0xb0] sm:$0xff]
    %v152 = vld [vmem:[%s3 + $0xb8] sm:$0xff]
    %v153 = vld [vmem:[%s3 + $0xc0] sm:$0xff]
    %v154 = vld [vmem:[%s3 + $0xc8] sm:$0xff]
    %v155 = vld [vmem:[%s3 + $0xd0] sm:$0xff]
    %v156 = vld [vmem:[%s3 + $0xd8] sm:$0xff]
    %v157 = vld [vmem:[%s3 + $0xe0] sm:$0xff]
    %v158 = vld [vmem:[%s3 + $0xe8] sm:$0xff]
    %v159 = vld [vmem:[%s3 + $0xf0] sm:$0xff]
    %v160 = vld [vmem:[%s3 + $0xf8] sm:$0xff]
    %v161 = vld [vmem:[%s3 + $0x100] sm:$0xff]
    %v162 = vld [vmem:[%s3 + $0x108] sm:$0xff]
    %v163 = vld [vmem:[%s3 + $0x110] sm:$0xff]
    %v164 = vld [vmem:[%s3 + $0x118] sm:$0xff]
    %v165 = vld [vmem:[%s3 + $0x120] sm:$0xff]
    %v166 = vld [vmem:[%s3 + $0x128] sm:$0xff]
    %v167 = vld [vmem:[%s3 + $0x130] sm:$0xff]
    %v168 = vld [vmem:[%s3 + $0x138] sm:$0xff]
    %v169 = vld [vmem:[%s3 + $0x140] sm:$0xff]
    %v170 = vld [vmem:[%s3 + $0x148] sm:$0xff]
    %v171 = vld [vmem:[%s3 + $0x150] sm:$0xff]
    %v172 = vld [vmem:[%s3 + $0x158] sm:$0xff]
    %v173 = vld [vmem:[%s3 + $0x160] sm:$0xff]
    %v174 = vld [vmem:[%s3 + $0x168] sm:$0xff]
    %v175 = vld [vmem:[%s3 + $0x170] sm:$0xff]
    %v176 = vld [vmem:[%s3 + $0x178] sm:$0xff]
    %v177 = vld [vmem:[%s3 + $0x180] sm:$0xff]
    %v178 = vld [vmem:[%s3 + $0x188] sm:$0xff]
    %v179 = vld [vmem:[%s3 + $0x190] sm:$0xff]
    %v180 = vld [vmem:[%s3 + $0x198] sm:$0xff]
    %v181 = vld [vmem:[%s3 + $0x1a0] sm:$0xff]
    %v182 = vld [vmem:[%s3 + $0x1a8] sm:$0xff]
    %v183 = vld [vmem:[%s3 + $0x1b0] sm:$0xff]
    %v184 = vld [vmem:[%s3 + $0x1b8] sm:$0xff]
    %v185 = vld [vmem:[%s3 + $0x1c0] sm:$0xff]
    %v186 = vld [vmem:[%s3 + $0x1c8] sm:$0xff]
    %v187 = vld [vmem:[%s3 + $0x1d0] sm:$0xff]
    %v188 = vld [vmem:[%s3 + $0x1d8] sm:$0xff]
    %v189 = vld [vmem:[%s3 + $0x1e0] sm:$0xff]
    %v190 = vld [vmem:[%s3 + $0x1e8] sm:$0xff]
    %v191 = vld [vmem:[%s3 + $0x1f0] sm:$0xff]
    %v192 = vld [vmem:[%s3 + $0x1f8] sm:$0xff]
    %v193 = vld [vmem:[%s4] sm:$0x3]
    %v195 = vlaneseq
    %v196 = vshrl.u32 %v195, 7
    %v197 = vsub.s32 0, %v196
    %v198 = vrot.slane %v193, %v197
    %v199 = vlaneseq
    %v200 = vshrl.u32 %v199, 7
    %v201 = vsub.s32 1, %v200
    %v202 = vrot.slane %v193, %v201
    %205 = vmatprep.subr.mxu0 %v160
    %206 = vmatpush1.msra.mxu0 %v159
    %207 = vmatprep.subr.mxu0 %v158
    %208 = vmatpush1.msra.mxu0 %v157
    %209 = vmatprep.subr.mxu0 %v156
    %210 = vmatpush1.msra.mxu0 %v155
    %211 = vmatprep.subr.mxu0 %v154
    %212 = vmatpush1.msra.mxu0 %v153
    %213 = vmatprep.subr.mxu0 %v152
    %214 = vmatpush1.msra.mxu0 %v151
    %215 = vmatprep.subr.mxu0 %v150
    %216 = vmatpush1.msra.mxu0 %v149
    %217 = vmatprep.subr.mxu0 %v148
    %218 = vmatpush1.msra.mxu0 %v147
    %219 = vmatprep.subr.mxu0 %v146
    %220 = vmatpush1.msra.mxu0 %v145
    %221 = vmatprep.subr.mxu0 %v144
    %222 = vmatpush1.msra.mxu0 %v143
    %223 = vmatprep.subr.mxu0 %v142
    %224 = vmatpush1.msra.mxu0 %v141
    %225 = vmatprep.subr.mxu0 %v140
    %226 = vmatpush1.msra.mxu0 %v139
    %227 = vmatprep.subr.mxu0 %v138
    %228 = vmatpush1.msra.mxu0 %v137
    %229 = vmatprep.subr.mxu0 %v136
    %230 = vmatpush1.msra.mxu0 %v135
    %231 = vmatprep.subr.mxu0 %v134
    %232 = vmatpush1.msra.mxu0 %v133
    %233 = vmatprep.subr.mxu0 %v132
    %234 = vmatpush1.msra.mxu0 %v131
    %235 = vmatprep.subr.mxu0 %v130
    %236 = vmatpush1.msra.mxu0 %v129
    %237 = vmatprep.subr.mxu0 %v192
    %238 = vmatpush2.msra.mxu0 %v191
    %239 = vmatprep.subr.mxu0 %v190
    %240 = vmatpush2.msra.mxu0 %v189
    %241 = vmatprep.subr.mxu0 %v188
    %242 = vmatpush2.msra.mxu0 %v187
    %243 = vmatprep.subr.mxu0 %v186
    %244 = vmatpush2.msra.mxu0 %v185
    %245 = vmatprep.subr.mxu0 %v184
    %246 = vmatpush2.msra.mxu0 %v183
    %247 = vmatprep.subr.mxu0 %v182
    %248 = vmatpush2.msra.mxu0 %v181
    %249 = vmatprep.subr.mxu0 %v180
    %250 = vmatpush2.msra.mxu0 %v179
    %251 = vmatprep.subr.mxu0 %v178
    %252 = vmatpush2.msra.mxu0 %v177
    %253 = vmatprep.subr.mxu0 %v176
    %254 = vmatpush2.msra.mxu0 %v175
    %255 = vmatprep.subr.mxu0 %v174
    %256 = vmatpush2.msra.mxu0 %v173
    %257 = vmatprep.subr.mxu0 %v172
    %258 = vmatpush2.msra.mxu0 %v171
    %259 = vmatprep.subr.mxu0 %v170
    %260 = vmatpush2.msra.mxu0 %v169
    %261 = vmatprep.subr.mxu0 %v168
    %262 = vmatpush2.msra.mxu0 %v167
    %263 = vmatprep.subr.mxu0 %v166
    %264 = vmatpush2.msra.mxu0 %v165
    %265 = vmatprep.subr.mxu0 %v164
    %266 = vmatpush2.msra.mxu0 %v163
    %267 = vmatprep.subr.mxu0 %v162
    %268 = vmatpush2.msra.mxu0 %v161
    %269 = vmatprep.mubr.f32.mxu0 %v128
    %270 = vmatmul.mubr.f32.gmra.mxu0 %v127
    %v271 = vpop.f32.mrf.mxu0
    %v272 = vadd.f32 %v198, %v271
    %v273 = vpop.f32.mrf.mxu0
    %v274 = vadd.f32 %v202, %v273
    %275 = vdwg.mxu0
    %vm276 = vcmp.ge.f32.partialorder %v272, 0.0
    %vm277 = vcmp.ge.f32.partialorder %v274, 0.0
    %v278 = vmul.f32 %v272, 0.01
    %v279 = vmul.f32 %v274, 0.01
    %v280 = vsel %vm276, %v272, %v278
    %v281 = vsel %vm277, %v274, %v279
    %v282 = vld [vmem:[%s5] sm:$0xff]
    %v283 = vld [vmem:[%s5 + $0x8] sm:$0xff]
    %v284 = vld [vmem:[%s5 + $0x10] sm:$0xff]
    %v285 = vld [vmem:[%s5 + $0x18] sm:$0xff]
    %v286 = vld [vmem:[%s5 + $0x20] sm:$0xff]
    %v287 = vld [vmem:[%s5 + $0x28] sm:$0xff]
    %v288 = vld [vmem:[%s5 + $0x30] sm:$0xff]
    %v289 = vld [vmem:[%s5 + $0x38] sm:$0xff]
    %v290 = vld [vmem:[%s5 + $0x40] sm:$0xff]
    %v291 = vld [vmem:[%s5 + $0x48] sm:$0xff]
    %v292 = vld [vmem:[%s5 + $0x50] sm:$0xff]
    %v293 = vld [vmem:[%s5 + $0x58] sm:$0xff]
    %v294 = vld [vmem:[%s5 + $0x60] sm:$0xff]
    %v295 = vld [vmem:[%s5 + $0x68] sm:$0xff]
    %v296 = vld [vmem:[%s5 + $0x70] sm:$0xff]
    %v297 = vld [vmem:[%s5 + $0x78] sm:$0xff]
    %v298 = vld [vmem:[%s5 + $0x80] sm:$0xff]
    %v299 = vld [vmem:[%s5 + $0x88] sm:$0xff]
    %v300 = vld [vmem:[%s5 + $0x90] sm:$0xff]
    %v301 = vld [vmem:[%s5 + $0x98] sm:$0xff]
    %v302 = vld [vmem:[%s5 + $0xa0] sm:$0xff]
    %v303 = vld [vmem:[%s5 + $0xa8] sm:$0xff]
    %v304 = vld [vmem:[%s5 + $0xb0] sm:$0xff]
    %v305 = vld [vmem:[%s5 + $0xb8] sm:$0xff]
    %v306 = vld [vmem:[%s5 + $0xc0] sm:$0xff]
    %v307 = vld [vmem:[%s5 + $0xc8] sm:$0xff]
    %v308 = vld [vmem:[%s5 + $0xd0] sm:$0xff]
    %v309 = vld [vmem:[%s5 + $0xd8] sm:$0xff]
    %v310 = vld [vmem:[%s5 + $0xe0] sm:$0xff]
    %v311 = vld [vmem:[%s5 + $0xe8] sm:$0xff]
    %v312 = vld [vmem:[%s5 + $0xf0] sm:$0xff]
    %v313 = vld [vmem:[%s5 + $0xf8] sm:$0xff]
    %v314 = vld [vmem:[%s6] sm:$0x1]
    %v316 = vlaneseq
    %v317 = vshrl.u32 %v316, 7
    %v318 = vsub.s32 0, %v317
    %v319 = vrot.slane %v314, %v318
    %321 = vmatprep.subr.mxu0 0.0
    %322 = vmatpush1.msra.mxu0 %v297
    %323 = vmatprep.subr.mxu0 0.0
    %324 = vmatpush1.msra.mxu0 %v296
    %325 = vmatprep.subr.mxu0 0.0
    %326 = vmatpush1.msra.mxu0 %v295
    %327 = vmatprep.subr.mxu0 0.0
    %328 = vmatpush1.msra.mxu0 %v294
    %329 = vmatprep.subr.mxu0 0.0
    %330 = vmatpush1.msra.mxu0 %v293
    %331 = vmatprep.subr.mxu0 0.0
    %332 = vmatpush1.msra.mxu0 %v292
    %333 = vmatprep.subr.mxu0 0.0
    %334 = vmatpush1.msra.mxu0 %v291
    %335 = vmatprep.subr.mxu0 0.0
    %336 = vmatpush1.msra.mxu0 %v290
    %337 = vmatprep.subr.mxu0 0.0
    %338 = vmatpush1.msra.mxu0 %v289
    %339 = vmatprep.subr.mxu0 0.0
    %340 = vmatpush1.msra.mxu0 %v288
    %341 = vmatprep.subr.mxu0 0.0
    %342 = vmatpush1.msra.mxu0 %v287
    %343 = vmatprep.subr.mxu0 0.0
    %344 = vmatpush1.msra.mxu0 %v286
    %345 = vmatprep.subr.mxu0 0.0
    %346 = vmatpush1.msra.mxu0 %v285
    %347 = vmatprep.subr.mxu0 0.0
    %348 = vmatpush1.msra.mxu0 %v284
    %349 = vmatprep.subr.mxu0 0.0
    %350 = vmatpush1.msra.mxu0 %v283
    %351 = vmatprep.subr.mxu0 0.0
    %352 = vmatpush1.msra.mxu0 %v282
    %353 = vmatprep.subr.mxu0 0.0
    %354 = vmatpush2.msra.mxu0 %v313
    %355 = vmatprep.subr.mxu0 0.0
    %356 = vmatpush2.msra.mxu0 %v312
    %357 = vmatprep.subr.mxu0 0.0
    %358 = vmatpush2.msra.mxu0 %v311
    %359 = vmatprep.subr.mxu0 0.0
    %360 = vmatpush2.msra.mxu0 %v310
    %361 = vmatprep.subr.mxu0 0.0
    %362 = vmatpush2.msra.mxu0 %v309
    %363 = vmatprep.subr.mxu0 0.0
    %364 = vmatpush2.msra.mxu0 %v308
    %365 = vmatprep.subr.mxu0 0.0
    %366 = vmatpush2.msra.mxu0 %v307
    %367 = vmatprep.subr.mxu0 0.0
    %368 = vmatpush2.msra.mxu0 %v306
    %369 = vmatprep.subr.mxu0 0.0
    %370 = vmatpush2.msra.mxu0 %v305
    %371 = vmatprep.subr.mxu0 0.0
    %372 = vmatpush2.msra.mxu0 %v304
    %373 = vmatprep.subr.mxu0 0.0
    %374 = vmatpush2.msra.mxu0 %v303
    %375 = vmatprep.subr.mxu0 0.0
    %376 = vmatpush2.msra.mxu0 %v302
    %377 = vmatprep.subr.mxu0 0.0
    %378 = vmatpush2.msra.mxu0 %v301
    %379 = vmatprep.subr.mxu0 0.0
    %380 = vmatpush2.msra.mxu0 %v300
    %381 = vmatprep.subr.mxu0 0.0
    %382 = vmatpush2.msra.mxu0 %v299
    %383 = vmatprep.subr.mxu0 0.0
    %384 = vmatpush2.msra.mxu0 %v298
    %385 = vmatprep.mubr.f32.mxu0 %v281
    %386 = vmatmul.mubr.f32.gmra.mxu0 %v280
    %v387 = vpop.f32.mrf.mxu0
    %v388 = vadd.f32 %v319, %v387
    %v389 = vpop.f32.mrf.mxu0
    %390 = vdwg.mxu0
    %vm391 = vcmask 123904
    %v392 = vsel %vm391, %v388, -inf
    %393 = vmax.xlane.f32.xlu0 %v392
    %v394 = vpop.xlane.xlu0 %393
    %v395 = vsub.f32 %v388, %v394
    %v396 = vmul.f32 %v395, 1.442695
    %v397 = vpow.pop %v396
    %v398 = vsel %vm391, %v397, 0.0
    %399 = vadd.xlane.f32.xlu0 %v398
    %v400 = vpop.xlane.xlu0 %399
    %v401 = vrcp.pop %v400
    %v402 = vmul.f32 %v397, %v401
    %403 = vst.msk [vmem:[#allocation2] sm:$0x3] %vm391, %v402
    // Predicated region
    $region30: #{mvit_forward.21} parent=1 // pred_check
      _
    $region31: #{mvit_forward.21} parent=1 // pred_check_branch
      %405 = sbr.rel (0) target = $region33
    $region32: #{mvit_forward.21} parent=1 // pred_region
      %s407 = ssub.s32 32, 32
      %408 = vsyncadd [#allocation3], %s407
      %s410 = sshll.u32 [#allocation2], 4
      %s411 = int_to_ptr.vmem [resolvable:$true] %s410
      %413 = dma.vmem_to_hbm [thread:$0]  %s411, 32, %s7, [#allocation3]
    $region33: #{mvit_forward.21} parent=1 // pred_fallthru
      _
    // Predicated region
    $region34: #{mvit_forward.21} parent=1 // pred_check
      _
    $region35: #{mvit_forward.21} parent=1 // pred_check_branch
      %415 = sbr.rel (0) target = $region37
    $region36: #{mvit_forward.21} parent=1 // pred_region
      %416 = dma.done [#allocation3], 32
    $region37: #{mvit_forward.21} parent=1 // pred_fallthru
      _
    %417 = vsyncpa [#allocation3], 1

</llo_original>
